<compile_context>
chip_gen: v6e
topology: v6e:2x2x1
jax: 0.10.0
libtpu: 0.0.40
codegen_flags: <defaults>
</compile_context>

<pallas_src>
import jax
import jax.numpy as jnp
import numpy as np
from jax.experimental import pallas as pl
from jax.experimental.pallas import tpu as pltpu


def rnn_ccvae_kernel(goal_ref, xseq_ref, mask_ref, eps_ref,
                     w_ih_ref, w_hh_ref, b_ih_ref, b_hh_ref, b_head_ref,
                     w_enc_hbm, w_sq_hbm, w_dc_hbm, w_head_hbm,
                     packed_ref, recon_ref,
                     w_enc_vmem, w_sq_vmem, w_dc_vmem, w_head_vmem, dma_sem):
    B, D = goal_ref.shape            # batch, input_dim (== GRU hidden size)
    T = xseq_ref.shape[0]            # max sequence length
    Z = eps_ref.shape[1]             # latent dim
    H = recon_ref.shape[1]           # hidden dim (== packed output width)
    f32 = jnp.float32

    # ---- kick off MLP-weight DMAs; they overlap with the GRU recurrence ----
    enc_cp = pltpu.make_async_copy(w_enc_hbm, w_enc_vmem, dma_sem.at[0])
    sq_cp = pltpu.make_async_copy(w_sq_hbm, w_sq_vmem, dma_sem.at[1])
    dc_cp = pltpu.make_async_copy(w_dc_hbm, w_dc_vmem, dma_sem.at[2])
    head_cp = pltpu.make_async_copy(w_head_hbm, w_head_vmem, dma_sem.at[3])
    enc_cp.start()
    sq_cp.start()
    dc_cp.start()
    head_cp.start()

    def dot(a, b):
        # bf16 x bf16 MXU inputs, f32 accumulation.
        return jnp.dot(a.astype(jnp.bfloat16), b, preferred_element_type=f32)

    # ---- hoisted input projection: one (T*B, D) matmul instead of T small ones ----
    x_all = xseq_ref[...].reshape(T * B, D)                     # (T*B, D) bf16
    gx_all = dot(x_all, w_ih_ref[...]) + b_ih_ref[...]          # (T*B, 3D) f32, b_ih folded

    # ---- hoisted loop invariants (off the serial dependency chain) ----
    w_hh = w_hh_ref[...]                                        # (D, 3D) bf16
    b_hh_b = jnp.broadcast_to(b_hh_ref[...], (B, 3 * D))        # one broadcast, not T
    keep_all = jnp.broadcast_to(mask_ref[...] > 0.5, (T, B, D))  # pack_padded mask

    # ---- GRU over time, fully unrolled (T is static) ----
    # pack_padded_sequence semantics: h frozen once t >= stack_lengths[b].
    # PyTorch n-gate: tanh(W_in x + b_in + r * (W_hn h + b_hn)) -> b_hh stays inside.
    h = jnp.zeros((B, D), f32)
    for t in range(T):
        gx = gx_all[t * B:(t + 1) * B, :]                       # (B, 3D) static, aligned
        gh = dot(h, w_hh) + b_hh_b                              # (B, 3D)
        r = jax.nn.sigmoid(gx[:, 0:D] + gh[:, 0:D])
        u = jax.nn.sigmoid(gx[:, D:2 * D] + gh[:, D:2 * D])
        n = jnp.tanh(gx[:, 2 * D:3 * D] + r * gh[:, 2 * D:3 * D])
        h_new = (1.0 - u) * n + u * h
        h = jnp.where(keep_all[t], h_new, h)
    cond = h                                                    # (B, D) f32

    # ---- MLP weights are needed only now: wait for the prefetch DMAs ----
    enc_cp.wait()
    sq_cp.wait()
    dc_cp.wait()
    head_cp.wait()

    w_e1 = w_sq_vmem[0]          # (H, H)
    w_e2 = w_sq_vmem[1]
    w_d1 = w_sq_vmem[2]
    w_d2 = w_sq_vmem[3]
    w_dz_pad = w_sq_vmem[4]      # (H, H); rows 2Z:3Z hold w_dec_z, rest zero

    # ---- encode ----
    gc = jnp.concatenate([goal_ref[...], cond], axis=-1)        # (B, 2D)
    hidden = dot(gc, w_enc_vmem[...])                           # (B, H)
    feat = jnp.maximum(hidden, 0.0)
    feat = jnp.maximum(dot(feat, w_e1), 0.0)
    feat = jnp.maximum(dot(feat, w_e2), 0.0)
    head = dot(feat, w_head_vmem[...]) + b_head_ref[...]        # (B, 2Z) fused mu|logvar
    mu = head[:, 0:Z]
    logvar = head[:, Z:2 * Z]

    # ---- reparameterize (training mode; eps supplied from host) ----
    z = eps_ref[...] * jnp.exp(0.5 * logvar) + mu               # (B, Z)

    # ---- lane-dense packed output: [mu | logvar | z | zeros] in 128 lanes ----
    packed = jnp.concatenate(
        [mu, logvar, z, jnp.zeros((B, H - 3 * Z), f32)], axis=-1)   # (B, H)
    packed_ref[...] = packed

    # ---- decode ----
    # packed @ w_dz_pad == z @ w_dec_z (w_dec_z sits at rows 2Z:3Z, other rows zero),
    # so the packed slab doubles as the zero-padded, lane-dense decoder z input.
    hd = dot(packed, w_dz_pad) + dot(cond, w_dc_vmem[...])      # (B, H)
    d = jnp.maximum(hd, 0.0)
    d = jnp.maximum(dot(d, w_d1), 0.0)
    recon = dot(d, w_d2)                                        # final layer: no ReLU
    recon_ref[...] = recon


def rnn_ccvae_forward(params, goal, stack_cond, stack_lengths, eps):
    B, T, D = stack_cond.shape
    Z = params["w_mu"].shape[1]
    H = params["w_e1"].shape[1]
    assert 3 * Z <= H, "packed output needs 3*z_dim <= hidden_dim"
    # NOTE: stack_lengths must be >= 1 (PyTorch pack_padded_sequence rejects 0).

    bf16, f32 = jnp.bfloat16, jnp.float32

    # time-major sequence + validity mask (pack_padded_sequence emulation)
    xseq = jnp.transpose(stack_cond, (1, 0, 2)).astype(bf16)            # (T, B, D)
    mask = (jnp.arange(T)[:, None] < stack_lengths[None, :]).astype(f32)
    mask = mask[:, :, None]                                             # (T, B, 1)

    # --- weights packed for the kernel (bf16 storage, f32 biases) ---
    w_ih = params["w_ih"].astype(bf16)                                  # (D, 3D)
    w_hh = params["w_hh"].astype(bf16)                                  # (D, 3D)
    b_ih = params["b_ih"].astype(f32)                                   # (1, 3D)
    b_hh = params["b_hh"].astype(f32)                                   # (1, 3D)

    w_enc_full = jnp.concatenate(
        [params["w_enc_goal"], params["w_enc_cond"]], axis=0).astype(bf16)   # (2D, H)

    w_dz_pad = jnp.zeros((H, H), f32).at[2 * Z:3 * Z, :].set(params["w_dec_z"])
    w_sq = jnp.stack(                                                    # (5, H, H)
        [params["w_e1"], params["w_e2"], params["w_d1"], params["w_d2"], w_dz_pad],
        axis=0).astype(bf16)
    w_dec_cond = params["w_dec_cond"].astype(bf16)                       # (D, H)

    w_head = jnp.concatenate([params["w_mu"], params["w_lv"]], axis=1).astype(bf16)  # (H, 2Z)
    b_head = jnp.concatenate([params["b_mu"], params["b_lv"]], axis=1).astype(f32)   # (1, 2Z)

    inputs = (goal.astype(f32), xseq, mask, eps.astype(f32),
              w_ih, w_hh, b_ih, b_hh, b_head,          # 9 auto-VMEM inputs
              w_enc_full, w_sq, w_dec_cond, w_head)    # 4 HBM inputs (manual DMA)

    vmem = pl.BlockSpec(memory_space=pltpu.MemorySpace.VMEM)
    hbm = pl.BlockSpec(memory_space=pl.ANY)
    in_specs = [vmem] * 9 + [hbm] * 4

    out_shape = (jax.ShapeDtypeStruct((B, H), f32),    # packed: mu|logvar|z|0
                 jax.ShapeDtypeStruct((B, H), f32))    # recon

    scratch_shapes = [
        pltpu.VMEM((2 * D, H), bf16),                  # w_enc_full
        pltpu.VMEM((5, H, H), bf16),                   # w_e1,w_e2,w_d1,w_d2,w_dz_pad
        pltpu.VMEM((D, H), bf16),                      # w_dec_cond
        pltpu.VMEM((H, 2 * Z), bf16),                  # fused mu/logvar head
        pltpu.SemaphoreType.DMA((4,)),
    ]

    flops = 2 * B * (T * D * 3 * D          # x @ W_ih (hoisted)
                     + T * D * 3 * D        # h @ W_hh
                     + 2 * D * H            # encoder concat linear
                     + 2 * H * H            # encoder hidden x2
                     + H * 2 * Z            # fused mu/logvar head
                     + H * H + D * H        # decoder concat linear (z-pad + cond)
                     + 2 * H * H)           # decoder hidden + out
    transcendentals = B * (T * 3 * D + Z)
    bytes_accessed = int(sum(int(np.prod(a.shape)) * a.dtype.itemsize for a in inputs)
                         + 2 * B * H * 4)

    packed, recon = pl.pallas_call(
        rnn_ccvae_kernel,
        out_shape=out_shape,
        in_specs=in_specs,
        out_specs=(vmem, vmem),
        scratch_shapes=scratch_shapes,
        compiler_params=pltpu.CompilerParams(vmem_limit_bytes=4 * 1024 * 1024),
        cost_estimate=pl.CostEstimate(flops=flops,
                                      transcendentals=transcendentals,
                                      bytes_accessed=bytes_accessed),
    )(*inputs)

    mu = packed[:, 0:Z]
    logvar = packed[:, Z:2 * Z]
    z = packed[:, 2 * Z:3 * Z]
    return (mu, logvar), z, recon


def init_params(key, input_dim=128, z_dim=8, hidden_dim=128):
    """Deterministic synthetic init matching the torch module's parameter shapes.
    Linear weights: kaiming_normal(fan_in, relu); GRU / biases: uniform(-1/sqrt(fan), ...).
    All weights stored (in, out)."""
    ks = list(jax.random.split(key, 16))

    def kaiming(k, fan_in, shape):
        return jax.random.normal(k, shape, jnp.float32) * jnp.sqrt(2.0 / fan_in)

    def unif(k, fan, shape):
        bound = 1.0 / jnp.sqrt(fan)
        return jax.random.uniform(k, shape, jnp.float32, -bound, bound)

    D, Z, H = input_dim, z_dim, hidden_dim
    p = {}
    # GRU (hidden_size = input_dim), gate order r|z|n
    p["w_ih"] = unif(ks[0], D, (D, 3 * D))
    p["w_hh"] = unif(ks[1], D, (D, 3 * D))
    p["b_ih"] = unif(ks[2], D, (1, 3 * D))
    p["b_hh"] = unif(ks[3], D, (1, 3 * D))
    # concat_enc: Linear(2D -> H, bias=False), weight split into goal / cond halves
    p["w_enc_goal"] = kaiming(ks[4], 2 * D, (D, H))
    p["w_enc_cond"] = kaiming(ks[5], 2 * D, (D, H))
    # _encoder hidden layers (n_hidden = 2), bias=False
    p["w_e1"] = kaiming(ks[6], H, (H, H))
    p["w_e2"] = kaiming(ks[7], H, (H, H))
    # mu / logvar heads: Linear(H -> Z) with bias
    p["w_mu"] = kaiming(ks[8], H, (H, Z))
    p["b_mu"] = unif(ks[9], H, (1, Z))
    p["w_lv"] = kaiming(ks[10], H, (H, Z))
    p["b_lv"] = unif(ks[11], H, (1, Z))
    # concat_dec: Linear(Z + D -> H, bias=False), split into z / cond parts
    p["w_dec_z"] = kaiming(ks[12], Z + D, (Z, H))
    p["w_dec_cond"] = kaiming(ks[13], Z + D, (D, H))
    # _decoder: ReLU, Linear(H->H), ReLU, Linear(H->H)   (bias=False)
    p["w_d1"] = kaiming(ks[14], H, (H, H))
    p["w_d2"] = kaiming(ks[15], H, (H, H))
    return p


def reference_forward(params, goal, stack_cond, stack_lengths, eps):
    """Plain-JAX reference. Weights / xseq rounded to bf16 (the kernel's storage
    dtype) so the comparison only measures MXU/activation precision."""
    def bf(a):
        return a.astype(jnp.bfloat16).astype(jnp.float32)

    B, T, D = stack_cond.shape
    x = bf(stack_cond)
    w_ih, w_hh = bf(params["w_ih"]), bf(params["w_hh"])
    b_ih, b_hh = params["b_ih"], params["b_hh"]
    h = jnp.zeros((B, D), jnp.float32)
    for t in range(T):
        x_t = x[:, t, :]
        gx = x_t @ w_ih + b_ih
        gh = h @ w_hh + b_hh
        r = jax.nn.sigmoid(gx[:, :D] + gh[:, :D])
        u = jax.nn.sigmoid(gx[:, D:2 * D] + gh[:, D:2 * D])
        n = jnp.tanh(gx[:, 2 * D:] + r * gh[:, 2 * D:])
        h_new = (1.0 - u) * n + u * h
        m = (t < stack_lengths).astype(jnp.float32)[:, None]
        h = m * h_new + (1.0 - m) * h
    cond = h
    hidden = goal @ bf(params["w_enc_goal"]) + cond @ bf(params["w_enc_cond"])
    feat = jnp.maximum(hidden, 0.0)
    feat = jnp.maximum(feat @ bf(params["w_e1"]), 0.0)
    feat = jnp.maximum(feat @ bf(params["w_e2"]), 0.0)
    mu = feat @ bf(params["w_mu"]) + params["b_mu"]
    logvar = feat @ bf(params["w_lv"]) + params["b_lv"]
    z = eps * jnp.exp(0.5 * logvar) + mu
    hd = z @ bf(params["w_dec_z"]) + cond @ bf(params["w_dec_cond"])
    d = jnp.maximum(hd, 0.0)
    d = jnp.maximum(d @ bf(params["w_d1"]), 0.0)
    recon = d @ bf(params["w_d2"])
    return (mu, logvar), z, recon


if __name__ == "__main__":
    B, T, D, Z, H = 8, 8, 128, 8, 128   # batch, seq, input_dim, z_dim, hidden_dim

    key = jax.random.PRNGKey(0)
    k_par, k_goal, k_cond, k_eps = jax.random.split(key, 4)

    params = init_params(k_par, input_dim=D, z_dim=Z, hidden_dim=H)
    goal = jax.random.normal(k_goal, (B, D), jnp.float32)
    stack_cond = jax.random.normal(k_cond, (B, T, D), jnp.float32)
    stack_lengths = jnp.array([8, 5, 3, 7, 1, 8, 4, 6], dtype=jnp.int32)
    eps = jax.random.normal(k_eps, (B, Z), jnp.float32)   # reparameterize noise

    (mu, logvar), z, recon = rnn_ccvae_forward(params, goal, stack_cond,
                                               stack_lengths, eps)
    jax.block_until_ready((mu, logvar, z, recon))

    # sanity check vs. plain-JAX reference (tolerance covers bf16 MXU precision)
    (mu_r, lv_r), z_r, rec_r = reference_forward(params, goal, stack_cond,
                                                 stack_lengths, eps)
    np.testing.assert_allclose(np.asarray(mu), np.asarray(mu_r), rtol=5e-2, atol=5e-2)
    np.testing.assert_allclose(np.asarray(logvar), np.asarray(lv_r), rtol=5e-2, atol=5e-2)
    np.testing.assert_allclose(np.asarray(z), np.asarray(z_r), rtol=5e-2, atol=5e-2)
    np.testing.assert_allclose(np.asarray(recon), np.asarray(rec_r), rtol=5e-2, atol=5e-2)

    assert mu.shape == (B, Z) and logvar.shape == (B, Z)
    assert z.shape == (B, Z) and recon.shape == (B, H)
    print("KERNEL_OK")
</pallas_src>

<mosaic_0001>
module attributes {stable_mosaic.version = 11 : i64} {
  func.func @rnn_ccvae_kernel(%arg0: memref<8x128xf32, #tpu.memory_space<vmem>>, %arg1: memref<8x8x128xbf16, #tpu.memory_space<vmem>>, %arg2: memref<8x8x1xf32, #tpu.memory_space<vmem>>, %arg3: memref<8x8xf32, #tpu.memory_space<vmem>>, %arg4: memref<128x384xbf16, #tpu.memory_space<vmem>>, %arg5: memref<128x384xbf16, #tpu.memory_space<vmem>>, %arg6: memref<1x384xf32, #tpu.memory_space<vmem>>, %arg7: memref<1x384xf32, #tpu.memory_space<vmem>>, %arg8: memref<1x16xf32, #tpu.memory_space<vmem>>, %arg9: memref<256x128xbf16, #tpu.memory_space<any>>, %arg10: memref<5x128x128xbf16, #tpu.memory_space<any>>, %arg11: memref<128x128xbf16, #tpu.memory_space<any>>, %arg12: memref<128x16xbf16, #tpu.memory_space<any>>, %arg13: memref<8x128xf32, #tpu.memory_space<vmem>>, %arg14: memref<8x128xf32, #tpu.memory_space<vmem>>, %arg15: memref<256x128xbf16, #tpu.memory_space<vmem>>, %arg16: memref<5x128x128xbf16, #tpu.memory_space<vmem>>, %arg17: memref<128x128xbf16, #tpu.memory_space<vmem>>, %arg18: memref<128x16xbf16, #tpu.memory_space<vmem>>, %arg19: memref<4x!tpu.dma_semaphore, #tpu.memory_space<semaphore_mem>>) attributes {dimension_semantics = [], scalar_prefetch = 0 : i64, scratch_operands = 5 : i64, tpu.core_type = #tpu.core_type<tc>} {
    %c0_i32 = arith.constant 0 : i32
    %0 = tpu.memref_slice %arg19[%c0_i32] : memref<4x!tpu.dma_semaphore, #tpu.memory_space<semaphore_mem>> -> memref<1x!tpu.dma_semaphore, #tpu.memory_space<semaphore_mem>>
    %1 = tpu.memref_squeeze %0 : memref<1x!tpu.dma_semaphore, #tpu.memory_space<semaphore_mem>> -> memref<!tpu.dma_semaphore, #tpu.memory_space<semaphore_mem>>
    tpu.enqueue_dma source(%arg9 : memref<256x128xbf16, #tpu.memory_space<any>>) target(%arg15 : memref<256x128xbf16, #tpu.memory_space<vmem>>) target_semaphore(%1 : memref<!tpu.dma_semaphore, #tpu.memory_space<semaphore_mem>>)
    %c1_i32 = arith.constant 1 : i32
    %2 = tpu.memref_slice %arg19[%c1_i32] : memref<4x!tpu.dma_semaphore, #tpu.memory_space<semaphore_mem>> -> memref<1x!tpu.dma_semaphore, #tpu.memory_space<semaphore_mem>>
    %3 = tpu.memref_squeeze %2 : memref<1x!tpu.dma_semaphore, #tpu.memory_space<semaphore_mem>> -> memref<!tpu.dma_semaphore, #tpu.memory_space<semaphore_mem>>
    tpu.enqueue_dma source(%arg10 : memref<5x128x128xbf16, #tpu.memory_space<any>>) target(%arg16 : memref<5x128x128xbf16, #tpu.memory_space<vmem>>) target_semaphore(%3 : memref<!tpu.dma_semaphore, #tpu.memory_space<semaphore_mem>>)
    %c2_i32 = arith.constant 2 : i32
    %4 = tpu.memref_slice %arg19[%c2_i32] : memref<4x!tpu.dma_semaphore, #tpu.memory_space<semaphore_mem>> -> memref<1x!tpu.dma_semaphore, #tpu.memory_space<semaphore_mem>>
    %5 = tpu.memref_squeeze %4 : memref<1x!tpu.dma_semaphore, #tpu.memory_space<semaphore_mem>> -> memref<!tpu.dma_semaphore, #tpu.memory_space<semaphore_mem>>
    tpu.enqueue_dma source(%arg11 : memref<128x128xbf16, #tpu.memory_space<any>>) target(%arg17 : memref<128x128xbf16, #tpu.memory_space<vmem>>) target_semaphore(%5 : memref<!tpu.dma_semaphore, #tpu.memory_space<semaphore_mem>>)
    %c3_i32 = arith.constant 3 : i32
    %6 = tpu.memref_slice %arg19[%c3_i32] : memref<4x!tpu.dma_semaphore, #tpu.memory_space<semaphore_mem>> -> memref<1x!tpu.dma_semaphore, #tpu.memory_space<semaphore_mem>>
    %7 = tpu.memref_squeeze %6 : memref<1x!tpu.dma_semaphore, #tpu.memory_space<semaphore_mem>> -> memref<!tpu.dma_semaphore, #tpu.memory_space<semaphore_mem>>
    tpu.enqueue_dma source(%arg12 : memref<128x16xbf16, #tpu.memory_space<any>>) target(%arg18 : memref<128x16xbf16, #tpu.memory_space<vmem>>) target_semaphore(%7 : memref<!tpu.dma_semaphore, #tpu.memory_space<semaphore_mem>>)
    %c0 = arith.constant 0 : index
    %c0_0 = arith.constant 0 : index
    %c0_1 = arith.constant 0 : index
    %8 = vector.load %arg1[%c0, %c0_0, %c0_1] : memref<8x8x128xbf16, #tpu.memory_space<vmem>>, vector<8x8x128xbf16>
    %9 = vector.shape_cast %8 : vector<8x8x128xbf16> to vector<64x128xbf16>
    %c0_2 = arith.constant 0 : index
    %c0_3 = arith.constant 0 : index
    %10 = vector.load %arg4[%c0_2, %c0_3] : memref<128x384xbf16, #tpu.memory_space<vmem>>, vector<128x384xbf16>
    %cst = arith.constant dense<0.000000e+00> : vector<64x384xf32>
    %11 = tpu.matmul %9, %10, %cst {dimension_numbers = #tpu.dot_dimension_numbers<[1], [0], [0], [1], [0, 0, 1, 1], [], []>} : vector<64x128xbf16>, vector<128x384xbf16>, vector<64x384xf32> -> vector<64x384xf32>
    %c0_4 = arith.constant 0 : index
    %c0_5 = arith.constant 0 : index
    %12 = vector.load %arg6[%c0_4, %c0_5] : memref<1x384xf32, #tpu.memory_space<vmem>>, vector<1x384xf32>
    %13 = vector.broadcast %12 : vector<1x384xf32> to vector<64x384xf32>
    %14 = arith.addf %11, %13 : vector<64x384xf32>
    %c0_6 = arith.constant 0 : index
    %c0_7 = arith.constant 0 : index
    %15 = vector.load %arg5[%c0_6, %c0_7] : memref<128x384xbf16, #tpu.memory_space<vmem>>, vector<128x384xbf16>
    %c0_8 = arith.constant 0 : index
    %c0_9 = arith.constant 0 : index
    %16 = vector.load %arg7[%c0_8, %c0_9] : memref<1x384xf32, #tpu.memory_space<vmem>>, vector<1x384xf32>
    %17 = vector.shape_cast %16 : vector<1x384xf32> to vector<1x384xf32>
    %18 = vector.broadcast %17 : vector<1x384xf32> to vector<8x384xf32>
    %c0_10 = arith.constant 0 : index
    %c0_11 = arith.constant 0 : index
    %c0_12 = arith.constant 0 : index
    %19 = vector.load %arg2[%c0_10, %c0_11, %c0_12] : memref<8x8x1xf32, #tpu.memory_space<vmem>>, vector<8x8x1xf32>
    %cst_13 = arith.constant 5.000000e-01 : f32
    %20 = vector.broadcast %cst_13 : f32 to vector<8x8x1xf32>
    %21 = arith.cmpf ogt, %19, %20 : vector<8x8x1xf32>
    %22 = vector.shape_cast %21 : vector<8x8x1xi1> to vector<8x8x1xi1>
    %23 = vector.broadcast %22 : vector<8x8x1xi1> to vector<8x8x128xi1>
    %cst_14 = arith.constant 0.000000e+00 : f32
    %24 = vector.broadcast %cst_14 : f32 to vector<8x128xf32>
    %25 = vector.extract_strided_slice %14 {offsets = [0, 0], sizes = [8, 384], strides = [1, 1]} : vector<64x384xf32> to vector<8x384xf32>
    %26 = arith.truncf %24 : vector<8x128xf32> to vector<8x128xbf16>
    %cst_15 = arith.constant dense<0.000000e+00> : vector<8x384xf32>
    %27 = tpu.matmul %26, %15, %cst_15 {dimension_numbers = #tpu.dot_dimension_numbers<[1], [0], [0], [1], [0, 0, 1, 1], [], []>} : vector<8x128xbf16>, vector<128x384xbf16>, vector<8x384xf32> -> vector<8x384xf32>
    %28 = arith.addf %27, %18 : vector<8x384xf32>
    %29 = vector.extract_strided_slice %25 {offsets = [0, 0], sizes = [8, 128], strides = [1, 1]} : vector<8x384xf32> to vector<8x128xf32>
    %30 = vector.extract_strided_slice %28 {offsets = [0, 0], sizes = [8, 128], strides = [1, 1]} : vector<8x384xf32> to vector<8x128xf32>
    %31 = arith.addf %29, %30 : vector<8x128xf32>
    %32 = arith.negf %31 : vector<8x128xf32>
    %33 = math.exp %32 : vector<8x128xf32>
    %cst_16 = arith.constant 1.000000e+00 : f32
    %34 = vector.broadcast %cst_16 : f32 to vector<8x128xf32>
    %35 = arith.addf %34, %33 : vector<8x128xf32>
    %36 = arith.divf %34, %35 : vector<8x128xf32>
    %37 = vector.extract_strided_slice %25 {offsets = [0, 128], sizes = [8, 128], strides = [1, 1]} : vector<8x384xf32> to vector<8x128xf32>
    %38 = vector.extract_strided_slice %28 {offsets = [0, 128], sizes = [8, 128], strides = [1, 1]} : vector<8x384xf32> to vector<8x128xf32>
    %39 = arith.addf %37, %38 : vector<8x128xf32>
    %40 = arith.negf %39 : vector<8x128xf32>
    %41 = math.exp %40 : vector<8x128xf32>
    %cst_17 = arith.constant 1.000000e+00 : f32
    %42 = vector.broadcast %cst_17 : f32 to vector<8x128xf32>
    %43 = arith.addf %42, %41 : vector<8x128xf32>
    %44 = arith.divf %42, %43 : vector<8x128xf32>
    %45 = vector.extract_strided_slice %25 {offsets = [0, 256], sizes = [8, 128], strides = [1, 1]} : vector<8x384xf32> to vector<8x128xf32>
    %46 = vector.extract_strided_slice %28 {offsets = [0, 256], sizes = [8, 128], strides = [1, 1]} : vector<8x384xf32> to vector<8x128xf32>
    %47 = arith.mulf %36, %46 : vector<8x128xf32>
    %48 = arith.addf %45, %47 : vector<8x128xf32>
    %49 = math.tanh %48 : vector<8x128xf32>
    %cst_18 = arith.constant 1.000000e+00 : f32
    %50 = vector.broadcast %cst_18 : f32 to vector<8x128xf32>
    %51 = arith.subf %50, %44 : vector<8x128xf32>
    %52 = arith.mulf %51, %49 : vector<8x128xf32>
    %53 = arith.mulf %44, %24 : vector<8x128xf32>
    %54 = arith.addf %52, %53 : vector<8x128xf32>
    %55 = vector.extract_strided_slice %23 {offsets = [0, 0, 0], sizes = [1, 8, 128], strides = [1, 1, 1]} : vector<8x8x128xi1> to vector<1x8x128xi1>
    %56 = vector.shape_cast %55 : vector<1x8x128xi1> to vector<8x128xi1>
    %57 = arith.select %56, %54, %24 : vector<8x128xi1>, vector<8x128xf32>
    %58 = vector.extract_strided_slice %14 {offsets = [8, 0], sizes = [8, 384], strides = [1, 1]} : vector<64x384xf32> to vector<8x384xf32>
    %59 = arith.truncf %57 : vector<8x128xf32> to vector<8x128xbf16>
    %cst_19 = arith.constant dense<0.000000e+00> : vector<8x384xf32>
    %60 = tpu.matmul %59, %15, %cst_19 {dimension_numbers = #tpu.dot_dimension_numbers<[1], [0], [0], [1], [0, 0, 1, 1], [], []>} : vector<8x128xbf16>, vector<128x384xbf16>, vector<8x384xf32> -> vector<8x384xf32>
    %61 = arith.addf %60, %18 : vector<8x384xf32>
    %62 = vector.extract_strided_slice %58 {offsets = [0, 0], sizes = [8, 128], strides = [1, 1]} : vector<8x384xf32> to vector<8x128xf32>
    %63 = vector.extract_strided_slice %61 {offsets = [0, 0], sizes = [8, 128], strides = [1, 1]} : vector<8x384xf32> to vector<8x128xf32>
    %64 = arith.addf %62, %63 : vector<8x128xf32>
    %65 = arith.negf %64 : vector<8x128xf32>
    %66 = math.exp %65 : vector<8x128xf32>
    %cst_20 = arith.constant 1.000000e+00 : f32
    %67 = vector.broadcast %cst_20 : f32 to vector<8x128xf32>
    %68 = arith.addf %67, %66 : vector<8x128xf32>
    %69 = arith.divf %67, %68 : vector<8x128xf32>
    %70 = vector.extract_strided_slice %58 {offsets = [0, 128], sizes = [8, 128], strides = [1, 1]} : vector<8x384xf32> to vector<8x128xf32>
    %71 = vector.extract_strided_slice %61 {offsets = [0, 128], sizes = [8, 128], strides = [1, 1]} : vector<8x384xf32> to vector<8x128xf32>
    %72 = arith.addf %70, %71 : vector<8x128xf32>
    %73 = arith.negf %72 : vector<8x128xf32>
    %74 = math.exp %73 : vector<8x128xf32>
    %cst_21 = arith.constant 1.000000e+00 : f32
    %75 = vector.broadcast %cst_21 : f32 to vector<8x128xf32>
    %76 = arith.addf %75, %74 : vector<8x128xf32>
    %77 = arith.divf %75, %76 : vector<8x128xf32>
    %78 = vector.extract_strided_slice %58 {offsets = [0, 256], sizes = [8, 128], strides = [1, 1]} : vector<8x384xf32> to vector<8x128xf32>
    %79 = vector.extract_strided_slice %61 {offsets = [0, 256], sizes = [8, 128], strides = [1, 1]} : vector<8x384xf32> to vector<8x128xf32>
    %80 = arith.mulf %69, %79 : vector<8x128xf32>
    %81 = arith.addf %78, %80 : vector<8x128xf32>
    %82 = math.tanh %81 : vector<8x128xf32>
    %cst_22 = arith.constant 1.000000e+00 : f32
    %83 = vector.broadcast %cst_22 : f32 to vector<8x128xf32>
    %84 = arith.subf %83, %77 : vector<8x128xf32>
    %85 = arith.mulf %84, %82 : vector<8x128xf32>
    %86 = arith.mulf %77, %57 : vector<8x128xf32>
    %87 = arith.addf %85, %86 : vector<8x128xf32>
    %88 = vector.extract_strided_slice %23 {offsets = [1, 0, 0], sizes = [1, 8, 128], strides = [1, 1, 1]} : vector<8x8x128xi1> to vector<1x8x128xi1>
    %89 = vector.shape_cast %88 : vector<1x8x128xi1> to vector<8x128xi1>
    %90 = arith.select %89, %87, %57 : vector<8x128xi1>, vector<8x128xf32>
    %91 = vector.extract_strided_slice %14 {offsets = [16, 0], sizes = [8, 384], strides = [1, 1]} : vector<64x384xf32> to vector<8x384xf32>
    %92 = arith.truncf %90 : vector<8x128xf32> to vector<8x128xbf16>
    %cst_23 = arith.constant dense<0.000000e+00> : vector<8x384xf32>
    %93 = tpu.matmul %92, %15, %cst_23 {dimension_numbers = #tpu.dot_dimension_numbers<[1], [0], [0], [1], [0, 0, 1, 1], [], []>} : vector<8x128xbf16>, vector<128x384xbf16>, vector<8x384xf32> -> vector<8x384xf32>
    %94 = arith.addf %93, %18 : vector<8x384xf32>
    %95 = vector.extract_strided_slice %91 {offsets = [0, 0], sizes = [8, 128], strides = [1, 1]} : vector<8x384xf32> to vector<8x128xf32>
    %96 = vector.extract_strided_slice %94 {offsets = [0, 0], sizes = [8, 128], strides = [1, 1]} : vector<8x384xf32> to vector<8x128xf32>
    %97 = arith.addf %95, %96 : vector<8x128xf32>
    %98 = arith.negf %97 : vector<8x128xf32>
    %99 = math.exp %98 : vector<8x128xf32>
    %cst_24 = arith.constant 1.000000e+00 : f32
    %100 = vector.broadcast %cst_24 : f32 to vector<8x128xf32>
    %101 = arith.addf %100, %99 : vector<8x128xf32>
    %102 = arith.divf %100, %101 : vector<8x128xf32>
    %103 = vector.extract_strided_slice %91 {offsets = [0, 128], sizes = [8, 128], strides = [1, 1]} : vector<8x384xf32> to vector<8x128xf32>
    %104 = vector.extract_strided_slice %94 {offsets = [0, 128], sizes = [8, 128], strides = [1, 1]} : vector<8x384xf32> to vector<8x128xf32>
    %105 = arith.addf %103, %104 : vector<8x128xf32>
    %106 = arith.negf %105 : vector<8x128xf32>
    %107 = math.exp %106 : vector<8x128xf32>
    %cst_25 = arith.constant 1.000000e+00 : f32
    %108 = vector.broadcast %cst_25 : f32 to vector<8x128xf32>
    %109 = arith.addf %108, %107 : vector<8x128xf32>
    %110 = arith.divf %108, %109 : vector<8x128xf32>
    %111 = vector.extract_strided_slice %91 {offsets = [0, 256], sizes = [8, 128], strides = [1, 1]} : vector<8x384xf32> to vector<8x128xf32>
    %112 = vector.extract_strided_slice %94 {offsets = [0, 256], sizes = [8, 128], strides = [1, 1]} : vector<8x384xf32> to vector<8x128xf32>
    %113 = arith.mulf %102, %112 : vector<8x128xf32>
    %114 = arith.addf %111, %113 : vector<8x128xf32>
    %115 = math.tanh %114 : vector<8x128xf32>
    %cst_26 = arith.constant 1.000000e+00 : f32
    %116 = vector.broadcast %cst_26 : f32 to vector<8x128xf32>
    %117 = arith.subf %116, %110 : vector<8x128xf32>
    %118 = arith.mulf %117, %115 : vector<8x128xf32>
    %119 = arith.mulf %110, %90 : vector<8x128xf32>
    %120 = arith.addf %118, %119 : vector<8x128xf32>
    %121 = vector.extract_strided_slice %23 {offsets = [2, 0, 0], sizes = [1, 8, 128], strides = [1, 1, 1]} : vector<8x8x128xi1> to vector<1x8x128xi1>
    %122 = vector.shape_cast %121 : vector<1x8x128xi1> to vector<8x128xi1>
    %123 = arith.select %122, %120, %90 : vector<8x128xi1>, vector<8x128xf32>
    %124 = vector.extract_strided_slice %14 {offsets = [24, 0], sizes = [8, 384], strides = [1, 1]} : vector<64x384xf32> to vector<8x384xf32>
    %125 = arith.truncf %123 : vector<8x128xf32> to vector<8x128xbf16>
    %cst_27 = arith.constant dense<0.000000e+00> : vector<8x384xf32>
    %126 = tpu.matmul %125, %15, %cst_27 {dimension_numbers = #tpu.dot_dimension_numbers<[1], [0], [0], [1], [0, 0, 1, 1], [], []>} : vector<8x128xbf16>, vector<128x384xbf16>, vector<8x384xf32> -> vector<8x384xf32>
    %127 = arith.addf %126, %18 : vector<8x384xf32>
    %128 = vector.extract_strided_slice %124 {offsets = [0, 0], sizes = [8, 128], strides = [1, 1]} : vector<8x384xf32> to vector<8x128xf32>
    %129 = vector.extract_strided_slice %127 {offsets = [0, 0], sizes = [8, 128], strides = [1, 1]} : vector<8x384xf32> to vector<8x128xf32>
    %130 = arith.addf %128, %129 : vector<8x128xf32>
    %131 = arith.negf %130 : vector<8x128xf32>
    %132 = math.exp %131 : vector<8x128xf32>
    %cst_28 = arith.constant 1.000000e+00 : f32
    %133 = vector.broadcast %cst_28 : f32 to vector<8x128xf32>
    %134 = arith.addf %133, %132 : vector<8x128xf32>
    %135 = arith.divf %133, %134 : vector<8x128xf32>
    %136 = vector.extract_strided_slice %124 {offsets = [0, 128], sizes = [8, 128], strides = [1, 1]} : vector<8x384xf32> to vector<8x128xf32>
    %137 = vector.extract_strided_slice %127 {offsets = [0, 128], sizes = [8, 128], strides = [1, 1]} : vector<8x384xf32> to vector<8x128xf32>
    %138 = arith.addf %136, %137 : vector<8x128xf32>
    %139 = arith.negf %138 : vector<8x128xf32>
    %140 = math.exp %139 : vector<8x128xf32>
    %cst_29 = arith.constant 1.000000e+00 : f32
    %141 = vector.broadcast %cst_29 : f32 to vector<8x128xf32>
    %142 = arith.addf %141, %140 : vector<8x128xf32>
    %143 = arith.divf %141, %142 : vector<8x128xf32>
    %144 = vector.extract_strided_slice %124 {offsets = [0, 256], sizes = [8, 128], strides = [1, 1]} : vector<8x384xf32> to vector<8x128xf32>
    %145 = vector.extract_strided_slice %127 {offsets = [0, 256], sizes = [8, 128], strides = [1, 1]} : vector<8x384xf32> to vector<8x128xf32>
    %146 = arith.mulf %135, %145 : vector<8x128xf32>
    %147 = arith.addf %144, %146 : vector<8x128xf32>
    %148 = math.tanh %147 : vector<8x128xf32>
    %cst_30 = arith.constant 1.000000e+00 : f32
    %149 = vector.broadcast %cst_30 : f32 to vector<8x128xf32>
    %150 = arith.subf %149, %143 : vector<8x128xf32>
    %151 = arith.mulf %150, %148 : vector<8x128xf32>
    %152 = arith.mulf %143, %123 : vector<8x128xf32>
    %153 = arith.addf %151, %152 : vector<8x128xf32>
    %154 = vector.extract_strided_slice %23 {offsets = [3, 0, 0], sizes = [1, 8, 128], strides = [1, 1, 1]} : vector<8x8x128xi1> to vector<1x8x128xi1>
    %155 = vector.shape_cast %154 : vector<1x8x128xi1> to vector<8x128xi1>
    %156 = arith.select %155, %153, %123 : vector<8x128xi1>, vector<8x128xf32>
    %157 = vector.extract_strided_slice %14 {offsets = [32, 0], sizes = [8, 384], strides = [1, 1]} : vector<64x384xf32> to vector<8x384xf32>
    %158 = arith.truncf %156 : vector<8x128xf32> to vector<8x128xbf16>
    %cst_31 = arith.constant dense<0.000000e+00> : vector<8x384xf32>
    %159 = tpu.matmul %158, %15, %cst_31 {dimension_numbers = #tpu.dot_dimension_numbers<[1], [0], [0], [1], [0, 0, 1, 1], [], []>} : vector<8x128xbf16>, vector<128x384xbf16>, vector<8x384xf32> -> vector<8x384xf32>
    %160 = arith.addf %159, %18 : vector<8x384xf32>
    %161 = vector.extract_strided_slice %157 {offsets = [0, 0], sizes = [8, 128], strides = [1, 1]} : vector<8x384xf32> to vector<8x128xf32>
    %162 = vector.extract_strided_slice %160 {offsets = [0, 0], sizes = [8, 128], strides = [1, 1]} : vector<8x384xf32> to vector<8x128xf32>
    %163 = arith.addf %161, %162 : vector<8x128xf32>
    %164 = arith.negf %163 : vector<8x128xf32>
    %165 = math.exp %164 : vector<8x128xf32>
    %cst_32 = arith.constant 1.000000e+00 : f32
    %166 = vector.broadcast %cst_32 : f32 to vector<8x128xf32>
    %167 = arith.addf %166, %165 : vector<8x128xf32>
    %168 = arith.divf %166, %167 : vector<8x128xf32>
    %169 = vector.extract_strided_slice %157 {offsets = [0, 128], sizes = [8, 128], strides = [1, 1]} : vector<8x384xf32> to vector<8x128xf32>
    %170 = vector.extract_strided_slice %160 {offsets = [0, 128], sizes = [8, 128], strides = [1, 1]} : vector<8x384xf32> to vector<8x128xf32>
    %171 = arith.addf %169, %170 : vector<8x128xf32>
    %172 = arith.negf %171 : vector<8x128xf32>
    %173 = math.exp %172 : vector<8x128xf32>
    %cst_33 = arith.constant 1.000000e+00 : f32
    %174 = vector.broadcast %cst_33 : f32 to vector<8x128xf32>
    %175 = arith.addf %174, %173 : vector<8x128xf32>
    %176 = arith.divf %174, %175 : vector<8x128xf32>
    %177 = vector.extract_strided_slice %157 {offsets = [0, 256], sizes = [8, 128], strides = [1, 1]} : vector<8x384xf32> to vector<8x128xf32>
    %178 = vector.extract_strided_slice %160 {offsets = [0, 256], sizes = [8, 128], strides = [1, 1]} : vector<8x384xf32> to vector<8x128xf32>
    %179 = arith.mulf %168, %178 : vector<8x128xf32>
    %180 = arith.addf %177, %179 : vector<8x128xf32>
    %181 = math.tanh %180 : vector<8x128xf32>
    %cst_34 = arith.constant 1.000000e+00 : f32
    %182 = vector.broadcast %cst_34 : f32 to vector<8x128xf32>
    %183 = arith.subf %182, %176 : vector<8x128xf32>
    %184 = arith.mulf %183, %181 : vector<8x128xf32>
    %185 = arith.mulf %176, %156 : vector<8x128xf32>
    %186 = arith.addf %184, %185 : vector<8x128xf32>
    %187 = vector.extract_strided_slice %23 {offsets = [4, 0, 0], sizes = [1, 8, 128], strides = [1, 1, 1]} : vector<8x8x128xi1> to vector<1x8x128xi1>
    %188 = vector.shape_cast %187 : vector<1x8x128xi1> to vector<8x128xi1>
    %189 = arith.select %188, %186, %156 : vector<8x128xi1>, vector<8x128xf32>
    %190 = vector.extract_strided_slice %14 {offsets = [40, 0], sizes = [8, 384], strides = [1, 1]} : vector<64x384xf32> to vector<8x384xf32>
    %191 = arith.truncf %189 : vector<8x128xf32> to vector<8x128xbf16>
    %cst_35 = arith.constant dense<0.000000e+00> : vector<8x384xf32>
    %192 = tpu.matmul %191, %15, %cst_35 {dimension_numbers = #tpu.dot_dimension_numbers<[1], [0], [0], [1], [0, 0, 1, 1], [], []>} : vector<8x128xbf16>, vector<128x384xbf16>, vector<8x384xf32> -> vector<8x384xf32>
    %193 = arith.addf %192, %18 : vector<8x384xf32>
    %194 = vector.extract_strided_slice %190 {offsets = [0, 0], sizes = [8, 128], strides = [1, 1]} : vector<8x384xf32> to vector<8x128xf32>
    %195 = vector.extract_strided_slice %193 {offsets = [0, 0], sizes = [8, 128], strides = [1, 1]} : vector<8x384xf32> to vector<8x128xf32>
    %196 = arith.addf %194, %195 : vector<8x128xf32>
    %197 = arith.negf %196 : vector<8x128xf32>
    %198 = math.exp %197 : vector<8x128xf32>
    %cst_36 = arith.constant 1.000000e+00 : f32
    %199 = vector.broadcast %cst_36 : f32 to vector<8x128xf32>
    %200 = arith.addf %199, %198 : vector<8x128xf32>
    %201 = arith.divf %199, %200 : vector<8x128xf32>
    %202 = vector.extract_strided_slice %190 {offsets = [0, 128], sizes = [8, 128], strides = [1, 1]} : vector<8x384xf32> to vector<8x128xf32>
    %203 = vector.extract_strided_slice %193 {offsets = [0, 128], sizes = [8, 128], strides = [1, 1]} : vector<8x384xf32> to vector<8x128xf32>
    %204 = arith.addf %202, %203 : vector<8x128xf32>
    %205 = arith.negf %204 : vector<8x128xf32>
    %206 = math.exp %205 : vector<8x128xf32>
    %cst_37 = arith.constant 1.000000e+00 : f32
    %207 = vector.broadcast %cst_37 : f32 to vector<8x128xf32>
    %208 = arith.addf %207, %206 : vector<8x128xf32>
    %209 = arith.divf %207, %208 : vector<8x128xf32>
    %210 = vector.extract_strided_slice %190 {offsets = [0, 256], sizes = [8, 128], strides = [1, 1]} : vector<8x384xf32> to vector<8x128xf32>
    %211 = vector.extract_strided_slice %193 {offsets = [0, 256], sizes = [8, 128], strides = [1, 1]} : vector<8x384xf32> to vector<8x128xf32>
    %212 = arith.mulf %201, %211 : vector<8x128xf32>
    %213 = arith.addf %210, %212 : vector<8x128xf32>
    %214 = math.tanh %213 : vector<8x128xf32>
    %cst_38 = arith.constant 1.000000e+00 : f32
    %215 = vector.broadcast %cst_38 : f32 to vector<8x128xf32>
    %216 = arith.subf %215, %209 : vector<8x128xf32>
    %217 = arith.mulf %216, %214 : vector<8x128xf32>
    %218 = arith.mulf %209, %189 : vector<8x128xf32>
    %219 = arith.addf %217, %218 : vector<8x128xf32>
    %220 = vector.extract_strided_slice %23 {offsets = [5, 0, 0], sizes = [1, 8, 128], strides = [1, 1, 1]} : vector<8x8x128xi1> to vector<1x8x128xi1>
    %221 = vector.shape_cast %220 : vector<1x8x128xi1> to vector<8x128xi1>
    %222 = arith.select %221, %219, %189 : vector<8x128xi1>, vector<8x128xf32>
    %223 = vector.extract_strided_slice %14 {offsets = [48, 0], sizes = [8, 384], strides = [1, 1]} : vector<64x384xf32> to vector<8x384xf32>
    %224 = arith.truncf %222 : vector<8x128xf32> to vector<8x128xbf16>
    %cst_39 = arith.constant dense<0.000000e+00> : vector<8x384xf32>
    %225 = tpu.matmul %224, %15, %cst_39 {dimension_numbers = #tpu.dot_dimension_numbers<[1], [0], [0], [1], [0, 0, 1, 1], [], []>} : vector<8x128xbf16>, vector<128x384xbf16>, vector<8x384xf32> -> vector<8x384xf32>
    %226 = arith.addf %225, %18 : vector<8x384xf32>
    %227 = vector.extract_strided_slice %223 {offsets = [0, 0], sizes = [8, 128], strides = [1, 1]} : vector<8x384xf32> to vector<8x128xf32>
    %228 = vector.extract_strided_slice %226 {offsets = [0, 0], sizes = [8, 128], strides = [1, 1]} : vector<8x384xf32> to vector<8x128xf32>
    %229 = arith.addf %227, %228 : vector<8x128xf32>
    %230 = arith.negf %229 : vector<8x128xf32>
    %231 = math.exp %230 : vector<8x128xf32>
    %cst_40 = arith.constant 1.000000e+00 : f32
    %232 = vector.broadcast %cst_40 : f32 to vector<8x128xf32>
    %233 = arith.addf %232, %231 : vector<8x128xf32>
    %234 = arith.divf %232, %233 : vector<8x128xf32>
    %235 = vector.extract_strided_slice %223 {offsets = [0, 128], sizes = [8, 128], strides = [1, 1]} : vector<8x384xf32> to vector<8x128xf32>
    %236 = vector.extract_strided_slice %226 {offsets = [0, 128], sizes = [8, 128], strides = [1, 1]} : vector<8x384xf32> to vector<8x128xf32>
    %237 = arith.addf %235, %236 : vector<8x128xf32>
    %238 = arith.negf %237 : vector<8x128xf32>
    %239 = math.exp %238 : vector<8x128xf32>
    %cst_41 = arith.constant 1.000000e+00 : f32
    %240 = vector.broadcast %cst_41 : f32 to vector<8x128xf32>
    %241 = arith.addf %240, %239 : vector<8x128xf32>
    %242 = arith.divf %240, %241 : vector<8x128xf32>
    %243 = vector.extract_strided_slice %223 {offsets = [0, 256], sizes = [8, 128], strides = [1, 1]} : vector<8x384xf32> to vector<8x128xf32>
    %244 = vector.extract_strided_slice %226 {offsets = [0, 256], sizes = [8, 128], strides = [1, 1]} : vector<8x384xf32> to vector<8x128xf32>
    %245 = arith.mulf %234, %244 : vector<8x128xf32>
    %246 = arith.addf %243, %245 : vector<8x128xf32>
    %247 = math.tanh %246 : vector<8x128xf32>
    %cst_42 = arith.constant 1.000000e+00 : f32
    %248 = vector.broadcast %cst_42 : f32 to vector<8x128xf32>
    %249 = arith.subf %248, %242 : vector<8x128xf32>
    %250 = arith.mulf %249, %247 : vector<8x128xf32>
    %251 = arith.mulf %242, %222 : vector<8x128xf32>
    %252 = arith.addf %250, %251 : vector<8x128xf32>
    %253 = vector.extract_strided_slice %23 {offsets = [6, 0, 0], sizes = [1, 8, 128], strides = [1, 1, 1]} : vector<8x8x128xi1> to vector<1x8x128xi1>
    %254 = vector.shape_cast %253 : vector<1x8x128xi1> to vector<8x128xi1>
    %255 = arith.select %254, %252, %222 : vector<8x128xi1>, vector<8x128xf32>
    %256 = vector.extract_strided_slice %14 {offsets = [56, 0], sizes = [8, 384], strides = [1, 1]} : vector<64x384xf32> to vector<8x384xf32>
    %257 = arith.truncf %255 : vector<8x128xf32> to vector<8x128xbf16>
    %cst_43 = arith.constant dense<0.000000e+00> : vector<8x384xf32>
    %258 = tpu.matmul %257, %15, %cst_43 {dimension_numbers = #tpu.dot_dimension_numbers<[1], [0], [0], [1], [0, 0, 1, 1], [], []>} : vector<8x128xbf16>, vector<128x384xbf16>, vector<8x384xf32> -> vector<8x384xf32>
    %259 = arith.addf %258, %18 : vector<8x384xf32>
    %260 = vector.extract_strided_slice %256 {offsets = [0, 0], sizes = [8, 128], strides = [1, 1]} : vector<8x384xf32> to vector<8x128xf32>
    %261 = vector.extract_strided_slice %259 {offsets = [0, 0], sizes = [8, 128], strides = [1, 1]} : vector<8x384xf32> to vector<8x128xf32>
    %262 = arith.addf %260, %261 : vector<8x128xf32>
    %263 = arith.negf %262 : vector<8x128xf32>
    %264 = math.exp %263 : vector<8x128xf32>
    %cst_44 = arith.constant 1.000000e+00 : f32
    %265 = vector.broadcast %cst_44 : f32 to vector<8x128xf32>
    %266 = arith.addf %265, %264 : vector<8x128xf32>
    %267 = arith.divf %265, %266 : vector<8x128xf32>
    %268 = vector.extract_strided_slice %256 {offsets = [0, 128], sizes = [8, 128], strides = [1, 1]} : vector<8x384xf32> to vector<8x128xf32>
    %269 = vector.extract_strided_slice %259 {offsets = [0, 128], sizes = [8, 128], strides = [1, 1]} : vector<8x384xf32> to vector<8x128xf32>
    %270 = arith.addf %268, %269 : vector<8x128xf32>
    %271 = arith.negf %270 : vector<8x128xf32>
    %272 = math.exp %271 : vector<8x128xf32>
    %cst_45 = arith.constant 1.000000e+00 : f32
    %273 = vector.broadcast %cst_45 : f32 to vector<8x128xf32>
    %274 = arith.addf %273, %272 : vector<8x128xf32>
    %275 = arith.divf %273, %274 : vector<8x128xf32>
    %276 = vector.extract_strided_slice %256 {offsets = [0, 256], sizes = [8, 128], strides = [1, 1]} : vector<8x384xf32> to vector<8x128xf32>
    %277 = vector.extract_strided_slice %259 {offsets = [0, 256], sizes = [8, 128], strides = [1, 1]} : vector<8x384xf32> to vector<8x128xf32>
    %278 = arith.mulf %267, %277 : vector<8x128xf32>
    %279 = arith.addf %276, %278 : vector<8x128xf32>
    %280 = math.tanh %279 : vector<8x128xf32>
    %cst_46 = arith.constant 1.000000e+00 : f32
    %281 = vector.broadcast %cst_46 : f32 to vector<8x128xf32>
    %282 = arith.subf %281, %275 : vector<8x128xf32>
    %283 = arith.mulf %282, %280 : vector<8x128xf32>
    %284 = arith.mulf %275, %255 : vector<8x128xf32>
    %285 = arith.addf %283, %284 : vector<8x128xf32>
    %286 = vector.extract_strided_slice %23 {offsets = [7, 0, 0], sizes = [1, 8, 128], strides = [1, 1, 1]} : vector<8x8x128xi1> to vector<1x8x128xi1>
    %287 = vector.shape_cast %286 : vector<1x8x128xi1> to vector<8x128xi1>
    %288 = arith.select %287, %285, %255 : vector<8x128xi1>, vector<8x128xf32>
    %c0_i32_47 = arith.constant 0 : i32
    %289 = tpu.memref_slice %arg19[%c0_i32_47] : memref<4x!tpu.dma_semaphore, #tpu.memory_space<semaphore_mem>> -> memref<1x!tpu.dma_semaphore, #tpu.memory_space<semaphore_mem>>
    %290 = tpu.memref_squeeze %289 : memref<1x!tpu.dma_semaphore, #tpu.memory_space<semaphore_mem>> -> memref<!tpu.dma_semaphore, #tpu.memory_space<semaphore_mem>>
    tpu.wait_dma2 semaphore(%290 : memref<!tpu.dma_semaphore, #tpu.memory_space<semaphore_mem>>) src(%arg9 : memref<256x128xbf16, #tpu.memory_space<any>>) dst(%arg15 : memref<256x128xbf16, #tpu.memory_space<vmem>>)
    %c1_i32_48 = arith.constant 1 : i32
    %291 = tpu.memref_slice %arg19[%c1_i32_48] : memref<4x!tpu.dma_semaphore, #tpu.memory_space<semaphore_mem>> -> memref<1x!tpu.dma_semaphore, #tpu.memory_space<semaphore_mem>>
    %292 = tpu.memref_squeeze %291 : memref<1x!tpu.dma_semaphore, #tpu.memory_space<semaphore_mem>> -> memref<!tpu.dma_semaphore, #tpu.memory_space<semaphore_mem>>
    tpu.wait_dma2 semaphore(%292 : memref<!tpu.dma_semaphore, #tpu.memory_space<semaphore_mem>>) src(%arg10 : memref<5x128x128xbf16, #tpu.memory_space<any>>) dst(%arg16 : memref<5x128x128xbf16, #tpu.memory_space<vmem>>)
    %c2_i32_49 = arith.constant 2 : i32
    %293 = tpu.memref_slice %arg19[%c2_i32_49] : memref<4x!tpu.dma_semaphore, #tpu.memory_space<semaphore_mem>> -> memref<1x!tpu.dma_semaphore, #tpu.memory_space<semaphore_mem>>
    %294 = tpu.memref_squeeze %293 : memref<1x!tpu.dma_semaphore, #tpu.memory_space<semaphore_mem>> -> memref<!tpu.dma_semaphore, #tpu.memory_space<semaphore_mem>>
    tpu.wait_dma2 semaphore(%294 : memref<!tpu.dma_semaphore, #tpu.memory_space<semaphore_mem>>) src(%arg11 : memref<128x128xbf16, #tpu.memory_space<any>>) dst(%arg17 : memref<128x128xbf16, #tpu.memory_space<vmem>>)
    %c3_i32_50 = arith.constant 3 : i32
    %295 = tpu.memref_slice %arg19[%c3_i32_50] : memref<4x!tpu.dma_semaphore, #tpu.memory_space<semaphore_mem>> -> memref<1x!tpu.dma_semaphore, #tpu.memory_space<semaphore_mem>>
    %296 = tpu.memref_squeeze %295 : memref<1x!tpu.dma_semaphore, #tpu.memory_space<semaphore_mem>> -> memref<!tpu.dma_semaphore, #tpu.memory_space<semaphore_mem>>
    tpu.wait_dma2 semaphore(%296 : memref<!tpu.dma_semaphore, #tpu.memory_space<semaphore_mem>>) src(%arg12 : memref<128x16xbf16, #tpu.memory_space<any>>) dst(%arg18 : memref<128x16xbf16, #tpu.memory_space<vmem>>)
    %c0_51 = arith.constant 0 : index
    %c0_52 = arith.constant 0 : index
    %c0_53 = arith.constant 0 : index
    %297 = vector.load %arg16[%c0_51, %c0_52, %c0_53] : memref<5x128x128xbf16, #tpu.memory_space<vmem>>, vector<1x128x128xbf16>
    %298 = vector.shape_cast %297 : vector<1x128x128xbf16> to vector<128x128xbf16>
    %c1 = arith.constant 1 : index
    %c0_54 = arith.constant 0 : index
    %c0_55 = arith.constant 0 : index
    %299 = vector.load %arg16[%c1, %c0_54, %c0_55] : memref<5x128x128xbf16, #tpu.memory_space<vmem>>, vector<1x128x128xbf16>
    %300 = vector.shape_cast %299 : vector<1x128x128xbf16> to vector<128x128xbf16>
    %c2 = arith.constant 2 : index
    %c0_56 = arith.constant 0 : index
    %c0_57 = arith.constant 0 : index
    %301 = vector.load %arg16[%c2, %c0_56, %c0_57] : memref<5x128x128xbf16, #tpu.memory_space<vmem>>, vector<1x128x128xbf16>
    %302 = vector.shape_cast %301 : vector<1x128x128xbf16> to vector<128x128xbf16>
    %c3 = arith.constant 3 : index
    %c0_58 = arith.constant 0 : index
    %c0_59 = arith.constant 0 : index
    %303 = vector.load %arg16[%c3, %c0_58, %c0_59] : memref<5x128x128xbf16, #tpu.memory_space<vmem>>, vector<1x128x128xbf16>
    %304 = vector.shape_cast %303 : vector<1x128x128xbf16> to vector<128x128xbf16>
    %c4 = arith.constant 4 : index
    %c0_60 = arith.constant 0 : index
    %c0_61 = arith.constant 0 : index
    %305 = vector.load %arg16[%c4, %c0_60, %c0_61] : memref<5x128x128xbf16, #tpu.memory_space<vmem>>, vector<1x128x128xbf16>
    %306 = vector.shape_cast %305 : vector<1x128x128xbf16> to vector<128x128xbf16>
    %c0_62 = arith.constant 0 : index
    %c0_63 = arith.constant 0 : index
    %307 = vector.load %arg0[%c0_62, %c0_63] : memref<8x128xf32, #tpu.memory_space<vmem>>, vector<8x128xf32>
    %308 = tpu.concatenate %307, %288 in 1 : vector<8x128xf32>, vector<8x128xf32> -> vector<8x256xf32>
    %c0_64 = arith.constant 0 : index
    %c0_65 = arith.constant 0 : index
    %309 = vector.load %arg15[%c0_64, %c0_65] : memref<256x128xbf16, #tpu.memory_space<vmem>>, vector<256x128xbf16>
    %310 = arith.truncf %308 : vector<8x256xf32> to vector<8x256xbf16>
    %cst_66 = arith.constant dense<0.000000e+00> : vector<8x128xf32>
    %311 = tpu.matmul %310, %309, %cst_66 {dimension_numbers = #tpu.dot_dimension_numbers<[1], [0], [0], [1], [0, 0, 1, 1], [], []>} : vector<8x256xbf16>, vector<256x128xbf16>, vector<8x128xf32> -> vector<8x128xf32>
    %cst_67 = arith.constant 0.000000e+00 : f32
    %312 = vector.broadcast %cst_67 : f32 to vector<8x128xf32>
    %313 = arith.maximumf %311, %312 : vector<8x128xf32>
    %314 = arith.truncf %313 : vector<8x128xf32> to vector<8x128xbf16>
    %cst_68 = arith.constant dense<0.000000e+00> : vector<8x128xf32>
    %315 = tpu.matmul %314, %298, %cst_68 {dimension_numbers = #tpu.dot_dimension_numbers<[1], [0], [0], [1], [0, 0, 1, 1], [], []>} : vector<8x128xbf16>, vector<128x128xbf16>, vector<8x128xf32> -> vector<8x128xf32>
    %cst_69 = arith.constant 0.000000e+00 : f32
    %316 = vector.broadcast %cst_69 : f32 to vector<8x128xf32>
    %317 = arith.maximumf %315, %316 : vector<8x128xf32>
    %318 = arith.truncf %317 : vector<8x128xf32> to vector<8x128xbf16>
    %cst_70 = arith.constant dense<0.000000e+00> : vector<8x128xf32>
    %319 = tpu.matmul %318, %300, %cst_70 {dimension_numbers = #tpu.dot_dimension_numbers<[1], [0], [0], [1], [0, 0, 1, 1], [], []>} : vector<8x128xbf16>, vector<128x128xbf16>, vector<8x128xf32> -> vector<8x128xf32>
    %cst_71 = arith.constant 0.000000e+00 : f32
    %320 = vector.broadcast %cst_71 : f32 to vector<8x128xf32>
    %321 = arith.maximumf %319, %320 : vector<8x128xf32>
    %c0_72 = arith.constant 0 : index
    %c0_73 = arith.constant 0 : index
    %322 = vector.load %arg18[%c0_72, %c0_73] : memref<128x16xbf16, #tpu.memory_space<vmem>>, vector<128x16xbf16>
    %323 = arith.truncf %321 : vector<8x128xf32> to vector<8x128xbf16>
    %cst_74 = arith.constant dense<0.000000e+00> : vector<8x16xf32>
    %324 = tpu.matmul %323, %322, %cst_74 {dimension_numbers = #tpu.dot_dimension_numbers<[1], [0], [0], [1], [0, 0, 1, 1], [], []>} : vector<8x128xbf16>, vector<128x16xbf16>, vector<8x16xf32> -> vector<8x16xf32>
    %c0_75 = arith.constant 0 : index
    %c0_76 = arith.constant 0 : index
    %325 = vector.load %arg8[%c0_75, %c0_76] : memref<1x16xf32, #tpu.memory_space<vmem>>, vector<1x16xf32>
    %326 = vector.broadcast %325 : vector<1x16xf32> to vector<8x16xf32>
    %327 = arith.addf %324, %326 : vector<8x16xf32>
    %328 = vector.extract_strided_slice %327 {offsets = [0, 0], sizes = [8, 8], strides = [1, 1]} : vector<8x16xf32> to vector<8x8xf32>
    %329 = vector.extract_strided_slice %327 {offsets = [0, 8], sizes = [8, 8], strides = [1, 1]} : vector<8x16xf32> to vector<8x8xf32>
    %c0_77 = arith.constant 0 : index
    %c0_78 = arith.constant 0 : index
    %330 = vector.load %arg3[%c0_77, %c0_78] : memref<8x8xf32, #tpu.memory_space<vmem>>, vector<8x8xf32>
    %cst_79 = arith.constant 5.000000e-01 : f32
    %331 = vector.broadcast %cst_79 : f32 to vector<8x8xf32>
    %332 = arith.mulf %331, %329 : vector<8x8xf32>
    %333 = math.exp %332 : vector<8x8xf32>
    %334 = arith.mulf %330, %333 : vector<8x8xf32>
    %335 = arith.addf %334, %328 : vector<8x8xf32>
    %cst_80 = arith.constant 0.000000e+00 : f32
    %336 = vector.broadcast %cst_80 : f32 to vector<8x104xf32>
    %337 = tpu.concatenate %328, %329, %335, %336 in 1 : vector<8x8xf32>, vector<8x8xf32>, vector<8x8xf32>, vector<8x104xf32> -> vector<8x128xf32>
    %c0_81 = arith.constant 0 : index
    %c0_82 = arith.constant 0 : index
    %338 = vector.load %arg13[%c0_81, %c0_82] : memref<8x128xf32, #tpu.memory_space<vmem>>, vector<8x128xf32>
    tpu.vector_store %arg13[%c0_81, %c0_82], %337 {strides = array<i32>} : memref<8x128xf32, #tpu.memory_space<vmem>>, vector<8x128xf32>,
    %339 = arith.truncf %337 : vector<8x128xf32> to vector<8x128xbf16>
    %cst_83 = arith.constant dense<0.000000e+00> : vector<8x128xf32>
    %340 = tpu.matmul %339, %306, %cst_83 {dimension_numbers = #tpu.dot_dimension_numbers<[1], [0], [0], [1], [0, 0, 1, 1], [], []>} : vector<8x128xbf16>, vector<128x128xbf16>, vector<8x128xf32> -> vector<8x128xf32>
    %c0_84 = arith.constant 0 : index
    %c0_85 = arith.constant 0 : index
    %341 = vector.load %arg17[%c0_84, %c0_85] : memref<128x128xbf16, #tpu.memory_space<vmem>>, vector<128x128xbf16>
    %342 = arith.truncf %288 : vector<8x128xf32> to vector<8x128xbf16>
    %cst_86 = arith.constant dense<0.000000e+00> : vector<8x128xf32>
    %343 = tpu.matmul %342, %341, %cst_86 {dimension_numbers = #tpu.dot_dimension_numbers<[1], [0], [0], [1], [0, 0, 1, 1], [], []>} : vector<8x128xbf16>, vector<128x128xbf16>, vector<8x128xf32> -> vector<8x128xf32>
    %344 = arith.addf %340, %343 : vector<8x128xf32>
    %cst_87 = arith.constant 0.000000e+00 : f32
    %345 = vector.broadcast %cst_87 : f32 to vector<8x128xf32>
    %346 = arith.maximumf %344, %345 : vector<8x128xf32>
    %347 = arith.truncf %346 : vector<8x128xf32> to vector<8x128xbf16>
    %cst_88 = arith.constant dense<0.000000e+00> : vector<8x128xf32>
    %348 = tpu.matmul %347, %302, %cst_88 {dimension_numbers = #tpu.dot_dimension_numbers<[1], [0], [0], [1], [0, 0, 1, 1], [], []>} : vector<8x128xbf16>, vector<128x128xbf16>, vector<8x128xf32> -> vector<8x128xf32>
    %cst_89 = arith.constant 0.000000e+00 : f32
    %349 = vector.broadcast %cst_89 : f32 to vector<8x128xf32>
    %350 = arith.maximumf %348, %349 : vector<8x128xf32>
    %351 = arith.truncf %350 : vector<8x128xf32> to vector<8x128xbf16>
    %cst_90 = arith.constant dense<0.000000e+00> : vector<8x128xf32>
    %352 = tpu.matmul %351, %304, %cst_90 {dimension_numbers = #tpu.dot_dimension_numbers<[1], [0], [0], [1], [0, 0, 1, 1], [], []>} : vector<8x128xbf16>, vector<128x128xbf16>, vector<8x128xf32> -> vector<8x128xf32>
    %c0_91 = arith.constant 0 : index
    %c0_92 = arith.constant 0 : index
    %353 = vector.load %arg14[%c0_91, %c0_92] : memref<8x128xf32, #tpu.memory_space<vmem>>, vector<8x128xf32>
    tpu.vector_store %arg14[%c0_91, %c0_92], %352 {strides = array<i32>} : memref<8x128xf32, #tpu.memory_space<vmem>>, vector<8x128xf32>,
    return
  }
}

</mosaic_0001>

<llo_original>
// kernel: tpu_custom_call.1
$region0: #{tpu_custom_call.1}
  #allocation0 [shape = 'u32[]', space=smem, size = 0x4, offset = 0x4, fixed_abs, tag = 'smem constant byte address 0x4 - core index']
  #allocation1 [shape = 'u32[144,128]{1,0:T(1,128)}', space=vmem, size = 0x12000, scoped, tag = 'internal scratch']
  #allocation2 [shape = 'bf16[256,128]{1,0:T(8,128)(2,1)}', space=vmem, size = 0x10000, scoped, tag = 'scratch operand']
  #allocation3 [shape = 'bf16[5,128,128]{2,1,0:T(8,128)(2,1)}', space=vmem, size = 0x28000, scoped, tag = 'scratch operand']
  #allocation4 [shape = 'bf16[128,128]{1,0:T(8,128)(2,1)}', space=vmem, size = 0x8000, scoped, tag = 'scratch operand']
  #allocation5 [shape = 'bf16[128,16]{1,0:T(8,128)(2,1)}', space=vmem, size = 0x8000, scoped, tag = 'scratch operand']
  #allocation6 [shape = 's32[4]{0}', space=sflag, size = 0x10, scoped, tag = 'scratch operand']
  #allocation22 [shape = 's32[]', space=sflag, size = 0x4, offset = 0, fixed_abs, tag = 'sflag constant byte address 0x0 - dummy sync flag']
  #allocation23 [shape = 's32[]', space=sflag, size = 0x4, offset = 0, fixed_abs, tag = 'sflag constant byte address 0x0 - dummy sync flag']
  #allocation24 [shape = 's32[]', space=sflag, size = 0x4, offset = 0, fixed_abs, tag = 'sflag constant byte address 0x0 - dummy sync flag']
  #allocation25 [shape = 'u32[]', space=smem, size = 0x4, offset = 0x44, fixed_abs, tag = 'smem constant byte address 0x44 - assertion arg 0']
  #allocation26 [shape = 'u32[]', space=smem, size = 0x4, offset = 0x48, fixed_abs, tag = 'smem constant byte address 0x48 - assertion arg 1']
  #allocation27 [shape = 's32[]', space=sflag, size = 0x4, offset = 0, fixed_abs, tag = 'sflag constant byte address 0x0 - dummy sync flag']
  #allocation28 [shape = 's32[]', space=sflag, size = 0x4, offset = 0, fixed_abs, tag = 'sflag constant byte address 0x0 - dummy sync flag']
  #allocation29 [shape = 's32[]', space=sflag, size = 0x4, offset = 0, fixed_abs, tag = 'sflag constant byte address 0x0 - dummy sync flag']
  %s0 = inlined_call_operand.hbm [shape: f32[8,128], index: 0, kind: input, shape index: {}]
  %s1 = inlined_call_operand.vmem [shape: bf16[8,8,128], index: 1, kind: input, shape index: {}]
  %s2 = inlined_call_operand.vmem [shape: f32[8,8,1], index: 2, kind: input, shape index: {}]
  %s3 = inlined_call_operand.hbm [shape: f32[8,8], index: 3, kind: input, shape index: {}]
  %s4 = inlined_call_operand.hbm [shape: bf16[128,384], index: 4, kind: input, shape index: {}]
  %s5 = inlined_call_operand.hbm [shape: bf16[128,384], index: 5, kind: input, shape index: {}]
  %s6 = inlined_call_operand.hbm [shape: f32[1,384], index: 6, kind: input, shape index: {}]
  %s7 = inlined_call_operand.hbm [shape: f32[1,384], index: 7, kind: input, shape index: {}]
  %s8 = inlined_call_operand.hbm [shape: f32[1,16], index: 8, kind: input, shape index: {}]
  %s9 = inlined_call_operand.vmem [shape: bf16[256,128], index: 9, kind: input, shape index: {}]
  %s10 = inlined_call_operand.hbm [shape: bf16[5,128,128], index: 10, kind: input, shape index: {}]
  %s11 = inlined_call_operand.hbm [shape: bf16[128,128], index: 11, kind: input, shape index: {}]
  %s12 = inlined_call_operand.vmem [shape: bf16[128,16], index: 12, kind: input, shape index: {}]
  %s13 = inlined_call_operand.hbm [shape: f32[8,128], index: 13, kind: output, shape index: {0}]
  %s14 = inlined_call_operand.hbm [shape: f32[8,128], index: 14, kind: output, shape index: {1}]
  %15 = xla_tuple %s13, %s14
  %s16 = sld [smem:[#allocation0]]
  $region158: #{tpu_custom_call.1} parent=0
    _
  %s18 = ssub.s32 1, %s16
  %s19 = scalar_select 0, %s18, %s16
  $region1: #{tpu_custom_call.1} parent=0
    #allocation7 [shape = 'u8[4096]{0}', space=vmem, size = 0x1000, scoped, tag = 'input window, operand 0, single buffered']
    #allocation8 [shape = 's32[1]{0}', space=sflag, size = 0x4, scoped, tag = 'scoped memory for tpu_custom_call.1']
    #allocation9 [shape = 's32[1]{0}', space=sflag, size = 0x4, scoped, tag = 'scoped memory for tpu_custom_call.1']
    #allocation10 [shape = 'u8[4096]{0}', space=vmem, size = 0x1000, scoped, tag = 'input window, operand 3, single buffered']
    #allocation11 [shape = 's32[1]{0}', space=sflag, size = 0x4, scoped, tag = 'scoped memory for tpu_custom_call.1']
    #allocation12 [shape = 'u8[98304]{0}', space=vmem, size = 0x18000, scoped, tag = 'input window, operand 4, single buffered']
    #allocation13 [shape = 'u8[98304]{0}', space=vmem, size = 0x18000, scoped, tag = 'input window, operand 5, single buffered']
    #allocation14 [shape = 's32[1]{0}', space=sflag, size = 0x4, scoped, tag = 'scoped memory for tpu_custom_call.1']
    #allocation15 [shape = 'u8[1536]{0}', space=vmem, size = 0x800, scoped, tag = 'input window, operand 6, single buffered']
    #allocation16 [shape = 'u8[1536]{0}', space=vmem, size = 0x800, scoped, tag = 'input window, operand 7, single buffered']
    #allocation17 [shape = 's32[1]{0}', space=sflag, size = 0x4, scoped, tag = 'scoped memory for tpu_custom_call.1']
    #allocation18 [shape = 'u8[512]{0}', space=vmem, size = 0x400, scoped, tag = 'input window, operand 8, single buffered']
    #allocation19 [shape = 'u8[4096]{0}', space=vmem, size = 0x1000, scoped, tag = 'output window, operand 0, single buffered']
    #allocation20 [shape = 'u8[4096]{0}', space=vmem, size = 0x1000, scoped, tag = 'output window, operand 1, single buffered']
    #allocation21 [shape = 's32[1]{0}', space=sflag, size = 0x4, scoped, tag = 'scoped memory for tpu_custom_call.1']
    %20 = vsyncpa [#allocation8], 0
    %21 = vsyncpa [#allocation11], 0
    %22 = vsyncpa [#allocation14], 0
    %23 = vsyncpa [#allocation17], 0
    %24 = vsyncpa [#allocation9], 0
    %25 = vsyncpa [#allocation21], 0
    // Predicated region
    $region2: #{tpu_custom_call.1} parent=1 // pred_check
      _
    $region3: #{tpu_custom_call.1} parent=1 // pred_check_branch
      %27 = sbr.rel (0) target = $region5
    $region4: #{tpu_custom_call.1} parent=1 // pred_region
      %s29 = ssub.s32 128, 128
      %30 = vsyncadd [#allocation8], %s29
      %s32 = sshll.u32 [#allocation7], 4
      %s33 = int_to_ptr.vmem [resolvable:$true] %s32
      %35 = dma.hbm_to_vmem [thread:$0]  %s0, 128, %s33, [#allocation8]
    $region5: #{tpu_custom_call.1} parent=1 // pred_fallthru
      _
    // Predicated region
    $region6: #{tpu_custom_call.1} parent=1 // pred_check
      _
    $region7: #{tpu_custom_call.1} parent=1 // pred_check_branch
      %37 = sbr.rel (0) target = $region9
    $region8: #{tpu_custom_call.1} parent=1 // pred_region
      _
    $region9: #{tpu_custom_call.1} parent=1 // pred_fallthru
      _
    // Predicated region
    $region10: #{tpu_custom_call.1} parent=1 // pred_check
      _
    $region11: #{tpu_custom_call.1} parent=1 // pred_check_branch
      %39 = sbr.rel (0) target = $region13
    $region12: #{tpu_custom_call.1} parent=1 // pred_region
      _
    $region13: #{tpu_custom_call.1} parent=1 // pred_fallthru
      _
    // Predicated region
    $region14: #{tpu_custom_call.1} parent=1 // pred_check
      _
    $region15: #{tpu_custom_call.1} parent=1 // pred_check_branch
      %41 = sbr.rel (0) target = $region17
    $region16: #{tpu_custom_call.1} parent=1 // pred_region
      %s43 = ssub.s32 128, 128
      %44 = vsyncadd [#allocation11], %s43
      %s46 = sshll.u32 [#allocation10], 4
      %s47 = int_to_ptr.vmem [resolvable:$true] %s46
      %49 = dma.hbm_to_vmem [thread:$0]  %s3, 128, %s47, [#allocation11]
    $region17: #{tpu_custom_call.1} parent=1 // pred_fallthru
      _
    // Predicated region
    $region18: #{tpu_custom_call.1} parent=1 // pred_check
      _
    $region19: #{tpu_custom_call.1} parent=1 // pred_check_branch
      %51 = sbr.rel (0) target = $region21
    $region20: #{tpu_custom_call.1} parent=1 // pred_region
      %s53 = ssub.s32 3072, 3072
      %54 = vsyncadd [#allocation11], %s53
      %s55 = sshll.u32 [#allocation12], 4
      %s56 = int_to_ptr.vmem [resolvable:$true] %s55
      %61 = dma.hbm_to_vmem [thread:$0]  %s4, 3072, %s56, [#allocation11], 192, 192, 12
    $region21: #{tpu_custom_call.1} parent=1 // pred_fallthru
      _
    // Predicated region
    $region22: #{tpu_custom_call.1} parent=1 // pred_check
      _
    $region23: #{tpu_custom_call.1} parent=1 // pred_check_branch
      %63 = sbr.rel (0) target = $region25
    $region24: #{tpu_custom_call.1} parent=1 // pred_region
      %s65 = ssub.s32 3072, 3072
      %66 = vsyncadd [#allocation14], %s65
      %s67 = sshll.u32 [#allocation13], 4
      %s68 = int_to_ptr.vmem [resolvable:$true] %s67
      %73 = dma.hbm_to_vmem [thread:$0]  %s5, 3072, %s68, [#allocation14], 192, 192, 12
    $region25: #{tpu_custom_call.1} parent=1 // pred_fallthru
      _
    // Predicated region
    $region26: #{tpu_custom_call.1} parent=1 // pred_check
      _
    $region27: #{tpu_custom_call.1} parent=1 // pred_check_branch
      %75 = sbr.rel (0) target = $region29
    $region28: #{tpu_custom_call.1} parent=1 // pred_region
      %s77 = ssub.s32 48, 48
      %78 = vsyncadd [#allocation14], %s77
      %s80 = sshll.u32 [#allocation15], 4
      %s81 = int_to_ptr.vmem [resolvable:$true] %s80
      %83 = dma.hbm_to_vmem [thread:$0]  %s6, 48, %s81, [#allocation14]
    $region29: #{tpu_custom_call.1} parent=1 // pred_fallthru
      _
    // Predicated region
    $region30: #{tpu_custom_call.1} parent=1 // pred_check
      _
    $region31: #{tpu_custom_call.1} parent=1 // pred_check_branch
      %85 = sbr.rel (0) target = $region33
    $region32: #{tpu_custom_call.1} parent=1 // pred_region
      %s87 = ssub.s32 48, 48
      %88 = vsyncadd [#allocation17], %s87
      %s90 = sshll.u32 [#allocation16], 4
      %s91 = int_to_ptr.vmem [resolvable:$true] %s90
      %93 = dma.hbm_to_vmem [thread:$0]  %s7, 48, %s91, [#allocation17]
    $region33: #{tpu_custom_call.1} parent=1 // pred_fallthru
      _
    // Predicated region
    $region34: #{tpu_custom_call.1} parent=1 // pred_check
      _
    $region35: #{tpu_custom_call.1} parent=1 // pred_check_branch
      %95 = sbr.rel (0) target = $region37
    $region36: #{tpu_custom_call.1} parent=1 // pred_region
      %s97 = ssub.s32 16, 16
      %98 = vsyncadd [#allocation17], %s97
      %s100 = sshll.u32 [#allocation18], 4
      %s101 = int_to_ptr.vmem [resolvable:$true] %s100
      %103 = dma.hbm_to_vmem [thread:$0]  %s8, 16, %s101, [#allocation17]
    $region37: #{tpu_custom_call.1} parent=1 // pred_fallthru
      _
    // Predicated region
    $region38: #{tpu_custom_call.1} parent=1 // pred_check
      _
    $region39: #{tpu_custom_call.1} parent=1 // pred_check_branch
      %105 = sbr.rel (0) target = $region41
    $region40: #{tpu_custom_call.1} parent=1 // pred_region
      %106 = dma.done [#allocation8], 128
    $region41: #{tpu_custom_call.1} parent=1 // pred_fallthru
      _
    // Predicated region
    $region42: #{tpu_custom_call.1} parent=1 // pred_check
      _
    $region43: #{tpu_custom_call.1} parent=1 // pred_check_branch
      %108 = sbr.rel (0) target = $region45
    $region44: #{tpu_custom_call.1} parent=1 // pred_region
      %109 = dma.done [#allocation11], 128
    $region45: #{tpu_custom_call.1} parent=1 // pred_fallthru
      _
    // Predicated region
    $region46: #{tpu_custom_call.1} parent=1 // pred_check
      _
    $region47: #{tpu_custom_call.1} parent=1 // pred_check_branch
      %111 = sbr.rel (0) target = $region49
    $region48: #{tpu_custom_call.1} parent=1 // pred_region
      %112 = dma.done [#allocation11], 3072
    $region49: #{tpu_custom_call.1} parent=1 // pred_fallthru
      _
    // Predicated region
    $region50: #{tpu_custom_call.1} parent=1 // pred_check
      _
    $region51: #{tpu_custom_call.1} parent=1 // pred_check_branch
      %114 = sbr.rel (0) target = $region53
    $region52: #{tpu_custom_call.1} parent=1 // pred_region
      %115 = dma.done [#allocation14], 3072
    $region53: #{tpu_custom_call.1} parent=1 // pred_fallthru
      _
    // Predicated region
    $region54: #{tpu_custom_call.1} parent=1 // pred_check
      _
    $region55: #{tpu_custom_call.1} parent=1 // pred_check_branch
      %117 = sbr.rel (0) target = $region57
    $region56: #{tpu_custom_call.1} parent=1 // pred_region
      %118 = dma.done [#allocation14], 48
    $region57: #{tpu_custom_call.1} parent=1 // pred_fallthru
      _
    // Predicated region
    $region58: #{tpu_custom_call.1} parent=1 // pred_check
      _
    $region59: #{tpu_custom_call.1} parent=1 // pred_check_branch
      %120 = sbr.rel (0) target = $region61
    $region60: #{tpu_custom_call.1} parent=1 // pred_region
      %121 = dma.done [#allocation17], 48
    $region61: #{tpu_custom_call.1} parent=1 // pred_fallthru
      _
    // Predicated region
    $region62: #{tpu_custom_call.1} parent=1 // pred_check
      _
    $region63: #{tpu_custom_call.1} parent=1 // pred_check_branch
      %123 = sbr.rel (0) target = $region65
    $region64: #{tpu_custom_call.1} parent=1 // pred_region
      %124 = dma.done [#allocation17], 16
    $region65: #{tpu_custom_call.1} parent=1 // pred_fallthru
      _
    %p127 = scmp.lt.u32.totalorder 128, 8
    %p128 = pneg %p127
    // Predicated region
    $region66: #{tpu_custom_call.1} parent=1 // pred_check
      _
    $region67: #{tpu_custom_call.1} parent=1 // pred_check_branch
      %130 = sbr.rel (%p127) target = $region69
    $region68: #{tpu_custom_call.1} parent=1 // pred_region
      %s146 = sand.u32 128, 7
      %p147 = scmp.eq.s32.totalorder %s146, 0
      // Predicated region
      $region81: #{tpu_custom_call.1} parent=68 // pred_check
        %p148 = pneg %p147
      $region82: #{tpu_custom_call.1} parent=68 // pred_check_branch
        %150 = sbr.rel (%p148) target = $region84
      $region83: #{tpu_custom_call.1} parent=68 // pred_region
        loop: start=0, step=1, limit=1
        $region85: #{tpu_custom_call.1} parent=83 // loop_pre_header
          _
        $region86: #{tpu_custom_call.1} parent=83 // loop_header
          %s152 = sphi 0, %s156
          %p153 = scmp.ge.s32.totalorder %s152, 1
          %s157 = sphi %s9, %s9
          %s158 = sphi [#allocation2], [#allocation2]
        $region87: #{tpu_custom_call.1} parent=83 // loop_header_branch
          %155 = sbr.rel (%p153) target = $region91
        $region88: #{tpu_custom_call.1} parent=83 // loop_body
          %v159 = vld [vmem:[%s157] sm:$0xff]
          %160 = vst [vmem:[%s158] sm:$0xff] %v159
          %v161 = vld [vmem:[%s157 + $0x8] sm:$0xff]
          %162 = vst [vmem:[%s158 + $0x8] sm:$0xff] %v161
          %v163 = vld [vmem:[%s157 + $0x10] sm:$0xff]
          %164 = vst [vmem:[%s158 + $0x10] sm:$0xff] %v163
          %v165 = vld [vmem:[%s157 + $0x18] sm:$0xff]
          %166 = vst [vmem:[%s158 + $0x18] sm:$0xff] %v165
          %v167 = vld [vmem:[%s157 + $0x20] sm:$0xff]
          %168 = vst [vmem:[%s158 + $0x20] sm:$0xff] %v167
          %v169 = vld [vmem:[%s157 + $0x28] sm:$0xff]
          %170 = vst [vmem:[%s158 + $0x28] sm:$0xff] %v169
          %v171 = vld [vmem:[%s157 + $0x30] sm:$0xff]
          %172 = vst [vmem:[%s158 + $0x30] sm:$0xff] %v171
          %v173 = vld [vmem:[%s157 + $0x38] sm:$0xff]
          %174 = vst [vmem:[%s158 + $0x38] sm:$0xff] %v173
          %v175 = vld [vmem:[%s157 + $0x40] sm:$0xff]
          %176 = vst [vmem:[%s158 + $0x40] sm:$0xff] %v175
          %v177 = vld [vmem:[%s157 + $0x48] sm:$0xff]
          %178 = vst [vmem:[%s158 + $0x48] sm:$0xff] %v177
          %v179 = vld [vmem:[%s157 + $0x50] sm:$0xff]
          %180 = vst [vmem:[%s158 + $0x50] sm:$0xff] %v179
          %v181 = vld [vmem:[%s157 + $0x58] sm:$0xff]
          %182 = vst [vmem:[%s158 + $0x58] sm:$0xff] %v181
          %v183 = vld [vmem:[%s157 + $0x60] sm:$0xff]
          %184 = vst [vmem:[%s158 + $0x60] sm:$0xff] %v183
          %v185 = vld [vmem:[%s157 + $0x68] sm:$0xff]
          %186 = vst [vmem:[%s158 + $0x68] sm:$0xff] %v185
          %v187 = vld [vmem:[%s157 + $0x70] sm:$0xff]
          %188 = vst [vmem:[%s158 + $0x70] sm:$0xff] %v187
          %v189 = vld [vmem:[%s157 + $0x78] sm:$0xff]
          %190 = vst [vmem:[%s158 + $0x78] sm:$0xff] %v189
        $region89: #{tpu_custom_call.1} parent=83 // loop_footer
          %s156 = sadd.s32 1, %s152
        $region90: #{tpu_custom_call.1} parent=83 // loop_footer_branch
          %151 = sbr.rel target = $region86
        $region91: #{tpu_custom_call.1} parent=83 // loop_exit
          _
      $region84: #{tpu_custom_call.1} parent=68 // pred_fallthru
        _
      %p191 = pneg %p147
      // Predicated region
      $region92: #{tpu_custom_call.1} parent=68 // pred_check
        _
      $region93: #{tpu_custom_call.1} parent=68 // pred_check_branch
        %193 = sbr.rel (%p147) target = $region95
      $region94: #{tpu_custom_call.1} parent=68 // pred_region
        %s194 = sand.u32 128, 7
      $region95: #{tpu_custom_call.1} parent=68 // pred_fallthru
        _
    $region69: #{tpu_custom_call.1} parent=1 // pred_fallthru
      _
    // Predicated region
    $region70: #{tpu_custom_call.1} parent=1 // pred_check
      %p131 = pneg %p127
    $region71: #{tpu_custom_call.1} parent=1 // pred_check_branch
      %133 = sbr.rel (%p131) target = $region73
    $region72: #{tpu_custom_call.1} parent=1 // pred_region
      %s134 = sshll.u32 1, 128
      %s135 = ssub.s32 %s134, 1
      loop: start=0, step=1, limit=1
      $region74: #{tpu_custom_call.1} parent=72 // loop_pre_header
        _
      $region75: #{tpu_custom_call.1} parent=72 // loop_header
        %s137 = sphi 0, %s141
        %p138 = scmp.ge.s32.totalorder %s137, 1
        %s142 = sphi %s9, %s9
        %s143 = sphi [#allocation2], [#allocation2]
      $region76: #{tpu_custom_call.1} parent=72 // loop_header_branch
        %140 = sbr.rel (%p138) target = $region80
      $region77: #{tpu_custom_call.1} parent=72 // loop_body
        %v144 = vld [vmem:[%s142] sm:%s135]
        %145 = vst [vmem:[%s143] sm:%s135] %v144
      $region78: #{tpu_custom_call.1} parent=72 // loop_footer
        %s141 = sadd.s32 1, %s137
      $region79: #{tpu_custom_call.1} parent=72 // loop_footer_branch
        %136 = sbr.rel target = $region75
      $region80: #{tpu_custom_call.1} parent=72 // loop_exit
        _
    $region73: #{tpu_custom_call.1} parent=1 // pred_fallthru
      _
    // Predicated region
    $region96: #{tpu_custom_call.1} parent=1 // pred_check
      _
    $region97: #{tpu_custom_call.1} parent=1 // pred_check_branch
      %197 = sbr.rel (0) target = $region99
    $region98: #{tpu_custom_call.1} parent=1 // pred_region
      %198 = vsyncadd [#allocation6], 2048
    $region99: #{tpu_custom_call.1} parent=1 // pred_fallthru
      _
    %s199 = scalar_lea.sflag [#allocation6], 1
    // Predicated region
    $region100: #{tpu_custom_call.1} parent=1 // pred_check
      _
    $region101: #{tpu_custom_call.1} parent=1 // pred_check_branch
      %201 = sbr.rel target = $region103
    $region102: #{tpu_custom_call.1} parent=1 // pred_region
      %202 = sst [smem:[#allocation25]] [#allocation24]
      %203 = sst [smem:[#allocation26]] [#allocation23]
    $region103: #{tpu_custom_call.1} parent=1 // pred_fallthru
      _
    %205 = shalt.err (0)
    %s207 = sshll.u32 [#allocation3], 4
    %s208 = int_to_ptr.vmem [resolvable:$true] %s207
    %210 = dma.hbm_to_vmem [thread:$0]  %s10, 5120, %s208, %s199
    %s211 = scalar_lea.sflag [#allocation6], 2
    // Predicated region
    $region104: #{tpu_custom_call.1} parent=1 // pred_check
      _
    $region105: #{tpu_custom_call.1} parent=1 // pred_check_branch
      %213 = sbr.rel target = $region107
    $region106: #{tpu_custom_call.1} parent=1 // pred_region
      %214 = sst [smem:[#allocation25]] [#allocation28]
      %215 = sst [smem:[#allocation26]] [#allocation27]
    $region107: #{tpu_custom_call.1} parent=1 // pred_fallthru
      _
    %217 = shalt.err (0)
    %s219 = sshll.u32 [#allocation4], 4
    %s220 = int_to_ptr.vmem [resolvable:$true] %s219
    %222 = dma.hbm_to_vmem [thread:$0]  %s11, 1024, %s220, %s211
    %s223 = scalar_lea.sflag [#allocation6], 3
    %p225 = scmp.lt.u32.totalorder 64, 8
    %p226 = pneg %p225
    // Predicated region
    $region108: #{tpu_custom_call.1} parent=1 // pred_check
      _
    $region109: #{tpu_custom_call.1} parent=1 // pred_check_branch
      %228 = sbr.rel (%p225) target = $region111
    $region110: #{tpu_custom_call.1} parent=1 // pred_region
      %s244 = sand.u32 64, 7
      %p245 = scmp.eq.s32.totalorder %s244, 0
      // Predicated region
      $region123: #{tpu_custom_call.1} parent=110 // pred_check
        %p246 = pneg %p245
      $region124: #{tpu_custom_call.1} parent=110 // pred_check_branch
        %248 = sbr.rel (%p246) target = $region126
      $region125: #{tpu_custom_call.1} parent=110 // pred_region
        loop: start=0, step=1, limit=1
        $region127: #{tpu_custom_call.1} parent=125 // loop_pre_header
          _
        $region128: #{tpu_custom_call.1} parent=125 // loop_header
          %s250 = sphi 0, %s254
          %p251 = scmp.ge.s32.totalorder %s250, 1
          %s255 = sphi %s12, %s12
          %s256 = sphi [#allocation5], [#allocation5]
        $region129: #{tpu_custom_call.1} parent=125 // loop_header_branch
          %253 = sbr.rel (%p251) target = $region133
        $region130: #{tpu_custom_call.1} parent=125 // loop_body
          %v257 = vld [vmem:[%s255] sm:$0xff]
          %258 = vst [vmem:[%s256] sm:$0xff] %v257
          %v259 = vld [vmem:[%s255 + $0x8] sm:$0xff]
          %260 = vst [vmem:[%s256 + $0x8] sm:$0xff] %v259
          %v261 = vld [vmem:[%s255 + $0x10] sm:$0xff]
          %262 = vst [vmem:[%s256 + $0x10] sm:$0xff] %v261
          %v263 = vld [vmem:[%s255 + $0x18] sm:$0xff]
          %264 = vst [vmem:[%s256 + $0x18] sm:$0xff] %v263
          %v265 = vld [vmem:[%s255 + $0x20] sm:$0xff]
          %266 = vst [vmem:[%s256 + $0x20] sm:$0xff] %v265
          %v267 = vld [vmem:[%s255 + $0x28] sm:$0xff]
          %268 = vst [vmem:[%s256 + $0x28] sm:$0xff] %v267
          %v269 = vld [vmem:[%s255 + $0x30] sm:$0xff]
          %270 = vst [vmem:[%s256 + $0x30] sm:$0xff] %v269
          %v271 = vld [vmem:[%s255 + $0x38] sm:$0xff]
          %272 = vst [vmem:[%s256 + $0x38] sm:$0xff] %v271
        $region131: #{tpu_custom_call.1} parent=125 // loop_footer
          %s254 = sadd.s32 1, %s250
        $region132: #{tpu_custom_call.1} parent=125 // loop_footer_branch
          %249 = sbr.rel target = $region128
        $region133: #{tpu_custom_call.1} parent=125 // loop_exit
          _
      $region126: #{tpu_custom_call.1} parent=110 // pred_fallthru
        _
      %p273 = pneg %p245
      // Predicated region
      $region134: #{tpu_custom_call.1} parent=110 // pred_check
        _
      $region135: #{tpu_custom_call.1} parent=110 // pred_check_branch
        %275 = sbr.rel (%p245) target = $region137
      $region136: #{tpu_custom_call.1} parent=110 // pred_region
        %s276 = sand.u32 64, 7
      $region137: #{tpu_custom_call.1} parent=110 // pred_fallthru
        _
    $region111: #{tpu_custom_call.1} parent=1 // pred_fallthru
      _
    // Predicated region
    $region112: #{tpu_custom_call.1} parent=1 // pred_check
      %p229 = pneg %p225
    $region113: #{tpu_custom_call.1} parent=1 // pred_check_branch
      %231 = sbr.rel (%p229) target = $region115
    $region114: #{tpu_custom_call.1} parent=1 // pred_region
      %s232 = sshll.u32 1, 64
      %s233 = ssub.s32 %s232, 1
      loop: start=0, step=1, limit=1
      $region116: #{tpu_custom_call.1} parent=114 // loop_pre_header
        _
      $region117: #{tpu_custom_call.1} parent=114 // loop_header
        %s235 = sphi 0, %s239
        %p236 = scmp.ge.s32.totalorder %s235, 1
        %s240 = sphi %s12, %s12
        %s241 = sphi [#allocation5], [#allocation5]
      $region118: #{tpu_custom_call.1} parent=114 // loop_header_branch
        %238 = sbr.rel (%p236) target = $region122
      $region119: #{tpu_custom_call.1} parent=114 // loop_body
        %v242 = vld [vmem:[%s240] sm:%s233]
        %243 = vst [vmem:[%s241] sm:%s233] %v242
      $region120: #{tpu_custom_call.1} parent=114 // loop_footer
        %s239 = sadd.s32 1, %s235
      $region121: #{tpu_custom_call.1} parent=114 // loop_footer_branch
        %234 = sbr.rel target = $region117
      $region122: #{tpu_custom_call.1} parent=114 // loop_exit
        _
    $region115: #{tpu_custom_call.1} parent=1 // pred_fallthru
      _
    // Predicated region
    $region138: #{tpu_custom_call.1} parent=1 // pred_check
      _
    $region139: #{tpu_custom_call.1} parent=1 // pred_check_branch
      %279 = sbr.rel (0) target = $region141
    $region140: #{tpu_custom_call.1} parent=1 // pred_region
      %280 = vsyncadd %s223, 1024
    $region141: #{tpu_custom_call.1} parent=1 // pred_fallthru
      _
    %v281 = vld [vmem:[%s1] sm:$0xf]
    %v282 = vld [vmem:[%s1 + $0x4] sm:$0xf]
    %v283 = vld [vmem:[%s1 + $0x8] sm:$0xf]
    %v284 = vld [vmem:[%s1 + $0xc] sm:$0xf]
    %v285 = vld [vmem:[%s1 + $0x10] sm:$0xf]
    %v286 = vld [vmem:[%s1 + $0x14] sm:$0xf]
    %v287 = vld [vmem:[%s1 + $0x18] sm:$0xf]
    %v288 = vld [vmem:[%s1 + $0x1c] sm:$0xf]
    %v289 = vld [vmem:[#allocation12] sm:$0xff]
    %v290 = vld [vmem:[#allocation12 + $0x8] sm:$0xf]
    %v291 = vld [vmem:[#allocation12 + $0xc] sm:$0xff]
    %v292 = vld [vmem:[#allocation12 + $0x14] sm:$0xf]
    %v293 = vld [vmem:[#allocation12 + $0x18] sm:$0xff]
    %v294 = vld [vmem:[#allocation12 + $0x20] sm:$0xf]
    %v295 = vld [vmem:[#allocation12 + $0x24] sm:$0xff]
    %v296 = vld [vmem:[#allocation12 + $0x2c] sm:$0xf]
    %v297 = vld [vmem:[#allocation12 + $0x30] sm:$0xff]
    %v298 = vld [vmem:[#allocation12 + $0x38] sm:$0xf]
    %v299 = vld [vmem:[#allocation12 + $0x3c] sm:$0xff]
    %v300 = vld [vmem:[#allocation12 + $0x44] sm:$0xf]
    %v301 = vld [vmem:[#allocation12 + $0x48] sm:$0xff]
    %v302 = vld [vmem:[#allocation12 + $0x50] sm:$0xf]
    %v303 = vld [vmem:[#allocation12 + $0x54] sm:$0xff]
    %v304 = vld [vmem:[#allocation12 + $0x5c] sm:$0xf]
    %v305 = vld [vmem:[#allocation12 + $0x60] sm:$0xff]
    %v306 = vld [vmem:[#allocation12 + $0x68] sm:$0xf]
    %v307 = vld [vmem:[#allocation12 + $0x6c] sm:$0xff]
    %v308 = vld [vmem:[#allocation12 + $0x74] sm:$0xf]
    %v309 = vld [vmem:[#allocation12 + $0x78] sm:$0xff]
    %v310 = vld [vmem:[#allocation12 + $0x80] sm:$0xf]
    %v311 = vld [vmem:[#allocation12 + $0x84] sm:$0xff]
    %v312 = vld [vmem:[#allocation12 + $0x8c] sm:$0xf]
    %v313 = vld [vmem:[#allocation12 + $0x90] sm:$0xff]
    %v314 = vld [vmem:[#allocation12 + $0x98] sm:$0xf]
    %v315 = vld [vmem:[#allocation12 + $0x9c] sm:$0xff]
    %v316 = vld [vmem:[#allocation12 + $0xa4] sm:$0xf]
    %v317 = vld [vmem:[#allocation12 + $0xa8] sm:$0xff]
    %v318 = vld [vmem:[#allocation12 + $0xb0] sm:$0xf]
    %v319 = vld [vmem:[#allocation12 + $0xb4] sm:$0xff]
    %v320 = vld [vmem:[#allocation12 + $0xbc] sm:$0xf]
    %v321 = vld [vmem:[#allocation15] sm:$0x7]
    %v323 = vlaneseq
    %v324 = vshrl.u32 %v323, 7
    %v325 = vsub.s32 0, %v324
    %v326 = vrot.slane %v321, %v325
    %v327 = vlaneseq
    %v328 = vshrl.u32 %v327, 7
    %v329 = vsub.s32 1, %v328
    %v330 = vrot.slane %v321, %v329
    %v331 = vlaneseq
    %v332 = vshrl.u32 %v331, 7
    %v333 = vsub.s32 2, %v332
    %v334 = vrot.slane %v321, %v333
    %v346 = vunpack.c.l.b16 %v281
    %v347 = vunpack.c.l.b16 %v282
    %v348 = vunpack.c.l.b16 %v283
    %v349 = vunpack.c.l.b16 %v284
    %v350 = vunpack.c.l.b16 %v285
    %v351 = vunpack.c.l.b16 %v286
    %v352 = vunpack.c.l.b16 %v287
    %v353 = vunpack.c.l.b16 %v288
    %v354 = vpack.c.b16 %v347, %v346
    %v355 = vpack.c.b16 %v349, %v348
    %v356 = vpack.c.b16 %v351, %v350
    %v357 = vpack.c.b16 %v353, %v352
    %v394 = vunpack.c.l.b16 %v289
    %v395 = vunpack.c.h.b16 %v289
    %v396 = vunpack.c.l.b16 %v290
    %v397 = vunpack.c.l.b16 %v291
    %v398 = vunpack.c.h.b16 %v291
    %v399 = vunpack.c.l.b16 %v292
    %v400 = vunpack.c.l.b16 %v293
    %v401 = vunpack.c.h.b16 %v293
    %v402 = vunpack.c.l.b16 %v294
    %v403 = vunpack.c.l.b16 %v295
    %v404 = vunpack.c.h.b16 %v295
    %v405 = vunpack.c.l.b16 %v296
    %v406 = vunpack.c.l.b16 %v297
    %v407 = vunpack.c.h.b16 %v297
    %v408 = vunpack.c.l.b16 %v298
    %v409 = vunpack.c.l.b16 %v299
    %v410 = vunpack.c.h.b16 %v299
    %v411 = vunpack.c.l.b16 %v300
    %v412 = vunpack.c.l.b16 %v301
    %v413 = vunpack.c.h.b16 %v301
    %v414 = vunpack.c.l.b16 %v302
    %v415 = vunpack.c.l.b16 %v303
    %v416 = vunpack.c.h.b16 %v303
    %v417 = vunpack.c.l.b16 %v304
    %v418 = vunpack.c.l.b16 %v305
    %v419 = vunpack.c.h.b16 %v305
    %v420 = vunpack.c.l.b16 %v306
    %v421 = vunpack.c.l.b16 %v307
    %v422 = vunpack.c.h.b16 %v307
    %v423 = vunpack.c.l.b16 %v308
    %v424 = vunpack.c.l.b16 %v309
    %v425 = vunpack.c.h.b16 %v309
    %v426 = vunpack.c.l.b16 %v310
    %v427 = vunpack.c.l.b16 %v311
    %v428 = vunpack.c.h.b16 %v311
    %v429 = vunpack.c.l.b16 %v312
    %v430 = vunpack.c.l.b16 %v313
    %v431 = vunpack.c.h.b16 %v313
    %v432 = vunpack.c.l.b16 %v314
    %v433 = vunpack.c.l.b16 %v315
    %v434 = vunpack.c.h.b16 %v315
    %v435 = vunpack.c.l.b16 %v316
    %v436 = vunpack.c.l.b16 %v317
    %v437 = vunpack.c.h.b16 %v317
    %v438 = vunpack.c.l.b16 %v318
    %v439 = vunpack.c.l.b16 %v319
    %v440 = vunpack.c.h.b16 %v319
    %v441 = vunpack.c.l.b16 %v320
    %v442 = vpack.c.b16 %v397, %v394
    %v443 = vpack.c.b16 %v398, %v395
    %v444 = vpack.c.b16 %v399, %v396
    %v445 = vpack.c.b16 %v403, %v400
    %v446 = vpack.c.b16 %v404, %v401
    %v447 = vpack.c.b16 %v405, %v402
    %v448 = vpack.c.b16 %v409, %v406
    %v449 = vpack.c.b16 %v410, %v407
    %v450 = vpack.c.b16 %v411, %v408
    %v451 = vpack.c.b16 %v415, %v412
    %v452 = vpack.c.b16 %v416, %v413
    %v453 = vpack.c.b16 %v417, %v414
    %v454 = vpack.c.b16 %v421, %v418
    %v455 = vpack.c.b16 %v422, %v419
    %v456 = vpack.c.b16 %v423, %v420
    %v457 = vpack.c.b16 %v427, %v424
    %v458 = vpack.c.b16 %v428, %v425
    %v459 = vpack.c.b16 %v429, %v426
    %v460 = vpack.c.b16 %v433, %v430
    %v461 = vpack.c.b16 %v434, %v431
    %v462 = vpack.c.b16 %v435, %v432
    %v463 = vpack.c.b16 %v439, %v436
    %v464 = vpack.c.b16 %v440, %v437
    %v465 = vpack.c.b16 %v441, %v438
    %490 = vmatprep.subr.bf16.mxu0 %v464
    %491 = vmatpush1.bf16.msra.mxu0 %v463
    %492 = vmatprep.subr.bf16.mxu0 %v461
    %493 = vmatpush1.bf16.msra.mxu0 %v460
    %494 = vmatprep.subr.bf16.mxu0 %v458
    %495 = vmatpush1.bf16.msra.mxu0 %v457
    %496 = vmatprep.subr.bf16.mxu0 %v455
    %497 = vmatpush1.bf16.msra.mxu0 %v454
    %498 = vmatprep.subr.bf16.mxu0 %v452
    %499 = vmatpush1.bf16.msra.mxu0 %v451
    %500 = vmatprep.subr.bf16.mxu0 %v449
    %501 = vmatpush1.bf16.msra.mxu0 %v448
    %502 = vmatprep.subr.bf16.mxu0 %v446
    %503 = vmatpush1.bf16.msra.mxu0 %v445
    %504 = vmatprep.subr.bf16.mxu0 %v443
    %505 = vmatpush1.bf16.msra.mxu0 %v442
    %506 = vmatprep.subr.bf16.mxu0 0
    %507 = vmatpush2.bf16.msra.mxu0 0
    %508 = vmatprep.subr.bf16.mxu0 0
    %509 = vmatpush2.bf16.msra.mxu0 0
    %510 = vmatprep.subr.bf16.mxu0 0
    %511 = vmatpush2.bf16.msra.mxu0 0
    %512 = vmatprep.subr.bf16.mxu0 0
    %513 = vmatpush2.bf16.msra.mxu0 0
    %514 = vmatprep.subr.bf16.mxu0 0
    %515 = vmatpush2.bf16.msra.mxu0 0
    %516 = vmatprep.subr.bf16.mxu0 0
    %517 = vmatpush2.bf16.msra.mxu0 0
    %518 = vmatprep.subr.bf16.mxu0 0
    %519 = vmatpush2.bf16.msra.mxu0 0
    %520 = vmatprep.subr.bf16.mxu0 0
    %521 = vmatpush2.bf16.msra.mxu0 0
    %522 = vmatprep.mubr.bf16.mxu0 0
    %523 = vmatmul.mubr.bf16.gmra.mxu0 %v354
    %v524 = vpop.f32.mrf.mxu0
    %v525 = vadd.f32 %v326, %v524
    %v526 = vpop.f32.mrf.mxu0
    %v527 = vadd.f32 %v330, %v526
    %v528 = vpop.f32.mrf.mxu0
    %v529 = vadd.f32 %v326, %v528
    %v530 = vpop.f32.mrf.mxu0
    %v531 = vadd.f32 %v330, %v530
    %532 = vmatprep.mubr.bf16.mxu0 0
    %533 = vmatmul.mubr.bf16.gmra.mxu0 %v355
    %v534 = vpop.f32.mrf.mxu0
    %v535 = vadd.f32 %v326, %v534
    %v536 = vpop.f32.mrf.mxu0
    %v537 = vadd.f32 %v330, %v536
    %v538 = vpop.f32.mrf.mxu0
    %v539 = vadd.f32 %v326, %v538
    %v540 = vpop.f32.mrf.mxu0
    %v541 = vadd.f32 %v330, %v540
    %542 = vmatprep.mubr.bf16.mxu0 0
    %543 = vmatmul.mubr.bf16.gmra.mxu0 %v356
    %v544 = vpop.f32.mrf.mxu0
    %v545 = vadd.f32 %v326, %v544
    %v546 = vpop.f32.mrf.mxu0
    %v547 = vadd.f32 %v330, %v546
    %v548 = vpop.f32.mrf.mxu0
    %v549 = vadd.f32 %v326, %v548
    %v550 = vpop.f32.mrf.mxu0
    %v551 = vadd.f32 %v330, %v550
    %552 = vmatprep.mubr.bf16.mxu0 0
    %553 = vmatmul.mubr.bf16.gmra.mxu0 %v357
    %v554 = vpop.f32.mrf.mxu0
    %v555 = vadd.f32 %v326, %v554
    %v556 = vpop.f32.mrf.mxu0
    %v557 = vadd.f32 %v330, %v556
    %v558 = vpop.f32.mrf.mxu0
    %v559 = vadd.f32 %v326, %v558
    %v560 = vpop.f32.mrf.mxu0
    %v561 = vadd.f32 %v330, %v560
    %562 = vdwg.mxu0
    %563 = vmatprep.subr.bf16.mxu0 0
    %564 = vmatpush1.bf16.msra.mxu0 %v465
    %565 = vmatprep.subr.bf16.mxu0 0
    %566 = vmatpush1.bf16.msra.mxu0 %v462
    %567 = vmatprep.subr.bf16.mxu0 0
    %568 = vmatpush1.bf16.msra.mxu0 %v459
    %569 = vmatprep.subr.bf16.mxu0 0
    %570 = vmatpush1.bf16.msra.mxu0 %v456
    %571 = vmatprep.subr.bf16.mxu0 0
    %572 = vmatpush1.bf16.msra.mxu0 %v453
    %573 = vmatprep.subr.bf16.mxu0 0
    %574 = vmatpush1.bf16.msra.mxu0 %v450
    %575 = vmatprep.subr.bf16.mxu0 0
    %576 = vmatpush1.bf16.msra.mxu0 %v447
    %577 = vmatprep.subr.bf16.mxu0 0
    %578 = vmatpush1.bf16.msra.mxu0 %v444
    %579 = vmatprep.subr.bf16.mxu0 0
    %580 = vmatpush2.bf16.msra.mxu0 0
    %581 = vmatprep.subr.bf16.mxu0 0
    %582 = vmatpush2.bf16.msra.mxu0 0
    %583 = vmatprep.subr.bf16.mxu0 0
    %584 = vmatpush2.bf16.msra.mxu0 0
    %585 = vmatprep.subr.bf16.mxu0 0
    %586 = vmatpush2.bf16.msra.mxu0 0
    %587 = vmatprep.subr.bf16.mxu0 0
    %588 = vmatpush2.bf16.msra.mxu0 0
    %589 = vmatprep.subr.bf16.mxu0 0
    %590 = vmatpush2.bf16.msra.mxu0 0
    %591 = vmatprep.subr.bf16.mxu0 0
    %592 = vmatpush2.bf16.msra.mxu0 0
    %593 = vmatprep.subr.bf16.mxu0 0
    %594 = vmatpush2.bf16.msra.mxu0 0
    %595 = vmatprep.mubr.bf16.mxu0 0
    %596 = vmatmul.mubr.bf16.gmra.mxu0 %v354
    %v597 = vpop.f32.mrf.mxu0
    %v598 = vadd.f32 %v334, %v597
    %v599 = vpop.f32.mrf.mxu0
    %v600 = vpop.f32.mrf.mxu0
    %v601 = vadd.f32 %v334, %v600
    %v602 = vpop.f32.mrf.mxu0
    %603 = vmatprep.mubr.bf16.mxu0 0
    %604 = vmatmul.mubr.bf16.gmra.mxu0 %v355
    %v605 = vpop.f32.mrf.mxu0
    %v606 = vadd.f32 %v334, %v605
    %v607 = vpop.f32.mrf.mxu0
    %v608 = vpop.f32.mrf.mxu0
    %v609 = vadd.f32 %v334, %v608
    %v610 = vpop.f32.mrf.mxu0
    %611 = vmatprep.mubr.bf16.mxu0 0
    %612 = vmatmul.mubr.bf16.gmra.mxu0 %v356
    %v613 = vpop.f32.mrf.mxu0
    %v614 = vadd.f32 %v334, %v613
    %v615 = vpop.f32.mrf.mxu0
    %v616 = vpop.f32.mrf.mxu0
    %v617 = vadd.f32 %v334, %v616
    %v618 = vpop.f32.mrf.mxu0
    %619 = vmatprep.mubr.bf16.mxu0 0
    %620 = vmatmul.mubr.bf16.gmra.mxu0 %v357
    %v621 = vpop.f32.mrf.mxu0
    %v622 = vadd.f32 %v334, %v621
    %v623 = vpop.f32.mrf.mxu0
    %v624 = vpop.f32.mrf.mxu0
    %v625 = vadd.f32 %v334, %v624
    %v626 = vpop.f32.mrf.mxu0
    %627 = vdwg.mxu0
    %v628 = vld [vmem:[#allocation13] sm:$0xff]
    %v629 = vld [vmem:[#allocation13 + $0x8] sm:$0xf]
    %v630 = vld [vmem:[#allocation13 + $0xc] sm:$0xff]
    %v631 = vld [vmem:[#allocation13 + $0x14] sm:$0xf]
    %v632 = vld [vmem:[#allocation13 + $0x18] sm:$0xff]
    %v633 = vld [vmem:[#allocation13 + $0x20] sm:$0xf]
    %v634 = vld [vmem:[#allocation13 + $0x24] sm:$0xff]
    %v635 = vld [vmem:[#allocation13 + $0x2c] sm:$0xf]
    %v636 = vld [vmem:[#allocation13 + $0x30] sm:$0xff]
    %v637 = vld [vmem:[#allocation13 + $0x38] sm:$0xf]
    %v638 = vld [vmem:[#allocation13 + $0x3c] sm:$0xff]
    %v639 = vld [vmem:[#allocation13 + $0x44] sm:$0xf]
    %v640 = vld [vmem:[#allocation13 + $0x48] sm:$0xff]
    %v641 = vld [vmem:[#allocation13 + $0x50] sm:$0xf]
    %v642 = vld [vmem:[#allocation13 + $0x54] sm:$0xff]
    %v643 = vld [vmem:[#allocation13 + $0x5c] sm:$0xf]
    %v644 = vld [vmem:[#allocation13 + $0x60] sm:$0xff]
    %v645 = vld [vmem:[#allocation13 + $0x68] sm:$0xf]
    %v646 = vld [vmem:[#allocation13 + $0x6c] sm:$0xff]
    %v647 = vld [vmem:[#allocation13 + $0x74] sm:$0xf]
    %v648 = vld [vmem:[#allocation13 + $0x78] sm:$0xff]
    %v649 = vld [vmem:[#allocation13 + $0x80] sm:$0xf]
    %v650 = vld [vmem:[#allocation13 + $0x84] sm:$0xff]
    %v651 = vld [vmem:[#allocation13 + $0x8c] sm:$0xf]
    %v652 = vld [vmem:[#allocation13 + $0x90] sm:$0xff]
    %v653 = vld [vmem:[#allocation13 + $0x98] sm:$0xf]
    %v654 = vld [vmem:[#allocation13 + $0x9c] sm:$0xff]
    %v655 = vld [vmem:[#allocation13 + $0xa4] sm:$0xf]
    %v656 = vld [vmem:[#allocation13 + $0xa8] sm:$0xff]
    %v657 = vld [vmem:[#allocation13 + $0xb0] sm:$0xf]
    %v658 = vld [vmem:[#allocation13 + $0xb4] sm:$0xff]
    %v659 = vld [vmem:[#allocation13 + $0xbc] sm:$0xf]
    %v660 = vld [vmem:[#allocation16] sm:$0x7]
    %v662 = vlaneseq
    %v663 = vshrl.u32 %v662, 7
    %v664 = vsub.s32 0, %v663
    %v665 = vrot.slane %v660, %v664
    %v666 = vlaneseq
    %v667 = vshrl.u32 %v666, 7
    %v668 = vsub.s32 1, %v667
    %v669 = vrot.slane %v660, %v668
    %v670 = vlaneseq
    %v671 = vshrl.u32 %v670, 7
    %v672 = vsub.s32 2, %v671
    %v673 = vrot.slane %v660, %v672
    %v677 = vld [vmem:[%s2] sm:$0xff]
    %v678 = vld [vmem:[%s2 + $0x8] sm:$0xff]
    %v679 = vld [vmem:[%s2 + $0x10] sm:$0xff]
    %v680 = vld [vmem:[%s2 + $0x18] sm:$0xff]
    %v681 = vld [vmem:[%s2 + $0x20] sm:$0xff]
    %v682 = vld [vmem:[%s2 + $0x28] sm:$0xff]
    %v683 = vld [vmem:[%s2 + $0x30] sm:$0xff]
    %v684 = vld [vmem:[%s2 + $0x38] sm:$0xff]
    %vm685 = vcmp.gt.f32.partialorder %v677, 0.5
    %vm686 = vcmp.gt.f32.partialorder %v678, 0.5
    %vm687 = vcmp.gt.f32.partialorder %v679, 0.5
    %vm688 = vcmp.gt.f32.partialorder %v680, 0.5
    %vm689 = vcmp.gt.f32.partialorder %v681, 0.5
    %vm690 = vcmp.gt.f32.partialorder %v682, 0.5
    %vm691 = vcmp.gt.f32.partialorder %v683, 0.5
    %vm692 = vcmp.gt.f32.partialorder %v684, 0.5
    %v725 = vunpack.c.l.b16 %v628
    %v726 = vunpack.c.h.b16 %v628
    %v727 = vunpack.c.l.b16 %v629
    %v728 = vunpack.c.l.b16 %v630
    %v729 = vunpack.c.h.b16 %v630
    %v730 = vunpack.c.l.b16 %v631
    %v731 = vunpack.c.l.b16 %v632
    %v732 = vunpack.c.h.b16 %v632
    %v733 = vunpack.c.l.b16 %v633
    %v734 = vunpack.c.l.b16 %v634
    %v735 = vunpack.c.h.b16 %v634
    %v736 = vunpack.c.l.b16 %v635
    %v737 = vunpack.c.l.b16 %v636
    %v738 = vunpack.c.h.b16 %v636
    %v739 = vunpack.c.l.b16 %v637
    %v740 = vunpack.c.l.b16 %v638
    %v741 = vunpack.c.h.b16 %v638
    %v742 = vunpack.c.l.b16 %v639
    %v743 = vunpack.c.l.b16 %v640
    %v744 = vunpack.c.h.b16 %v640
    %v745 = vunpack.c.l.b16 %v641
    %v746 = vunpack.c.l.b16 %v642
    %v747 = vunpack.c.h.b16 %v642
    %v748 = vunpack.c.l.b16 %v643
    %v749 = vunpack.c.l.b16 %v644
    %v750 = vunpack.c.h.b16 %v644
    %v751 = vunpack.c.l.b16 %v645
    %v752 = vunpack.c.l.b16 %v646
    %v753 = vunpack.c.h.b16 %v646
    %v754 = vunpack.c.l.b16 %v647
    %v755 = vunpack.c.l.b16 %v648
    %v756 = vunpack.c.h.b16 %v648
    %v757 = vunpack.c.l.b16 %v649
    %v758 = vunpack.c.l.b16 %v650
    %v759 = vunpack.c.h.b16 %v650
    %v760 = vunpack.c.l.b16 %v651
    %v761 = vunpack.c.l.b16 %v652
    %v762 = vunpack.c.h.b16 %v652
    %v763 = vunpack.c.l.b16 %v653
    %v764 = vunpack.c.l.b16 %v654
    %v765 = vunpack.c.h.b16 %v654
    %v766 = vunpack.c.l.b16 %v655
    %v767 = vunpack.c.l.b16 %v656
    %v768 = vunpack.c.h.b16 %v656
    %v769 = vunpack.c.l.b16 %v657
    %v770 = vunpack.c.l.b16 %v658
    %v771 = vunpack.c.h.b16 %v658
    %v772 = vunpack.c.l.b16 %v659
    %v773 = vpack.c.b16 %v728, %v725
    %v774 = vpack.c.b16 %v729, %v726
    %v775 = vpack.c.b16 %v730, %v727
    %v776 = vpack.c.b16 %v734, %v731
    %v777 = vpack.c.b16 %v735, %v732
    %v778 = vpack.c.b16 %v736, %v733
    %v779 = vpack.c.b16 %v740, %v737
    %v780 = vpack.c.b16 %v741, %v738
    %v781 = vpack.c.b16 %v742, %v739
    %v782 = vpack.c.b16 %v746, %v743
    %v783 = vpack.c.b16 %v747, %v744
    %v784 = vpack.c.b16 %v748, %v745
    %v785 = vpack.c.b16 %v752, %v749
    %v786 = vpack.c.b16 %v753, %v750
    %v787 = vpack.c.b16 %v754, %v751
    %v788 = vpack.c.b16 %v758, %v755
    %v789 = vpack.c.b16 %v759, %v756
    %v790 = vpack.c.b16 %v760, %v757
    %v791 = vpack.c.b16 %v764, %v761
    %v792 = vpack.c.b16 %v765, %v762
    %v793 = vpack.c.b16 %v766, %v763
    %v794 = vpack.c.b16 %v770, %v767
    %v795 = vpack.c.b16 %v771, %v768
    %v796 = vpack.c.b16 %v772, %v769
    %821 = vmatprep.subr.bf16.mxu0 %v795
    %822 = vmatpush1.bf16.msra.mxu0 %v794
    %823 = vmatprep.subr.bf16.mxu0 %v792
    %824 = vmatpush1.bf16.msra.mxu0 %v791
    %825 = vmatprep.subr.bf16.mxu0 %v789
    %826 = vmatpush1.bf16.msra.mxu0 %v788
    %827 = vmatprep.subr.bf16.mxu0 %v786
    %828 = vmatpush1.bf16.msra.mxu0 %v785
    %829 = vmatprep.subr.bf16.mxu0 %v783
    %830 = vmatpush1.bf16.msra.mxu0 %v782
    %831 = vmatprep.subr.bf16.mxu0 %v780
    %832 = vmatpush1.bf16.msra.mxu0 %v779
    %833 = vmatprep.subr.bf16.mxu0 %v777
    %834 = vmatpush1.bf16.msra.mxu0 %v776
    %835 = vmatprep.subr.bf16.mxu0 %v774
    %836 = vmatpush1.bf16.msra.mxu0 %v773
    %837 = vmatprep.subr.bf16.mxu0 0
    %838 = vmatpush2.bf16.msra.mxu0 0
    %839 = vmatprep.subr.bf16.mxu0 0
    %840 = vmatpush2.bf16.msra.mxu0 0
    %841 = vmatprep.subr.bf16.mxu0 0
    %842 = vmatpush2.bf16.msra.mxu0 0
    %843 = vmatprep.subr.bf16.mxu0 0
    %844 = vmatpush2.bf16.msra.mxu0 0
    %845 = vmatprep.subr.bf16.mxu0 0
    %846 = vmatpush2.bf16.msra.mxu0 0
    %847 = vmatprep.subr.bf16.mxu0 0
    %848 = vmatpush2.bf16.msra.mxu0 0
    %849 = vmatprep.subr.bf16.mxu0 0
    %850 = vmatpush2.bf16.msra.mxu0 0
    %851 = vmatprep.subr.bf16.mxu0 0
    %852 = vmatpush2.bf16.msra.mxu0 0
    %853 = vmatprep.mubr.bf16.mxu0 0
    %854 = vmatmul.mubr.bf16.gmra.mxu0 0
    %v855 = vpop.f32.mrf.mxu0
    %v856 = vadd.f32 %v665, %v855
    %v857 = vpop.f32.mrf.mxu0
    %v858 = vadd.f32 %v669, %v857
    %v859 = vpop.f32.mrf.mxu0
    %v860 = vpop.f32.mrf.mxu0
    %861 = vdwg.mxu0
    %862 = vmatprep.subr.bf16.mxu0 0
    %863 = vmatpush1.bf16.msra.mxu0 %v796
    %864 = vmatprep.subr.bf16.mxu0 0
    %865 = vmatpush1.bf16.msra.mxu0 %v793
    %866 = vmatprep.subr.bf16.mxu0 0
    %867 = vmatpush1.bf16.msra.mxu0 %v790
    %868 = vmatprep.subr.bf16.mxu0 0
    %869 = vmatpush1.bf16.msra.mxu0 %v787
    %870 = vmatprep.subr.bf16.mxu0 0
    %871 = vmatpush1.bf16.msra.mxu0 %v784
    %872 = vmatprep.subr.bf16.mxu0 0
    %873 = vmatpush1.bf16.msra.mxu0 %v781
    %874 = vmatprep.subr.bf16.mxu0 0
    %875 = vmatpush1.bf16.msra.mxu0 %v778
    %876 = vmatprep.subr.bf16.mxu0 0
    %877 = vmatpush1.bf16.msra.mxu0 %v775
    %878 = vmatprep.subr.bf16.mxu0 0
    %879 = vmatpush2.bf16.msra.mxu0 0
    %880 = vmatprep.subr.bf16.mxu0 0
    %881 = vmatpush2.bf16.msra.mxu0 0
    %882 = vmatprep.subr.bf16.mxu0 0
    %883 = vmatpush2.bf16.msra.mxu0 0
    %884 = vmatprep.subr.bf16.mxu0 0
    %885 = vmatpush2.bf16.msra.mxu0 0
    %886 = vmatprep.subr.bf16.mxu0 0
    %887 = vmatpush2.bf16.msra.mxu0 0
    %888 = vmatprep.subr.bf16.mxu0 0
    %889 = vmatpush2.bf16.msra.mxu0 0
    %890 = vmatprep.subr.bf16.mxu0 0
    %891 = vmatpush2.bf16.msra.mxu0 0
    %892 = vmatprep.subr.bf16.mxu0 0
    %893 = vmatpush2.bf16.msra.mxu0 0
    %894 = vmatprep.mubr.bf16.mxu0 0
    %895 = vmatmul.mubr.bf16.gmra.mxu0 0
    %v896 = vpop.f32.mrf.mxu0
    %v897 = vadd.f32 %v673, %v896
    %v898 = vpop.f32.mrf.mxu0
    %v899 = vpop.f32.mrf.mxu0
    %v900 = vpop.f32.mrf.mxu0
    %901 = vdwg.mxu0
    %v902 = vadd.f32 %v525, %v856
    %v903 = vxor.u32 %v902, 2147483648
    %v904 = vmul.f32 %v903, 1.442695
    %v905 = vpow.pop %v904
    %v906 = vadd.f32 %v905, 1.0
    %v907 = vrcp.pop %v906
    %v908 = vmul.f32 1.0, %v907
    %v909 = vadd.f32 %v527, %v858
    %v910 = vxor.u32 %v909, 2147483648
    %v911 = vmul.f32 %v910, 1.442695
    %v912 = vpow.pop %v911
    %v913 = vadd.f32 %v912, 1.0
    %v914 = vrcp.pop %v913
    %v915 = vmul.f32 1.0, %v914
    %v916 = vmul.f32 %v908, %v897
    %v917 = vadd.f32 %v598, %v916
    %v918 = vtanh.pop %v917
    %v919 = vsub.f32 1.0, %v915
    %v920 = vmul.f32 %v919, %v918
    %v921 = vmul.f32 %v915, 0.0
    %v922 = vadd.f32 %v920, %v921
    %v923 = vsel %vm685, 1, 0
    %924 = vset.pattern.permute.xlu0 0
    %925 = vperm.xlu0 %924, %v923
    %v926 = vpop.permute.xlu0 %925
    %vm927 = vcmp.eq.s32.totalorder %v926, 1
    %v928 = vsel %vm927, %v922, 0.0
    %v929 = vpack.c.bf16 %v928, %v928
    %930 = vmatprep.subr.bf16.mxu0 %v795
    %931 = vmatpush1.bf16.msra.mxu0 %v794
    %932 = vmatprep.subr.bf16.mxu0 %v792
    %933 = vmatpush1.bf16.msra.mxu0 %v791
    %934 = vmatprep.subr.bf16.mxu0 %v789
    %935 = vmatpush1.bf16.msra.mxu0 %v788
    %936 = vmatprep.subr.bf16.mxu0 %v786
    %937 = vmatpush1.bf16.msra.mxu0 %v785
    %938 = vmatprep.subr.bf16.mxu0 %v783
    %939 = vmatpush1.bf16.msra.mxu0 %v782
    %940 = vmatprep.subr.bf16.mxu0 %v780
    %941 = vmatpush1.bf16.msra.mxu0 %v779
    %942 = vmatprep.subr.bf16.mxu0 %v777
    %943 = vmatpush1.bf16.msra.mxu0 %v776
    %944 = vmatprep.subr.bf16.mxu0 %v774
    %945 = vmatpush1.bf16.msra.mxu0 %v773
    %946 = vmatprep.subr.bf16.mxu0 0
    %947 = vmatpush2.bf16.msra.mxu0 0
    %948 = vmatprep.subr.bf16.mxu0 0
    %949 = vmatpush2.bf16.msra.mxu0 0
    %950 = vmatprep.subr.bf16.mxu0 0
    %951 = vmatpush2.bf16.msra.mxu0 0
    %952 = vmatprep.subr.bf16.mxu0 0
    %953 = vmatpush2.bf16.msra.mxu0 0
    %954 = vmatprep.subr.bf16.mxu0 0
    %955 = vmatpush2.bf16.msra.mxu0 0
    %956 = vmatprep.subr.bf16.mxu0 0
    %957 = vmatpush2.bf16.msra.mxu0 0
    %958 = vmatprep.subr.bf16.mxu0 0
    %959 = vmatpush2.bf16.msra.mxu0 0
    %960 = vmatprep.subr.bf16.mxu0 0
    %961 = vmatpush2.bf16.msra.mxu0 0
    %962 = vmatprep.mubr.bf16.mxu0 0
    %963 = vmatmul.mubr.bf16.gmra.mxu0 %v929
    %v964 = vpop.f32.mrf.mxu0
    %v965 = vadd.f32 %v665, %v964
    %v966 = vpop.f32.mrf.mxu0
    %v967 = vadd.f32 %v669, %v966
    %v968 = vpop.f32.mrf.mxu0
    %v969 = vpop.f32.mrf.mxu0
    %970 = vdwg.mxu0
    %971 = vmatprep.subr.bf16.mxu0 0
    %972 = vmatpush1.bf16.msra.mxu0 %v796
    %973 = vmatprep.subr.bf16.mxu0 0
    %974 = vmatpush1.bf16.msra.mxu0 %v793
    %975 = vmatprep.subr.bf16.mxu0 0
    %976 = vmatpush1.bf16.msra.mxu0 %v790
    %977 = vmatprep.subr.bf16.mxu0 0
    %978 = vmatpush1.bf16.msra.mxu0 %v787
    %979 = vmatprep.subr.bf16.mxu0 0
    %980 = vmatpush1.bf16.msra.mxu0 %v784
    %981 = vmatprep.subr.bf16.mxu0 0
    %982 = vmatpush1.bf16.msra.mxu0 %v781
    %983 = vmatprep.subr.bf16.mxu0 0
    %984 = vmatpush1.bf16.msra.mxu0 %v778
    %985 = vmatprep.subr.bf16.mxu0 0
    %986 = vmatpush1.bf16.msra.mxu0 %v775
    %987 = vmatprep.subr.bf16.mxu0 0
    %988 = vmatpush2.bf16.msra.mxu0 0
    %989 = vmatprep.subr.bf16.mxu0 0
    %990 = vmatpush2.bf16.msra.mxu0 0
    %991 = vmatprep.subr.bf16.mxu0 0
    %992 = vmatpush2.bf16.msra.mxu0 0
    %993 = vmatprep.subr.bf16.mxu0 0
    %994 = vmatpush2.bf16.msra.mxu0 0
    %995 = vmatprep.subr.bf16.mxu0 0
    %996 = vmatpush2.bf16.msra.mxu0 0
    %997 = vmatprep.subr.bf16.mxu0 0
    %998 = vmatpush2.bf16.msra.mxu0 0
    %999 = vmatprep.subr.bf16.mxu0 0
    %1000 = vmatpush2.bf16.msra.mxu0 0
    %1001 = vmatprep.subr.bf16.mxu0 0
    %1002 = vmatpush2.bf16.msra.mxu0 0
    %1003 = vmatprep.mubr.bf16.mxu0 0
    %1004 = vmatmul.mubr.bf16.gmra.mxu0 %v929
    %v1005 = vpop.f32.mrf.mxu0
    %v1006 = vadd.f32 %v673, %v1005
    %v1007 = vpop.f32.mrf.mxu0
    %v1008 = vpop.f32.mrf.mxu0
    %v1009 = vpop.f32.mrf.mxu0
    %1010 = vdwg.mxu0
    %v1011 = vadd.f32 %v529, %v965
    %v1012 = vxor.u32 %v1011, 2147483648
    %v1013 = vmul.f32 %v1012, 1.442695
    %v1014 = vpow.pop %v1013
    %v1015 = vadd.f32 %v1014, 1.0
    %v1016 = vrcp.pop %v1015
    %v1017 = vmul.f32 1.0, %v1016
    %v1018 = vadd.f32 %v531, %v967
    %v1019 = vxor.u32 %v1018, 2147483648
    %v1020 = vmul.f32 %v1019, 1.442695
    %v1021 = vpow.pop %v1020
    %v1022 = vadd.f32 %v1021, 1.0
    %v1023 = vrcp.pop %v1022
    %v1024 = vmul.f32 1.0, %v1023
    %v1025 = vmul.f32 %v1017, %v1006
    %v1026 = vadd.f32 %v601, %v1025
    %v1027 = vtanh.pop %v1026
    %v1028 = vsub.f32 1.0, %v1024
    %v1029 = vmul.f32 %v1028, %v1027
    %v1030 = vmul.f32 %v1024, %v928
    %v1031 = vadd.f32 %v1029, %v1030
    %v1032 = vsel %vm686, 1, 0
    %1033 = vset.pattern.permute.xlu0 0
    %1034 = vperm.xlu0 %1033, %v1032
    %v1035 = vpop.permute.xlu0 %1034
    %vm1036 = vcmp.eq.s32.totalorder %v1035, 1
    %v1037 = vsel %vm1036, %v1031, %v928
    %v1038 = vpack.c.bf16 %v1037, %v1037
    %1039 = vmatprep.subr.bf16.mxu0 %v795
    %1040 = vmatpush1.bf16.msra.mxu0 %v794
    %1041 = vmatprep.subr.bf16.mxu0 %v792
    %1042 = vmatpush1.bf16.msra.mxu0 %v791
    %1043 = vmatprep.subr.bf16.mxu0 %v789
    %1044 = vmatpush1.bf16.msra.mxu0 %v788
    %1045 = vmatprep.subr.bf16.mxu0 %v786
    %1046 = vmatpush1.bf16.msra.mxu0 %v785
    %1047 = vmatprep.subr.bf16.mxu0 %v783
    %1048 = vmatpush1.bf16.msra.mxu0 %v782
    %1049 = vmatprep.subr.bf16.mxu0 %v780
    %1050 = vmatpush1.bf16.msra.mxu0 %v779
    %1051 = vmatprep.subr.bf16.mxu0 %v777
    %1052 = vmatpush1.bf16.msra.mxu0 %v776
    %1053 = vmatprep.subr.bf16.mxu0 %v774
    %1054 = vmatpush1.bf16.msra.mxu0 %v773
    %1055 = vmatprep.subr.bf16.mxu0 0
    %1056 = vmatpush2.bf16.msra.mxu0 0
    %1057 = vmatprep.subr.bf16.mxu0 0
    %1058 = vmatpush2.bf16.msra.mxu0 0
    %1059 = vmatprep.subr.bf16.mxu0 0
    %1060 = vmatpush2.bf16.msra.mxu0 0
    %1061 = vmatprep.subr.bf16.mxu0 0
    %1062 = vmatpush2.bf16.msra.mxu0 0
    %1063 = vmatprep.subr.bf16.mxu0 0
    %1064 = vmatpush2.bf16.msra.mxu0 0
    %1065 = vmatprep.subr.bf16.mxu0 0
    %1066 = vmatpush2.bf16.msra.mxu0 0
    %1067 = vmatprep.subr.bf16.mxu0 0
    %1068 = vmatpush2.bf16.msra.mxu0 0
    %1069 = vmatprep.subr.bf16.mxu0 0
    %1070 = vmatpush2.bf16.msra.mxu0 0
    %1071 = vmatprep.mubr.bf16.mxu0 0
    %1072 = vmatmul.mubr.bf16.gmra.mxu0 %v1038
    %v1073 = vpop.f32.mrf.mxu0
    %v1074 = vadd.f32 %v665, %v1073
    %v1075 = vpop.f32.mrf.mxu0
    %v1076 = vadd.f32 %v669, %v1075
    %v1077 = vpop.f32.mrf.mxu0
    %v1078 = vpop.f32.mrf.mxu0
    %1079 = vdwg.mxu0
    %1080 = vmatprep.subr.bf16.mxu0 0
    %1081 = vmatpush1.bf16.msra.mxu0 %v796
    %1082 = vmatprep.subr.bf16.mxu0 0
    %1083 = vmatpush1.bf16.msra.mxu0 %v793
    %1084 = vmatprep.subr.bf16.mxu0 0
    %1085 = vmatpush1.bf16.msra.mxu0 %v790
    %1086 = vmatprep.subr.bf16.mxu0 0
    %1087 = vmatpush1.bf16.msra.mxu0 %v787
    %1088 = vmatprep.subr.bf16.mxu0 0
    %1089 = vmatpush1.bf16.msra.mxu0 %v784
    %1090 = vmatprep.subr.bf16.mxu0 0
    %1091 = vmatpush1.bf16.msra.mxu0 %v781
    %1092 = vmatprep.subr.bf16.mxu0 0
    %1093 = vmatpush1.bf16.msra.mxu0 %v778
    %1094 = vmatprep.subr.bf16.mxu0 0
    %1095 = vmatpush1.bf16.msra.mxu0 %v775
    %1096 = vmatprep.subr.bf16.mxu0 0
    %1097 = vmatpush2.bf16.msra.mxu0 0
    %1098 = vmatprep.subr.bf16.mxu0 0
    %1099 = vmatpush2.bf16.msra.mxu0 0
    %1100 = vmatprep.subr.bf16.mxu0 0
    %1101 = vmatpush2.bf16.msra.mxu0 0
    %1102 = vmatprep.subr.bf16.mxu0 0
    %1103 = vmatpush2.bf16.msra.mxu0 0
    %1104 = vmatprep.subr.bf16.mxu0 0
    %1105 = vmatpush2.bf16.msra.mxu0 0
    %1106 = vmatprep.subr.bf16.mxu0 0
    %1107 = vmatpush2.bf16.msra.mxu0 0
    %1108 = vmatprep.subr.bf16.mxu0 0
    %1109 = vmatpush2.bf16.msra.mxu0 0
    %1110 = vmatprep.subr.bf16.mxu0 0
    %1111 = vmatpush2.bf16.msra.mxu0 0
    %1112 = vmatprep.mubr.bf16.mxu0 0
    %1113 = vmatmul.mubr.bf16.gmra.mxu0 %v1038
    %v1114 = vpop.f32.mrf.mxu0
    %v1115 = vadd.f32 %v673, %v1114
    %v1116 = vpop.f32.mrf.mxu0
    %v1117 = vpop.f32.mrf.mxu0
    %v1118 = vpop.f32.mrf.mxu0
    %1119 = vdwg.mxu0
    %v1120 = vadd.f32 %v535, %v1074
    %v1121 = vxor.u32 %v1120, 2147483648
    %v1122 = vmul.f32 %v1121, 1.442695
    %v1123 = vpow.pop %v1122
    %v1124 = vadd.f32 %v1123, 1.0
    %v1125 = vrcp.pop %v1124
    %v1126 = vmul.f32 1.0, %v1125
    %v1127 = vadd.f32 %v537, %v1076
    %v1128 = vxor.u32 %v1127, 2147483648
    %v1129 = vmul.f32 %v1128, 1.442695
    %v1130 = vpow.pop %v1129
    %v1131 = vadd.f32 %v1130, 1.0
    %v1132 = vrcp.pop %v1131
    %v1133 = vmul.f32 1.0, %v1132
    %v1134 = vmul.f32 %v1126, %v1115
    %v1135 = vadd.f32 %v606, %v1134
    %v1136 = vtanh.pop %v1135
    %v1137 = vsub.f32 1.0, %v1133
    %v1138 = vmul.f32 %v1137, %v1136
    %v1139 = vmul.f32 %v1133, %v1037
    %v1140 = vadd.f32 %v1138, %v1139
    %v1141 = vsel %vm687, 1, 0
    %1142 = vset.pattern.permute.xlu0 0
    %1143 = vperm.xlu0 %1142, %v1141
    %v1144 = vpop.permute.xlu0 %1143
    %vm1145 = vcmp.eq.s32.totalorder %v1144, 1
    %v1146 = vsel %vm1145, %v1140, %v1037
    %v1147 = vpack.c.bf16 %v1146, %v1146
    %1148 = vmatprep.subr.bf16.mxu0 %v795
    %1149 = vmatpush1.bf16.msra.mxu0 %v794
    %1150 = vmatprep.subr.bf16.mxu0 %v792
    %1151 = vmatpush1.bf16.msra.mxu0 %v791
    %1152 = vmatprep.subr.bf16.mxu0 %v789
    %1153 = vmatpush1.bf16.msra.mxu0 %v788
    %1154 = vmatprep.subr.bf16.mxu0 %v786
    %1155 = vmatpush1.bf16.msra.mxu0 %v785
    %1156 = vmatprep.subr.bf16.mxu0 %v783
    %1157 = vmatpush1.bf16.msra.mxu0 %v782
    %1158 = vmatprep.subr.bf16.mxu0 %v780
    %1159 = vmatpush1.bf16.msra.mxu0 %v779
    %1160 = vmatprep.subr.bf16.mxu0 %v777
    %1161 = vmatpush1.bf16.msra.mxu0 %v776
    %1162 = vmatprep.subr.bf16.mxu0 %v774
    %1163 = vmatpush1.bf16.msra.mxu0 %v773
    %1164 = vmatprep.subr.bf16.mxu0 0
    %1165 = vmatpush2.bf16.msra.mxu0 0
    %1166 = vmatprep.subr.bf16.mxu0 0
    %1167 = vmatpush2.bf16.msra.mxu0 0
    %1168 = vmatprep.subr.bf16.mxu0 0
    %1169 = vmatpush2.bf16.msra.mxu0 0
    %1170 = vmatprep.subr.bf16.mxu0 0
    %1171 = vmatpush2.bf16.msra.mxu0 0
    %1172 = vmatprep.subr.bf16.mxu0 0
    %1173 = vmatpush2.bf16.msra.mxu0 0
    %1174 = vmatprep.subr.bf16.mxu0 0
    %1175 = vmatpush2.bf16.msra.mxu0 0
    %1176 = vmatprep.subr.bf16.mxu0 0
    %1177 = vmatpush2.bf16.msra.mxu0 0
    %1178 = vmatprep.subr.bf16.mxu0 0
    %1179 = vmatpush2.bf16.msra.mxu0 0
    %1180 = vmatprep.mubr.bf16.mxu0 0
    %1181 = vmatmul.mubr.bf16.gmra.mxu0 %v1147
    %v1182 = vpop.f32.mrf.mxu0
    %v1183 = vadd.f32 %v665, %v1182
    %v1184 = vpop.f32.mrf.mxu0
    %v1185 = vadd.f32 %v669, %v1184
    %v1186 = vpop.f32.mrf.mxu0
    %v1187 = vpop.f32.mrf.mxu0
    %1188 = vdwg.mxu0
    %1189 = vmatprep.subr.bf16.mxu0 0
    %1190 = vmatpush1.bf16.msra.mxu0 %v796
    %1191 = vmatprep.subr.bf16.mxu0 0
    %1192 = vmatpush1.bf16.msra.mxu0 %v793
    %1193 = vmatprep.subr.bf16.mxu0 0
    %1194 = vmatpush1.bf16.msra.mxu0 %v790
    %1195 = vmatprep.subr.bf16.mxu0 0
    %1196 = vmatpush1.bf16.msra.mxu0 %v787
    %1197 = vmatprep.subr.bf16.mxu0 0
    %1198 = vmatpush1.bf16.msra.mxu0 %v784
    %1199 = vmatprep.subr.bf16.mxu0 0
    %1200 = vmatpush1.bf16.msra.mxu0 %v781
    %1201 = vmatprep.subr.bf16.mxu0 0
    %1202 = vmatpush1.bf16.msra.mxu0 %v778
    %1203 = vmatprep.subr.bf16.mxu0 0
    %1204 = vmatpush1.bf16.msra.mxu0 %v775
    %1205 = vmatprep.subr.bf16.mxu0 0
    %1206 = vmatpush2.bf16.msra.mxu0 0
    %1207 = vmatprep.subr.bf16.mxu0 0
    %1208 = vmatpush2.bf16.msra.mxu0 0
    %1209 = vmatprep.subr.bf16.mxu0 0
    %1210 = vmatpush2.bf16.msra.mxu0 0
    %1211 = vmatprep.subr.bf16.mxu0 0
    %1212 = vmatpush2.bf16.msra.mxu0 0
    %1213 = vmatprep.subr.bf16.mxu0 0
    %1214 = vmatpush2.bf16.msra.mxu0 0
    %1215 = vmatprep.subr.bf16.mxu0 0
    %1216 = vmatpush2.bf16.msra.mxu0 0
    %1217 = vmatprep.subr.bf16.mxu0 0
    %1218 = vmatpush2.bf16.msra.mxu0 0
    %1219 = vmatprep.subr.bf16.mxu0 0
    %1220 = vmatpush2.bf16.msra.mxu0 0
    %1221 = vmatprep.mubr.bf16.mxu0 0
    %1222 = vmatmul.mubr.bf16.gmra.mxu0 %v1147
    %v1223 = vpop.f32.mrf.mxu0
    %v1224 = vadd.f32 %v673, %v1223
    %v1225 = vpop.f32.mrf.mxu0
    %v1226 = vpop.f32.mrf.mxu0
    %v1227 = vpop.f32.mrf.mxu0
    %1228 = vdwg.mxu0
    %v1229 = vadd.f32 %v539, %v1183
    %v1230 = vxor.u32 %v1229, 2147483648
    %v1231 = vmul.f32 %v1230, 1.442695
    %v1232 = vpow.pop %v1231
    %v1233 = vadd.f32 %v1232, 1.0
    %v1234 = vrcp.pop %v1233
    %v1235 = vmul.f32 1.0, %v1234
    %v1236 = vadd.f32 %v541, %v1185
    %v1237 = vxor.u32 %v1236, 2147483648
    %v1238 = vmul.f32 %v1237, 1.442695
    %v1239 = vpow.pop %v1238
    %v1240 = vadd.f32 %v1239, 1.0
    %v1241 = vrcp.pop %v1240
    %v1242 = vmul.f32 1.0, %v1241
    %v1243 = vmul.f32 %v1235, %v1224
    %v1244 = vadd.f32 %v609, %v1243
    %v1245 = vtanh.pop %v1244
    %v1246 = vsub.f32 1.0, %v1242
    %v1247 = vmul.f32 %v1246, %v1245
    %v1248 = vmul.f32 %v1242, %v1146
    %v1249 = vadd.f32 %v1247, %v1248
    %v1250 = vsel %vm688, 1, 0
    %1251 = vset.pattern.permute.xlu0 0
    %1252 = vperm.xlu0 %1251, %v1250
    %v1253 = vpop.permute.xlu0 %1252
    %vm1254 = vcmp.eq.s32.totalorder %v1253, 1
    %v1255 = vsel %vm1254, %v1249, %v1146
    %v1256 = vpack.c.bf16 %v1255, %v1255
    %1257 = vmatprep.subr.bf16.mxu0 %v795
    %1258 = vmatpush1.bf16.msra.mxu0 %v794
    %1259 = vmatprep.subr.bf16.mxu0 %v792
    %1260 = vmatpush1.bf16.msra.mxu0 %v791
    %1261 = vmatprep.subr.bf16.mxu0 %v789
    %1262 = vmatpush1.bf16.msra.mxu0 %v788
    %1263 = vmatprep.subr.bf16.mxu0 %v786
    %1264 = vmatpush1.bf16.msra.mxu0 %v785
    %1265 = vmatprep.subr.bf16.mxu0 %v783
    %1266 = vmatpush1.bf16.msra.mxu0 %v782
    %1267 = vmatprep.subr.bf16.mxu0 %v780
    %1268 = vmatpush1.bf16.msra.mxu0 %v779
    %1269 = vmatprep.subr.bf16.mxu0 %v777
    %1270 = vmatpush1.bf16.msra.mxu0 %v776
    %1271 = vmatprep.subr.bf16.mxu0 %v774
    %1272 = vmatpush1.bf16.msra.mxu0 %v773
    %1273 = vmatprep.subr.bf16.mxu0 0
    %1274 = vmatpush2.bf16.msra.mxu0 0
    %1275 = vmatprep.subr.bf16.mxu0 0
    %1276 = vmatpush2.bf16.msra.mxu0 0
    %1277 = vmatprep.subr.bf16.mxu0 0
    %1278 = vmatpush2.bf16.msra.mxu0 0
    %1279 = vmatprep.subr.bf16.mxu0 0
    %1280 = vmatpush2.bf16.msra.mxu0 0
    %1281 = vmatprep.subr.bf16.mxu0 0
    %1282 = vmatpush2.bf16.msra.mxu0 0
    %1283 = vmatprep.subr.bf16.mxu0 0
    %1284 = vmatpush2.bf16.msra.mxu0 0
    %1285 = vmatprep.subr.bf16.mxu0 0
    %1286 = vmatpush2.bf16.msra.mxu0 0
    %1287 = vmatprep.subr.bf16.mxu0 0
    %1288 = vmatpush2.bf16.msra.mxu0 0
    %1289 = vmatprep.mubr.bf16.mxu0 0
    %1290 = vmatmul.mubr.bf16.gmra.mxu0 %v1256
    %v1291 = vpop.f32.mrf.mxu0
    %v1292 = vadd.f32 %v665, %v1291
    %v1293 = vpop.f32.mrf.mxu0
    %v1294 = vadd.f32 %v669, %v1293
    %v1295 = vpop.f32.mrf.mxu0
    %v1296 = vpop.f32.mrf.mxu0
    %1297 = vdwg.mxu0
    %1298 = vmatprep.subr.bf16.mxu0 0
    %1299 = vmatpush1.bf16.msra.mxu0 %v796
    %1300 = vmatprep.subr.bf16.mxu0 0
    %1301 = vmatpush1.bf16.msra.mxu0 %v793
    %1302 = vmatprep.subr.bf16.mxu0 0
    %1303 = vmatpush1.bf16.msra.mxu0 %v790
    %1304 = vmatprep.subr.bf16.mxu0 0
    %1305 = vmatpush1.bf16.msra.mxu0 %v787
    %1306 = vmatprep.subr.bf16.mxu0 0
    %1307 = vmatpush1.bf16.msra.mxu0 %v784
    %1308 = vmatprep.subr.bf16.mxu0 0
    %1309 = vmatpush1.bf16.msra.mxu0 %v781
    %1310 = vmatprep.subr.bf16.mxu0 0
    %1311 = vmatpush1.bf16.msra.mxu0 %v778
    %1312 = vmatprep.subr.bf16.mxu0 0
    %1313 = vmatpush1.bf16.msra.mxu0 %v775
    %1314 = vmatprep.subr.bf16.mxu0 0
    %1315 = vmatpush2.bf16.msra.mxu0 0
    %1316 = vmatprep.subr.bf16.mxu0 0
    %1317 = vmatpush2.bf16.msra.mxu0 0
    %1318 = vmatprep.subr.bf16.mxu0 0
    %1319 = vmatpush2.bf16.msra.mxu0 0
    %1320 = vmatprep.subr.bf16.mxu0 0
    %1321 = vmatpush2.bf16.msra.mxu0 0
    %1322 = vmatprep.subr.bf16.mxu0 0
    %1323 = vmatpush2.bf16.msra.mxu0 0
    %1324 = vmatprep.subr.bf16.mxu0 0
    %1325 = vmatpush2.bf16.msra.mxu0 0
    %1326 = vmatprep.subr.bf16.mxu0 0
    %1327 = vmatpush2.bf16.msra.mxu0 0
    %1328 = vmatprep.subr.bf16.mxu0 0
    %1329 = vmatpush2.bf16.msra.mxu0 0
    %1330 = vmatprep.mubr.bf16.mxu0 0
    %1331 = vmatmul.mubr.bf16.gmra.mxu0 %v1256
    %v1332 = vpop.f32.mrf.mxu0
    %v1333 = vadd.f32 %v673, %v1332
    %v1334 = vpop.f32.mrf.mxu0
    %v1335 = vpop.f32.mrf.mxu0
    %v1336 = vpop.f32.mrf.mxu0
    %1337 = vdwg.mxu0
    %v1338 = vadd.f32 %v545, %v1292
    %v1339 = vxor.u32 %v1338, 2147483648
    %v1340 = vmul.f32 %v1339, 1.442695
    %v1341 = vpow.pop %v1340
    %v1342 = vadd.f32 %v1341, 1.0
    %v1343 = vrcp.pop %v1342
    %v1344 = vmul.f32 1.0, %v1343
    %v1345 = vadd.f32 %v547, %v1294
    %v1346 = vxor.u32 %v1345, 2147483648
    %v1347 = vmul.f32 %v1346, 1.442695
    %v1348 = vpow.pop %v1347
    %v1349 = vadd.f32 %v1348, 1.0
    %v1350 = vrcp.pop %v1349
    %v1351 = vmul.f32 1.0, %v1350
    %v1352 = vmul.f32 %v1344, %v1333
    %v1353 = vadd.f32 %v614, %v1352
    %v1354 = vtanh.pop %v1353
    %v1355 = vsub.f32 1.0, %v1351
    %v1356 = vmul.f32 %v1355, %v1354
    %v1357 = vmul.f32 %v1351, %v1255
    %v1358 = vadd.f32 %v1356, %v1357
    %v1359 = vsel %vm689, 1, 0
    %1360 = vset.pattern.permute.xlu0 0
    %1361 = vperm.xlu0 %1360, %v1359
    %v1362 = vpop.permute.xlu0 %1361
    %vm1363 = vcmp.eq.s32.totalorder %v1362, 1
    %v1364 = vsel %vm1363, %v1358, %v1255
    %v1365 = vpack.c.bf16 %v1364, %v1364
    %1366 = vmatprep.subr.bf16.mxu0 %v795
    %1367 = vmatpush1.bf16.msra.mxu0 %v794
    %1368 = vmatprep.subr.bf16.mxu0 %v792
    %1369 = vmatpush1.bf16.msra.mxu0 %v791
    %1370 = vmatprep.subr.bf16.mxu0 %v789
    %1371 = vmatpush1.bf16.msra.mxu0 %v788
    %1372 = vmatprep.subr.bf16.mxu0 %v786
    %1373 = vmatpush1.bf16.msra.mxu0 %v785
    %1374 = vmatprep.subr.bf16.mxu0 %v783
    %1375 = vmatpush1.bf16.msra.mxu0 %v782
    %1376 = vmatprep.subr.bf16.mxu0 %v780
    %1377 = vmatpush1.bf16.msra.mxu0 %v779
    %1378 = vmatprep.subr.bf16.mxu0 %v777
    %1379 = vmatpush1.bf16.msra.mxu0 %v776
    %1380 = vmatprep.subr.bf16.mxu0 %v774
    %1381 = vmatpush1.bf16.msra.mxu0 %v773
    %1382 = vmatprep.subr.bf16.mxu0 0
    %1383 = vmatpush2.bf16.msra.mxu0 0
    %1384 = vmatprep.subr.bf16.mxu0 0
    %1385 = vmatpush2.bf16.msra.mxu0 0
    %1386 = vmatprep.subr.bf16.mxu0 0
    %1387 = vmatpush2.bf16.msra.mxu0 0
    %1388 = vmatprep.subr.bf16.mxu0 0
    %1389 = vmatpush2.bf16.msra.mxu0 0
    %1390 = vmatprep.subr.bf16.mxu0 0
    %1391 = vmatpush2.bf16.msra.mxu0 0
    %1392 = vmatprep.subr.bf16.mxu0 0
    %1393 = vmatpush2.bf16.msra.mxu0 0
    %1394 = vmatprep.subr.bf16.mxu0 0
    %1395 = vmatpush2.bf16.msra.mxu0 0
    %1396 = vmatprep.subr.bf16.mxu0 0
    %1397 = vmatpush2.bf16.msra.mxu0 0
    %1398 = vmatprep.mubr.bf16.mxu0 0
    %1399 = vmatmul.mubr.bf16.gmra.mxu0 %v1365
    %v1400 = vpop.f32.mrf.mxu0
    %v1401 = vadd.f32 %v665, %v1400
    %v1402 = vpop.f32.mrf.mxu0
    %v1403 = vadd.f32 %v669, %v1402
    %v1404 = vpop.f32.mrf.mxu0
    %v1405 = vpop.f32.mrf.mxu0
    %1406 = vdwg.mxu0
    %1407 = vmatprep.subr.bf16.mxu0 0
    %1408 = vmatpush1.bf16.msra.mxu0 %v796
    %1409 = vmatprep.subr.bf16.mxu0 0
    %1410 = vmatpush1.bf16.msra.mxu0 %v793
    %1411 = vmatprep.subr.bf16.mxu0 0
    %1412 = vmatpush1.bf16.msra.mxu0 %v790
    %1413 = vmatprep.subr.bf16.mxu0 0
    %1414 = vmatpush1.bf16.msra.mxu0 %v787
    %1415 = vmatprep.subr.bf16.mxu0 0
    %1416 = vmatpush1.bf16.msra.mxu0 %v784
    %1417 = vmatprep.subr.bf16.mxu0 0
    %1418 = vmatpush1.bf16.msra.mxu0 %v781
    %1419 = vmatprep.subr.bf16.mxu0 0
    %1420 = vmatpush1.bf16.msra.mxu0 %v778
    %1421 = vmatprep.subr.bf16.mxu0 0
    %1422 = vmatpush1.bf16.msra.mxu0 %v775
    %1423 = vmatprep.subr.bf16.mxu0 0
    %1424 = vmatpush2.bf16.msra.mxu0 0
    %1425 = vmatprep.subr.bf16.mxu0 0
    %1426 = vmatpush2.bf16.msra.mxu0 0
    %1427 = vmatprep.subr.bf16.mxu0 0
    %1428 = vmatpush2.bf16.msra.mxu0 0
    %1429 = vmatprep.subr.bf16.mxu0 0
    %1430 = vmatpush2.bf16.msra.mxu0 0
    %1431 = vmatprep.subr.bf16.mxu0 0
    %1432 = vmatpush2.bf16.msra.mxu0 0
    %1433 = vmatprep.subr.bf16.mxu0 0
    %1434 = vmatpush2.bf16.msra.mxu0 0
    %1435 = vmatprep.subr.bf16.mxu0 0
    %1436 = vmatpush2.bf16.msra.mxu0 0
    %1437 = vmatprep.subr.bf16.mxu0 0
    %1438 = vmatpush2.bf16.msra.mxu0 0
    %1439 = vmatprep.mubr.bf16.mxu0 0
    %1440 = vmatmul.mubr.bf16.gmra.mxu0 %v1365
    %v1441 = vpop.f32.mrf.mxu0
    %v1442 = vadd.f32 %v673, %v1441
    %v1443 = vpop.f32.mrf.mxu0
    %v1444 = vpop.f32.mrf.mxu0
    %v1445 = vpop.f32.mrf.mxu0
    %1446 = vdwg.mxu0
    %v1447 = vadd.f32 %v549, %v1401
    %v1448 = vxor.u32 %v1447, 2147483648
    %v1449 = vmul.f32 %v1448, 1.442695
    %v1450 = vpow.pop %v1449
    %v1451 = vadd.f32 %v1450, 1.0
    %v1452 = vrcp.pop %v1451
    %v1453 = vmul.f32 1.0, %v1452
    %v1454 = vadd.f32 %v551, %v1403
    %v1455 = vxor.u32 %v1454, 2147483648
    %v1456 = vmul.f32 %v1455, 1.442695
    %v1457 = vpow.pop %v1456
    %v1458 = vadd.f32 %v1457, 1.0
    %v1459 = vrcp.pop %v1458
    %v1460 = vmul.f32 1.0, %v1459
    %v1461 = vmul.f32 %v1453, %v1442
    %v1462 = vadd.f32 %v617, %v1461
    %v1463 = vtanh.pop %v1462
    %v1464 = vsub.f32 1.0, %v1460
    %v1465 = vmul.f32 %v1464, %v1463
    %v1466 = vmul.f32 %v1460, %v1364
    %v1467 = vadd.f32 %v1465, %v1466
    %v1468 = vsel %vm690, 1, 0
    %1469 = vset.pattern.permute.xlu0 0
    %1470 = vperm.xlu0 %1469, %v1468
    %v1471 = vpop.permute.xlu0 %1470
    %vm1472 = vcmp.eq.s32.totalorder %v1471, 1
    %v1473 = vsel %vm1472, %v1467, %v1364
    %v1474 = vpack.c.bf16 %v1473, %v1473
    %1475 = vmatprep.subr.bf16.mxu0 %v795
    %1476 = vmatpush1.bf16.msra.mxu0 %v794
    %1477 = vmatprep.subr.bf16.mxu0 %v792
    %1478 = vmatpush1.bf16.msra.mxu0 %v791
    %1479 = vmatprep.subr.bf16.mxu0 %v789
    %1480 = vmatpush1.bf16.msra.mxu0 %v788
    %1481 = vmatprep.subr.bf16.mxu0 %v786
    %1482 = vmatpush1.bf16.msra.mxu0 %v785
    %1483 = vmatprep.subr.bf16.mxu0 %v783
    %1484 = vmatpush1.bf16.msra.mxu0 %v782
    %1485 = vmatprep.subr.bf16.mxu0 %v780
    %1486 = vmatpush1.bf16.msra.mxu0 %v779
    %1487 = vmatprep.subr.bf16.mxu0 %v777
    %1488 = vmatpush1.bf16.msra.mxu0 %v776
    %1489 = vmatprep.subr.bf16.mxu0 %v774
    %1490 = vmatpush1.bf16.msra.mxu0 %v773
    %1491 = vmatprep.subr.bf16.mxu0 0
    %1492 = vmatpush2.bf16.msra.mxu0 0
    %1493 = vmatprep.subr.bf16.mxu0 0
    %1494 = vmatpush2.bf16.msra.mxu0 0
    %1495 = vmatprep.subr.bf16.mxu0 0
    %1496 = vmatpush2.bf16.msra.mxu0 0
    %1497 = vmatprep.subr.bf16.mxu0 0
    %1498 = vmatpush2.bf16.msra.mxu0 0
    %1499 = vmatprep.subr.bf16.mxu0 0
    %1500 = vmatpush2.bf16.msra.mxu0 0
    %1501 = vmatprep.subr.bf16.mxu0 0
    %1502 = vmatpush2.bf16.msra.mxu0 0
    %1503 = vmatprep.subr.bf16.mxu0 0
    %1504 = vmatpush2.bf16.msra.mxu0 0
    %1505 = vmatprep.subr.bf16.mxu0 0
    %1506 = vmatpush2.bf16.msra.mxu0 0
    %1507 = vmatprep.mubr.bf16.mxu0 0
    %1508 = vmatmul.mubr.bf16.gmra.mxu0 %v1474
    %v1509 = vpop.f32.mrf.mxu0
    %v1510 = vadd.f32 %v665, %v1509
    %v1511 = vpop.f32.mrf.mxu0
    %v1512 = vadd.f32 %v669, %v1511
    %v1513 = vpop.f32.mrf.mxu0
    %v1514 = vpop.f32.mrf.mxu0
    %1515 = vdwg.mxu0
    %1516 = vmatprep.subr.bf16.mxu0 0
    %1517 = vmatpush1.bf16.msra.mxu0 %v796
    %1518 = vmatprep.subr.bf16.mxu0 0
    %1519 = vmatpush1.bf16.msra.mxu0 %v793
    %1520 = vmatprep.subr.bf16.mxu0 0
    %1521 = vmatpush1.bf16.msra.mxu0 %v790
    %1522 = vmatprep.subr.bf16.mxu0 0
    %1523 = vmatpush1.bf16.msra.mxu0 %v787
    %1524 = vmatprep.subr.bf16.mxu0 0
    %1525 = vmatpush1.bf16.msra.mxu0 %v784
    %1526 = vmatprep.subr.bf16.mxu0 0
    %1527 = vmatpush1.bf16.msra.mxu0 %v781
    %1528 = vmatprep.subr.bf16.mxu0 0
    %1529 = vmatpush1.bf16.msra.mxu0 %v778
    %1530 = vmatprep.subr.bf16.mxu0 0
    %1531 = vmatpush1.bf16.msra.mxu0 %v775
    %1532 = vmatprep.subr.bf16.mxu0 0
    %1533 = vmatpush2.bf16.msra.mxu0 0
    %1534 = vmatprep.subr.bf16.mxu0 0
    %1535 = vmatpush2.bf16.msra.mxu0 0
    %1536 = vmatprep.subr.bf16.mxu0 0
    %1537 = vmatpush2.bf16.msra.mxu0 0
    %1538 = vmatprep.subr.bf16.mxu0 0
    %1539 = vmatpush2.bf16.msra.mxu0 0
    %1540 = vmatprep.subr.bf16.mxu0 0
    %1541 = vmatpush2.bf16.msra.mxu0 0
    %1542 = vmatprep.subr.bf16.mxu0 0
    %1543 = vmatpush2.bf16.msra.mxu0 0
    %1544 = vmatprep.subr.bf16.mxu0 0
    %1545 = vmatpush2.bf16.msra.mxu0 0
    %1546 = vmatprep.subr.bf16.mxu0 0
    %1547 = vmatpush2.bf16.msra.mxu0 0
    %1548 = vmatprep.mubr.bf16.mxu0 0
    %1549 = vmatmul.mubr.bf16.gmra.mxu0 %v1474
    %v1550 = vpop.f32.mrf.mxu0
    %v1551 = vadd.f32 %v673, %v1550
    %v1552 = vpop.f32.mrf.mxu0
    %v1553 = vpop.f32.mrf.mxu0
    %v1554 = vpop.f32.mrf.mxu0
    %1555 = vdwg.mxu0
    %v1556 = vadd.f32 %v555, %v1510
    %v1557 = vxor.u32 %v1556, 2147483648
    %v1558 = vmul.f32 %v1557, 1.442695
    %v1559 = vpow.pop %v1558
    %v1560 = vadd.f32 %v1559, 1.0
    %v1561 = vrcp.pop %v1560
    %v1562 = vmul.f32 1.0, %v1561
    %v1563 = vadd.f32 %v557, %v1512
    %v1564 = vxor.u32 %v1563, 2147483648
    %v1565 = vmul.f32 %v1564, 1.442695
    %v1566 = vpow.pop %v1565
    %v1567 = vadd.f32 %v1566, 1.0
    %v1568 = vrcp.pop %v1567
    %v1569 = vmul.f32 1.0, %v1568
    %v1570 = vmul.f32 %v1562, %v1551
    %v1571 = vadd.f32 %v622, %v1570
    %v1572 = vtanh.pop %v1571
    %v1573 = vsub.f32 1.0, %v1569
    %v1574 = vmul.f32 %v1573, %v1572
    %v1575 = vmul.f32 %v1569, %v1473
    %v1576 = vadd.f32 %v1574, %v1575
    %v1577 = vsel %vm691, 1, 0
    %1578 = vset.pattern.permute.xlu0 0
    %1579 = vperm.xlu0 %1578, %v1577
    %v1580 = vpop.permute.xlu0 %1579
    %vm1581 = vcmp.eq.s32.totalorder %v1580, 1
    %v1582 = vsel %vm1581, %v1576, %v1473
    %v1583 = vpack.c.bf16 %v1582, %v1582
    %1584 = vmatprep.subr.bf16.mxu0 %v795
    %1585 = vmatpush1.bf16.msra.mxu0 %v794
    %1586 = vmatprep.subr.bf16.mxu0 %v792
    %1587 = vmatpush1.bf16.msra.mxu0 %v791
    %1588 = vmatprep.subr.bf16.mxu0 %v789
    %1589 = vmatpush1.bf16.msra.mxu0 %v788
    %1590 = vmatprep.subr.bf16.mxu0 %v786
    %1591 = vmatpush1.bf16.msra.mxu0 %v785
    %1592 = vmatprep.subr.bf16.mxu0 %v783
    %1593 = vmatpush1.bf16.msra.mxu0 %v782
    %1594 = vmatprep.subr.bf16.mxu0 %v780
    %1595 = vmatpush1.bf16.msra.mxu0 %v779
    %1596 = vmatprep.subr.bf16.mxu0 %v777
    %1597 = vmatpush1.bf16.msra.mxu0 %v776
    %1598 = vmatprep.subr.bf16.mxu0 %v774
    %1599 = vmatpush1.bf16.msra.mxu0 %v773
    %1600 = vmatprep.subr.bf16.mxu0 0
    %1601 = vmatpush2.bf16.msra.mxu0 0
    %1602 = vmatprep.subr.bf16.mxu0 0
    %1603 = vmatpush2.bf16.msra.mxu0 0
    %1604 = vmatprep.subr.bf16.mxu0 0
    %1605 = vmatpush2.bf16.msra.mxu0 0
    %1606 = vmatprep.subr.bf16.mxu0 0
    %1607 = vmatpush2.bf16.msra.mxu0 0
    %1608 = vmatprep.subr.bf16.mxu0 0
    %1609 = vmatpush2.bf16.msra.mxu0 0
    %1610 = vmatprep.subr.bf16.mxu0 0
    %1611 = vmatpush2.bf16.msra.mxu0 0
    %1612 = vmatprep.subr.bf16.mxu0 0
    %1613 = vmatpush2.bf16.msra.mxu0 0
    %1614 = vmatprep.subr.bf16.mxu0 0
    %1615 = vmatpush2.bf16.msra.mxu0 0
    %1616 = vmatprep.mubr.bf16.mxu0 0
    %1617 = vmatmul.mubr.bf16.gmra.mxu0 %v1583
    %v1618 = vpop.f32.mrf.mxu0
    %v1619 = vadd.f32 %v665, %v1618
    %v1620 = vpop.f32.mrf.mxu0
    %v1621 = vadd.f32 %v669, %v1620
    %v1622 = vpop.f32.mrf.mxu0
    %v1623 = vpop.f32.mrf.mxu0
    %1624 = vdwg.mxu0
    %1625 = vmatprep.subr.bf16.mxu0 0
    %1626 = vmatpush1.bf16.msra.mxu0 %v796
    %1627 = vmatprep.subr.bf16.mxu0 0
    %1628 = vmatpush1.bf16.msra.mxu0 %v793
    %1629 = vmatprep.subr.bf16.mxu0 0
    %1630 = vmatpush1.bf16.msra.mxu0 %v790
    %1631 = vmatprep.subr.bf16.mxu0 0
    %1632 = vmatpush1.bf16.msra.mxu0 %v787
    %1633 = vmatprep.subr.bf16.mxu0 0
    %1634 = vmatpush1.bf16.msra.mxu0 %v784
    %1635 = vmatprep.subr.bf16.mxu0 0
    %1636 = vmatpush1.bf16.msra.mxu0 %v781
    %1637 = vmatprep.subr.bf16.mxu0 0
    %1638 = vmatpush1.bf16.msra.mxu0 %v778
    %1639 = vmatprep.subr.bf16.mxu0 0
    %1640 = vmatpush1.bf16.msra.mxu0 %v775
    %1641 = vmatprep.subr.bf16.mxu0 0
    %1642 = vmatpush2.bf16.msra.mxu0 0
    %1643 = vmatprep.subr.bf16.mxu0 0
    %1644 = vmatpush2.bf16.msra.mxu0 0
    %1645 = vmatprep.subr.bf16.mxu0 0
    %1646 = vmatpush2.bf16.msra.mxu0 0
    %1647 = vmatprep.subr.bf16.mxu0 0
    %1648 = vmatpush2.bf16.msra.mxu0 0
    %1649 = vmatprep.subr.bf16.mxu0 0
    %1650 = vmatpush2.bf16.msra.mxu0 0
    %1651 = vmatprep.subr.bf16.mxu0 0
    %1652 = vmatpush2.bf16.msra.mxu0 0
    %1653 = vmatprep.subr.bf16.mxu0 0
    %1654 = vmatpush2.bf16.msra.mxu0 0
    %1655 = vmatprep.subr.bf16.mxu0 0
    %1656 = vmatpush2.bf16.msra.mxu0 0
    %1657 = vmatprep.mubr.bf16.mxu0 0
    %1658 = vmatmul.mubr.bf16.gmra.mxu0 %v1583
    %v1659 = vpop.f32.mrf.mxu0
    %v1660 = vadd.f32 %v673, %v1659
    %v1661 = vpop.f32.mrf.mxu0
    %v1662 = vpop.f32.mrf.mxu0
    %v1663 = vpop.f32.mrf.mxu0
    %1664 = vdwg.mxu0
    %v1665 = vadd.f32 %v559, %v1619
    %v1666 = vxor.u32 %v1665, 2147483648
    %v1667 = vmul.f32 %v1666, 1.442695
    %v1668 = vpow.pop %v1667
    %v1669 = vadd.f32 %v1668, 1.0
    %v1670 = vrcp.pop %v1669
    %v1671 = vmul.f32 1.0, %v1670
    %v1672 = vadd.f32 %v561, %v1621
    %v1673 = vxor.u32 %v1672, 2147483648
    %v1674 = vmul.f32 %v1673, 1.442695
    %v1675 = vpow.pop %v1674
    %v1676 = vadd.f32 %v1675, 1.0
    %v1677 = vrcp.pop %v1676
    %v1678 = vmul.f32 1.0, %v1677
    %v1679 = vmul.f32 %v1671, %v1660
    %v1680 = vadd.f32 %v625, %v1679
    %v1681 = vtanh.pop %v1680
    %v1682 = vsub.f32 1.0, %v1678
    %v1683 = vmul.f32 %v1682, %v1681
    %v1684 = vmul.f32 %v1678, %v1582
    %v1685 = vadd.f32 %v1683, %v1684
    %v1686 = vsel %vm692, 1, 0
    %1687 = vset.pattern.permute.xlu0 0
    %1688 = vperm.xlu0 %1687, %v1686
    %v1689 = vpop.permute.xlu0 %1688
    %vm1690 = vcmp.eq.s32.totalorder %v1689, 1
    %v1691 = vsel %vm1690, %v1685, %v1582
    %s1692 = smul.u32 4, 32
    %s1693 = smul.u32 %s1692, 1
    %s1694 = sshll.u32 %s1693, 4
    %1695 = dma.done [#allocation6], %s1694
    %s1696 = smul.u32 4, 5
    %s1697 = smul.u32 %s1696, 16
    %s1698 = smul.u32 %s1697, 1
    %s1699 = sshll.u32 %s1698, 4
    %1700 = dma.done %s199, %s1699
    %s1701 = smul.u32 4, 16
    %s1702 = smul.u32 %s1701, 1
    %s1703 = sshll.u32 %s1702, 4
    %1704 = dma.done %s211, %s1703
    %s1705 = sshll.u32 %s1702, 4
    %1706 = dma.done %s223, %s1705
    %v1707 = vld [vmem:[#allocation3] sm:$0xf]
    %v1708 = vld [vmem:[#allocation3 + $0x4] sm:$0xf]
    %v1709 = vld [vmem:[#allocation3 + $0x8] sm:$0xf]
    %v1710 = vld [vmem:[#allocation3 + $0xc] sm:$0xf]
    %v1711 = vld [vmem:[#allocation3 + $0x10] sm:$0xf]
    %v1712 = vld [vmem:[#allocation3 + $0x14] sm:$0xf]
    %v1713 = vld [vmem:[#allocation3 + $0x18] sm:$0xf]
    %v1714 = vld [vmem:[#allocation3 + $0x1c] sm:$0xf]
    %v1715 = vld [vmem:[#allocation3 + $0x20] sm:$0xf]
    %v1716 = vld [vmem:[#allocation3 + $0x24] sm:$0xf]
    %v1717 = vld [vmem:[#allocation3 + $0x28] sm:$0xf]
    %v1718 = vld [vmem:[#allocation3 + $0x2c] sm:$0xf]
    %v1719 = vld [vmem:[#allocation3 + $0x30] sm:$0xf]
    %v1720 = vld [vmem:[#allocation3 + $0x34] sm:$0xf]
    %v1721 = vld [vmem:[#allocation3 + $0x38] sm:$0xf]
    %v1722 = vld [vmem:[#allocation3 + $0x3c] sm:$0xf]
    %s1723 = scalar_lea.vmem [#allocation3], 64
    %v1724 = vld [vmem:[%s1723] sm:$0xf]
    %v1725 = vld [vmem:[%s1723 + $0x4] sm:$0xf]
    %v1726 = vld [vmem:[%s1723 + $0x8] sm:$0xf]
    %v1727 = vld [vmem:[%s1723 + $0xc] sm:$0xf]
    %v1728 = vld [vmem:[%s1723 + $0x10] sm:$0xf]
    %v1729 = vld [vmem:[%s1723 + $0x14] sm:$0xf]
    %v1730 = vld [vmem:[%s1723 + $0x18] sm:$0xf]
    %v1731 = vld [vmem:[%s1723 + $0x1c] sm:$0xf]
    %v1732 = vld [vmem:[%s1723 + $0x20] sm:$0xf]
    %v1733 = vld [vmem:[%s1723 + $0x24] sm:$0xf]
    %v1734 = vld [vmem:[%s1723 + $0x28] sm:$0xf]
    %v1735 = vld [vmem:[%s1723 + $0x2c] sm:$0xf]
    %v1736 = vld [vmem:[%s1723 + $0x30] sm:$0xf]
    %v1737 = vld [vmem:[%s1723 + $0x34] sm:$0xf]
    %v1738 = vld [vmem:[%s1723 + $0x38] sm:$0xf]
    %v1739 = vld [vmem:[%s1723 + $0x3c] sm:$0xf]
    %s1740 = scalar_lea.vmem [#allocation3], 128
    %v1741 = vld [vmem:[%s1740] sm:$0xf]
    %v1742 = vld [vmem:[%s1740 + $0x4] sm:$0xf]
    %v1743 = vld [vmem:[%s1740 + $0x8] sm:$0xf]
    %v1744 = vld [vmem:[%s1740 + $0xc] sm:$0xf]
    %v1745 = vld [vmem:[%s1740 + $0x10] sm:$0xf]
    %v1746 = vld [vmem:[%s1740 + $0x14] sm:$0xf]
    %v1747 = vld [vmem:[%s1740 + $0x18] sm:$0xf]
    %v1748 = vld [vmem:[%s1740 + $0x1c] sm:$0xf]
    %v1749 = vld [vmem:[%s1740 + $0x20] sm:$0xf]
    %v1750 = vld [vmem:[%s1740 + $0x24] sm:$0xf]
    %v1751 = vld [vmem:[%s1740 + $0x28] sm:$0xf]
    %v1752 = vld [vmem:[%s1740 + $0x2c] sm:$0xf]
    %v1753 = vld [vmem:[%s1740 + $0x30] sm:$0xf]
    %v1754 = vld [vmem:[%s1740 + $0x34] sm:$0xf]
    %v1755 = vld [vmem:[%s1740 + $0x38] sm:$0xf]
    %v1756 = vld [vmem:[%s1740 + $0x3c] sm:$0xf]
    %s1757 = scalar_lea.vmem [#allocation3], 192
    %v1758 = vld [vmem:[%s1757] sm:$0xf]
    %v1759 = vld [vmem:[%s1757 + $0x4] sm:$0xf]
    %v1760 = vld [vmem:[%s1757 + $0x8] sm:$0xf]
    %v1761 = vld [vmem:[%s1757 + $0xc] sm:$0xf]
    %v1762 = vld [vmem:[%s1757 + $0x10] sm:$0xf]
    %v1763 = vld [vmem:[%s1757 + $0x14] sm:$0xf]
    %v1764 = vld [vmem:[%s1757 + $0x18] sm:$0xf]
    %v1765 = vld [vmem:[%s1757 + $0x1c] sm:$0xf]
    %v1766 = vld [vmem:[%s1757 + $0x20] sm:$0xf]
    %v1767 = vld [vmem:[%s1757 + $0x24] sm:$0xf]
    %v1768 = vld [vmem:[%s1757 + $0x28] sm:$0xf]
    %v1769 = vld [vmem:[%s1757 + $0x2c] sm:$0xf]
    %v1770 = vld [vmem:[%s1757 + $0x30] sm:$0xf]
    %v1771 = vld [vmem:[%s1757 + $0x34] sm:$0xf]
    %v1772 = vld [vmem:[%s1757 + $0x38] sm:$0xf]
    %v1773 = vld [vmem:[%s1757 + $0x3c] sm:$0xf]
    %s1774 = scalar_lea.vmem [#allocation3], 256
    %v1775 = vld [vmem:[%s1774] sm:$0xf]
    %v1776 = vld [vmem:[%s1774 + $0x4] sm:$0xf]
    %v1777 = vld [vmem:[%s1774 + $0x8] sm:$0xf]
    %v1778 = vld [vmem:[%s1774 + $0xc] sm:$0xf]
    %v1779 = vld [vmem:[%s1774 + $0x10] sm:$0xf]
    %v1780 = vld [vmem:[%s1774 + $0x14] sm:$0xf]
    %v1781 = vld [vmem:[%s1774 + $0x18] sm:$0xf]
    %v1782 = vld [vmem:[%s1774 + $0x1c] sm:$0xf]
    %v1783 = vld [vmem:[%s1774 + $0x20] sm:$0xf]
    %v1784 = vld [vmem:[%s1774 + $0x24] sm:$0xf]
    %v1785 = vld [vmem:[%s1774 + $0x28] sm:$0xf]
    %v1786 = vld [vmem:[%s1774 + $0x2c] sm:$0xf]
    %v1787 = vld [vmem:[%s1774 + $0x30] sm:$0xf]
    %v1788 = vld [vmem:[%s1774 + $0x34] sm:$0xf]
    %v1789 = vld [vmem:[%s1774 + $0x38] sm:$0xf]
    %v1790 = vld [vmem:[%s1774 + $0x3c] sm:$0xf]
    %v1791 = vld [vmem:[#allocation7] sm:$0xff]
    %v1792 = vld [vmem:[#allocation2] sm:$0xf]
    %v1793 = vld [vmem:[#allocation2 + $0x4] sm:$0xf]
    %v1794 = vld [vmem:[#allocation2 + $0x8] sm:$0xf]
    %v1795 = vld [vmem:[#allocation2 + $0xc] sm:$0xf]
    %v1796 = vld [vmem:[#allocation2 + $0x10] sm:$0xf]
    %v1797 = vld [vmem:[#allocation2 + $0x14] sm:$0xf]
    %v1798 = vld [vmem:[#allocation2 + $0x18] sm:$0xf]
    %v1799 = vld [vmem:[#allocation2 + $0x1c] sm:$0xf]
    %v1800 = vld [vmem:[#allocation2 + $0x20] sm:$0xf]
    %v1801 = vld [vmem:[#allocation2 + $0x24] sm:$0xf]
    %v1802 = vld [vmem:[#allocation2 + $0x28] sm:$0xf]
    %v1803 = vld [vmem:[#allocation2 + $0x2c] sm:$0xf]
    %v1804 = vld [vmem:[#allocation2 + $0x30] sm:$0xf]
    %v1805 = vld [vmem:[#allocation2 + $0x34] sm:$0xf]
    %v1806 = vld [vmem:[#allocation2 + $0x38] sm:$0xf]
    %v1807 = vld [vmem:[#allocation2 + $0x3c] sm:$0xf]
    %v1808 = vld [vmem:[#allocation2 + $0x40] sm:$0xf]
    %v1809 = vld [vmem:[#allocation2 + $0x44] sm:$0xf]
    %v1810 = vld [vmem:[#allocation2 + $0x48] sm:$0xf]
    %v1811 = vld [vmem:[#allocation2 + $0x4c] sm:$0xf]
    %v1812 = vld [vmem:[#allocation2 + $0x50] sm:$0xf]
    %v1813 = vld [vmem:[#allocation2 + $0x54] sm:$0xf]
    %v1814 = vld [vmem:[#allocation2 + $0x58] sm:$0xf]
    %v1815 = vld [vmem:[#allocation2 + $0x5c] sm:$0xf]
    %v1816 = vld [vmem:[#allocation2 + $0x60] sm:$0xf]
    %v1817 = vld [vmem:[#allocation2 + $0x64] sm:$0xf]
    %v1818 = vld [vmem:[#allocation2 + $0x68] sm:$0xf]
    %v1819 = vld [vmem:[#allocation2 + $0x6c] sm:$0xf]
    %v1820 = vld [vmem:[#allocation2 + $0x70] sm:$0xf]
    %v1821 = vld [vmem:[#allocation2 + $0x74] sm:$0xf]
    %v1822 = vld [vmem:[#allocation2 + $0x78] sm:$0xf]
    %v1823 = vld [vmem:[#allocation2 + $0x7c] sm:$0xf]
    %v1824 = vpack.c.bf16 %v1791, %v1791
    %v1825 = vpack.c.bf16 %v1691, %v1691
    %v1858 = vunpack.c.l.b16 %v1792
    %v1859 = vunpack.c.l.b16 %v1793
    %v1860 = vunpack.c.l.b16 %v1794
    %v1861 = vunpack.c.l.b16 %v1795
    %v1862 = vunpack.c.l.b16 %v1796
    %v1863 = vunpack.c.l.b16 %v1797
    %v1864 = vunpack.c.l.b16 %v1798
    %v1865 = vunpack.c.l.b16 %v1799
    %v1866 = vunpack.c.l.b16 %v1800
    %v1867 = vunpack.c.l.b16 %v1801
    %v1868 = vunpack.c.l.b16 %v1802
    %v1869 = vunpack.c.l.b16 %v1803
    %v1870 = vunpack.c.l.b16 %v1804
    %v1871 = vunpack.c.l.b16 %v1805
    %v1872 = vunpack.c.l.b16 %v1806
    %v1873 = vunpack.c.l.b16 %v1807
    %v1874 = vunpack.c.l.b16 %v1808
    %v1875 = vunpack.c.l.b16 %v1809
    %v1876 = vunpack.c.l.b16 %v1810
    %v1877 = vunpack.c.l.b16 %v1811
    %v1878 = vunpack.c.l.b16 %v1812
    %v1879 = vunpack.c.l.b16 %v1813
    %v1880 = vunpack.c.l.b16 %v1814
    %v1881 = vunpack.c.l.b16 %v1815
    %v1882 = vunpack.c.l.b16 %v1816
    %v1883 = vunpack.c.l.b16 %v1817
    %v1884 = vunpack.c.l.b16 %v1818
    %v1885 = vunpack.c.l.b16 %v1819
    %v1886 = vunpack.c.l.b16 %v1820
    %v1887 = vunpack.c.l.b16 %v1821
    %v1888 = vunpack.c.l.b16 %v1822
    %v1889 = vunpack.c.l.b16 %v1823
    %v1890 = vpack.c.b16 %v1859, %v1858
    %v1891 = vpack.c.b16 %v1861, %v1860
    %v1892 = vpack.c.b16 %v1863, %v1862
    %v1893 = vpack.c.b16 %v1865, %v1864
    %v1894 = vpack.c.b16 %v1867, %v1866
    %v1895 = vpack.c.b16 %v1869, %v1868
    %v1896 = vpack.c.b16 %v1871, %v1870
    %v1897 = vpack.c.b16 %v1873, %v1872
    %v1898 = vpack.c.b16 %v1875, %v1874
    %v1899 = vpack.c.b16 %v1877, %v1876
    %v1900 = vpack.c.b16 %v1879, %v1878
    %v1901 = vpack.c.b16 %v1881, %v1880
    %v1902 = vpack.c.b16 %v1883, %v1882
    %v1903 = vpack.c.b16 %v1885, %v1884
    %v1904 = vpack.c.b16 %v1887, %v1886
    %v1905 = vpack.c.b16 %v1889, %v1888
    %1922 = vmatprep.subr.bf16.mxu0 0
    %1923 = vmatpush1.bf16.msra.mxu0 %v1897
    %1924 = vmatprep.subr.bf16.mxu0 0
    %1925 = vmatpush1.bf16.msra.mxu0 %v1896
    %1926 = vmatprep.subr.bf16.mxu0 0
    %1927 = vmatpush1.bf16.msra.mxu0 %v1895
    %1928 = vmatprep.subr.bf16.mxu0 0
    %1929 = vmatpush1.bf16.msra.mxu0 %v1894
    %1930 = vmatprep.subr.bf16.mxu0 0
    %1931 = vmatpush1.bf16.msra.mxu0 %v1893
    %1932 = vmatprep.subr.bf16.mxu0 0
    %1933 = vmatpush1.bf16.msra.mxu0 %v1892
    %1934 = vmatprep.subr.bf16.mxu0 0
    %1935 = vmatpush1.bf16.msra.mxu0 %v1891
    %1936 = vmatprep.subr.bf16.mxu0 0
    %1937 = vmatpush1.bf16.msra.mxu0 %v1890
    %1938 = vmatprep.subr.bf16.mxu0 0
    %1939 = vmatpush2.bf16.msra.mxu0 %v1905
    %1940 = vmatprep.subr.bf16.mxu0 0
    %1941 = vmatpush2.bf16.msra.mxu0 %v1904
    %1942 = vmatprep.subr.bf16.mxu0 0
    %1943 = vmatpush2.bf16.msra.mxu0 %v1903
    %1944 = vmatprep.subr.bf16.mxu0 0
    %1945 = vmatpush2.bf16.msra.mxu0 %v1902
    %1946 = vmatprep.subr.bf16.mxu0 0
    %1947 = vmatpush2.bf16.msra.mxu0 %v1901
    %1948 = vmatprep.subr.bf16.mxu0 0
    %1949 = vmatpush2.bf16.msra.mxu0 %v1900
    %1950 = vmatprep.subr.bf16.mxu0 0
    %1951 = vmatpush2.bf16.msra.mxu0 %v1899
    %1952 = vmatprep.subr.bf16.mxu0 0
    %1953 = vmatpush2.bf16.msra.mxu0 %v1898
    %1954 = vmatprep.mubr.bf16.mxu0 %v1825
    %1955 = vmatmul.mubr.bf16.gmra.mxu0 %v1824
    %v1956 = vpop.f32.mrf.mxu0
    %v1957 = vadd.f32 0.0, %v1956
    %v1958 = vpop.f32.mrf.mxu0
    %v1959 = vpop.f32.mrf.mxu0
    %v1960 = vpop.f32.mrf.mxu0
    %1961 = vdwg.mxu0
    %v1962 = vmax.f32 %v1957, 0.0
    %v1963 = vpack.c.bf16 %v1962, %v1962
    %v1980 = vunpack.c.l.b16 %v1707
    %v1981 = vunpack.c.l.b16 %v1708
    %v1982 = vunpack.c.l.b16 %v1709
    %v1983 = vunpack.c.l.b16 %v1710
    %v1984 = vunpack.c.l.b16 %v1711
    %v1985 = vunpack.c.l.b16 %v1712
    %v1986 = vunpack.c.l.b16 %v1713
    %v1987 = vunpack.c.l.b16 %v1714
    %v1988 = vunpack.c.l.b16 %v1715
    %v1989 = vunpack.c.l.b16 %v1716
    %v1990 = vunpack.c.l.b16 %v1717
    %v1991 = vunpack.c.l.b16 %v1718
    %v1992 = vunpack.c.l.b16 %v1719
    %v1993 = vunpack.c.l.b16 %v1720
    %v1994 = vunpack.c.l.b16 %v1721
    %v1995 = vunpack.c.l.b16 %v1722
    %v1996 = vpack.c.b16 %v1981, %v1980
    %v1997 = vpack.c.b16 %v1983, %v1982
    %v1998 = vpack.c.b16 %v1985, %v1984
    %v1999 = vpack.c.b16 %v1987, %v1986
    %v2000 = vpack.c.b16 %v1989, %v1988
    %v2001 = vpack.c.b16 %v1991, %v1990
    %v2002 = vpack.c.b16 %v1993, %v1992
    %v2003 = vpack.c.b16 %v1995, %v1994
    %2012 = vmatprep.subr.bf16.mxu0 0
    %2013 = vmatpush1.bf16.msra.mxu0 %v2003
    %2014 = vmatprep.subr.bf16.mxu0 0
    %2015 = vmatpush1.bf16.msra.mxu0 %v2002
    %2016 = vmatprep.subr.bf16.mxu0 0
    %2017 = vmatpush1.bf16.msra.mxu0 %v2001
    %2018 = vmatprep.subr.bf16.mxu0 0
    %2019 = vmatpush1.bf16.msra.mxu0 %v2000
    %2020 = vmatprep.subr.bf16.mxu0 0
    %2021 = vmatpush1.bf16.msra.mxu0 %v1999
    %2022 = vmatprep.subr.bf16.mxu0 0
    %2023 = vmatpush1.bf16.msra.mxu0 %v1998
    %2024 = vmatprep.subr.bf16.mxu0 0
    %2025 = vmatpush1.bf16.msra.mxu0 %v1997
    %2026 = vmatprep.subr.bf16.mxu0 0
    %2027 = vmatpush1.bf16.msra.mxu0 %v1996
    %2028 = vmatprep.subr.bf16.mxu0 0
    %2029 = vmatpush2.bf16.msra.mxu0 0
    %2030 = vmatprep.subr.bf16.mxu0 0
    %2031 = vmatpush2.bf16.msra.mxu0 0
    %2032 = vmatprep.subr.bf16.mxu0 0
    %2033 = vmatpush2.bf16.msra.mxu0 0
    %2034 = vmatprep.subr.bf16.mxu0 0
    %2035 = vmatpush2.bf16.msra.mxu0 0
    %2036 = vmatprep.subr.bf16.mxu0 0
    %2037 = vmatpush2.bf16.msra.mxu0 0
    %2038 = vmatprep.subr.bf16.mxu0 0
    %2039 = vmatpush2.bf16.msra.mxu0 0
    %2040 = vmatprep.subr.bf16.mxu0 0
    %2041 = vmatpush2.bf16.msra.mxu0 0
    %2042 = vmatprep.subr.bf16.mxu0 0
    %2043 = vmatpush2.bf16.msra.mxu0 0
    %2044 = vmatprep.mubr.bf16.mxu0 0
    %2045 = vmatmul.mubr.bf16.gmra.mxu0 %v1963
    %v2046 = vpop.f32.mrf.mxu0
    %v2047 = vadd.f32 0.0, %v2046
    %v2048 = vpop.f32.mrf.mxu0
    %v2049 = vpop.f32.mrf.mxu0
    %v2050 = vpop.f32.mrf.mxu0
    %2051 = vdwg.mxu0
    %v2052 = vmax.f32 %v2047, 0.0
    %v2053 = vpack.c.bf16 %v2052, %v2052
    %v2070 = vunpack.c.l.b16 %v1724
    %v2071 = vunpack.c.l.b16 %v1725
    %v2072 = vunpack.c.l.b16 %v1726
    %v2073 = vunpack.c.l.b16 %v1727
    %v2074 = vunpack.c.l.b16 %v1728
    %v2075 = vunpack.c.l.b16 %v1729
    %v2076 = vunpack.c.l.b16 %v1730
    %v2077 = vunpack.c.l.b16 %v1731
    %v2078 = vunpack.c.l.b16 %v1732
    %v2079 = vunpack.c.l.b16 %v1733
    %v2080 = vunpack.c.l.b16 %v1734
    %v2081 = vunpack.c.l.b16 %v1735
    %v2082 = vunpack.c.l.b16 %v1736
    %v2083 = vunpack.c.l.b16 %v1737
    %v2084 = vunpack.c.l.b16 %v1738
    %v2085 = vunpack.c.l.b16 %v1739
    %v2086 = vpack.c.b16 %v2071, %v2070
    %v2087 = vpack.c.b16 %v2073, %v2072
    %v2088 = vpack.c.b16 %v2075, %v2074
    %v2089 = vpack.c.b16 %v2077, %v2076
    %v2090 = vpack.c.b16 %v2079, %v2078
    %v2091 = vpack.c.b16 %v2081, %v2080
    %v2092 = vpack.c.b16 %v2083, %v2082
    %v2093 = vpack.c.b16 %v2085, %v2084
    %2102 = vmatprep.subr.bf16.mxu0 0
    %2103 = vmatpush1.bf16.msra.mxu0 %v2093
    %2104 = vmatprep.subr.bf16.mxu0 0
    %2105 = vmatpush1.bf16.msra.mxu0 %v2092
    %2106 = vmatprep.subr.bf16.mxu0 0
    %2107 = vmatpush1.bf16.msra.mxu0 %v2091
    %2108 = vmatprep.subr.bf16.mxu0 0
    %2109 = vmatpush1.bf16.msra.mxu0 %v2090
    %2110 = vmatprep.subr.bf16.mxu0 0
    %2111 = vmatpush1.bf16.msra.mxu0 %v2089
    %2112 = vmatprep.subr.bf16.mxu0 0
    %2113 = vmatpush1.bf16.msra.mxu0 %v2088
    %2114 = vmatprep.subr.bf16.mxu0 0
    %2115 = vmatpush1.bf16.msra.mxu0 %v2087
    %2116 = vmatprep.subr.bf16.mxu0 0
    %2117 = vmatpush1.bf16.msra.mxu0 %v2086
    %2118 = vmatprep.subr.bf16.mxu0 0
    %2119 = vmatpush2.bf16.msra.mxu0 0
    %2120 = vmatprep.subr.bf16.mxu0 0
    %2121 = vmatpush2.bf16.msra.mxu0 0
    %2122 = vmatprep.subr.bf16.mxu0 0
    %2123 = vmatpush2.bf16.msra.mxu0 0
    %2124 = vmatprep.subr.bf16.mxu0 0
    %2125 = vmatpush2.bf16.msra.mxu0 0
    %2126 = vmatprep.subr.bf16.mxu0 0
    %2127 = vmatpush2.bf16.msra.mxu0 0
    %2128 = vmatprep.subr.bf16.mxu0 0
    %2129 = vmatpush2.bf16.msra.mxu0 0
    %2130 = vmatprep.subr.bf16.mxu0 0
    %2131 = vmatpush2.bf16.msra.mxu0 0
    %2132 = vmatprep.subr.bf16.mxu0 0
    %2133 = vmatpush2.bf16.msra.mxu0 0
    %2134 = vmatprep.mubr.bf16.mxu0 0
    %2135 = vmatmul.mubr.bf16.gmra.mxu0 %v2053
    %v2136 = vpop.f32.mrf.mxu0
    %v2137 = vadd.f32 0.0, %v2136
    %v2138 = vpop.f32.mrf.mxu0
    %v2139 = vpop.f32.mrf.mxu0
    %v2140 = vpop.f32.mrf.mxu0
    %2141 = vdwg.mxu0
    %v2142 = vmax.f32 %v2137, 0.0
    %v2143 = vld [vmem:[#allocation5] sm:$0xf]
    %v2144 = vld [vmem:[#allocation5 + $0x4] sm:$0xf]
    %v2145 = vld [vmem:[#allocation5 + $0x8] sm:$0xf]
    %v2146 = vld [vmem:[#allocation5 + $0xc] sm:$0xf]
    %v2147 = vld [vmem:[#allocation5 + $0x10] sm:$0xf]
    %v2148 = vld [vmem:[#allocation5 + $0x14] sm:$0xf]
    %v2149 = vld [vmem:[#allocation5 + $0x18] sm:$0xf]
    %v2150 = vld [vmem:[#allocation5 + $0x1c] sm:$0xf]
    %v2151 = vld [vmem:[#allocation5 + $0x20] sm:$0xf]
    %v2152 = vld [vmem:[#allocation5 + $0x24] sm:$0xf]
    %v2153 = vld [vmem:[#allocation5 + $0x28] sm:$0xf]
    %v2154 = vld [vmem:[#allocation5 + $0x2c] sm:$0xf]
    %v2155 = vld [vmem:[#allocation5 + $0x30] sm:$0xf]
    %v2156 = vld [vmem:[#allocation5 + $0x34] sm:$0xf]
    %v2157 = vld [vmem:[#allocation5 + $0x38] sm:$0xf]
    %v2158 = vld [vmem:[#allocation5 + $0x3c] sm:$0xf]
    %v2159 = vpack.c.bf16 %v2142, %v2142
    %v2160 = vld [vmem:[#allocation18] sm:$0x1]
    %v2162 = vlaneseq
    %v2163 = vshrl.u32 %v2162, 7
    %v2164 = vsub.s32 0, %v2163
    %v2165 = vrot.slane %v2160, %v2164
    %v2183 = vunpack.c.l.b16 %v2143
    %v2184 = vunpack.c.l.b16 %v2144
    %v2185 = vunpack.c.l.b16 %v2145
    %v2186 = vunpack.c.l.b16 %v2146
    %v2187 = vunpack.c.l.b16 %v2147
    %v2188 = vunpack.c.l.b16 %v2148
    %v2189 = vunpack.c.l.b16 %v2149
    %v2190 = vunpack.c.l.b16 %v2150
    %v2191 = vunpack.c.l.b16 %v2151
    %v2192 = vunpack.c.l.b16 %v2152
    %v2193 = vunpack.c.l.b16 %v2153
    %v2194 = vunpack.c.l.b16 %v2154
    %v2195 = vunpack.c.l.b16 %v2155
    %v2196 = vunpack.c.l.b16 %v2156
    %v2197 = vunpack.c.l.b16 %v2157
    %v2198 = vunpack.c.l.b16 %v2158
    %v2199 = vpack.c.b16 %v2184, %v2183
    %v2200 = vpack.c.b16 %v2186, %v2185
    %v2201 = vpack.c.b16 %v2188, %v2187
    %v2202 = vpack.c.b16 %v2190, %v2189
    %v2203 = vpack.c.b16 %v2192, %v2191
    %v2204 = vpack.c.b16 %v2194, %v2193
    %v2205 = vpack.c.b16 %v2196, %v2195
    %v2206 = vpack.c.b16 %v2198, %v2197
    %2215 = vmatprep.subr.bf16.mxu0 0
    %2216 = vmatpush1.bf16.msra.mxu0 %v2206
    %2217 = vmatprep.subr.bf16.mxu0 0
    %2218 = vmatpush1.bf16.msra.mxu0 %v2205
    %2219 = vmatprep.subr.bf16.mxu0 0
    %2220 = vmatpush1.bf16.msra.mxu0 %v2204
    %2221 = vmatprep.subr.bf16.mxu0 0
    %2222 = vmatpush1.bf16.msra.mxu0 %v2203
    %2223 = vmatprep.subr.bf16.mxu0 0
    %2224 = vmatpush1.bf16.msra.mxu0 %v2202
    %2225 = vmatprep.subr.bf16.mxu0 0
    %2226 = vmatpush1.bf16.msra.mxu0 %v2201
    %2227 = vmatprep.subr.bf16.mxu0 0
    %2228 = vmatpush1.bf16.msra.mxu0 %v2200
    %2229 = vmatprep.subr.bf16.mxu0 0
    %2230 = vmatpush1.bf16.msra.mxu0 %v2199
    %2231 = vmatprep.subr.bf16.mxu0 0
    %2232 = vmatpush2.bf16.msra.mxu0 0
    %2233 = vmatprep.subr.bf16.mxu0 0
    %2234 = vmatpush2.bf16.msra.mxu0 0
    %2235 = vmatprep.subr.bf16.mxu0 0
    %2236 = vmatpush2.bf16.msra.mxu0 0
    %2237 = vmatprep.subr.bf16.mxu0 0
    %2238 = vmatpush2.bf16.msra.mxu0 0
    %2239 = vmatprep.subr.bf16.mxu0 0
    %2240 = vmatpush2.bf16.msra.mxu0 0
    %2241 = vmatprep.subr.bf16.mxu0 0
    %2242 = vmatpush2.bf16.msra.mxu0 0
    %2243 = vmatprep.subr.bf16.mxu0 0
    %2244 = vmatpush2.bf16.msra.mxu0 0
    %2245 = vmatprep.subr.bf16.mxu0 0
    %2246 = vmatpush2.bf16.msra.mxu0 0
    %2247 = vmatprep.mubr.bf16.mxu0 0
    %2248 = vmatmul.mubr.bf16.gmra.mxu0 %v2159
    %v2249 = vpop.f32.mrf.mxu0
    %v2250 = vadd.f32 %v2165, %v2249
    %v2251 = vpop.f32.mrf.mxu0
    %v2252 = vpop.f32.mrf.mxu0
    %v2253 = vpop.f32.mrf.mxu0
    %2254 = vdwg.mxu0
    %v2255 = vld [vmem:[#allocation10] sm:$0xff]
    %v2256 = vmul.f32 %v2250, 0.5
    %v2257 = vmul.f32 %v2256, 1.442695
    %v2258 = vpow.pop %v2257
    %2260 = vrot.lane.b32.xlu0 %v2258, 120
    %v2261 = vpop.permute.xlu0 %2260
    %v2263 = vmul.f32 %v2255, %v2261
    %v2264 = vadd.f32 %v2263, %v2250
    %2266 = vrot.lane.b32.xlu0 %v2264, 16
    %v2267 = vpop.permute.xlu0 %2266
    %vm2269 = vcmask 130048
    %v2270 = vsel %vm2269, %v2250, %v2267
    %vm2271 = vcmask 195584
    %v2272 = vsel %vm2271, %v2270, 0.0
    %2273 = vst [vmem:[#allocation19] sm:$0xff] %v2272
    %v2274 = vpack.c.bf16 %v2272, %v2272
    %v2275 = vld [vmem:[#allocation4] sm:$0xf]
    %v2276 = vld [vmem:[#allocation4 + $0x4] sm:$0xf]
    %v2277 = vld [vmem:[#allocation4 + $0x8] sm:$0xf]
    %v2278 = vld [vmem:[#allocation4 + $0xc] sm:$0xf]
    %v2279 = vld [vmem:[#allocation4 + $0x10] sm:$0xf]
    %v2280 = vld [vmem:[#allocation4 + $0x14] sm:$0xf]
    %v2281 = vld [vmem:[#allocation4 + $0x18] sm:$0xf]
    %v2282 = vld [vmem:[#allocation4 + $0x1c] sm:$0xf]
    %v2283 = vld [vmem:[#allocation4 + $0x20] sm:$0xf]
    %v2284 = vld [vmem:[#allocation4 + $0x24] sm:$0xf]
    %v2285 = vld [vmem:[#allocation4 + $0x28] sm:$0xf]
    %v2286 = vld [vmem:[#allocation4 + $0x2c] sm:$0xf]
    %v2287 = vld [vmem:[#allocation4 + $0x30] sm:$0xf]
    %v2288 = vld [vmem:[#allocation4 + $0x34] sm:$0xf]
    %v2289 = vld [vmem:[#allocation4 + $0x38] sm:$0xf]
    %v2290 = vld [vmem:[#allocation4 + $0x3c] sm:$0xf]
    %v2307 = vunpack.c.l.b16 %v2275
    %v2308 = vunpack.c.l.b16 %v2276
    %v2309 = vunpack.c.l.b16 %v2277
    %v2310 = vunpack.c.l.b16 %v2278
    %v2311 = vunpack.c.l.b16 %v2279
    %v2312 = vunpack.c.l.b16 %v2280
    %v2313 = vunpack.c.l.b16 %v2281
    %v2314 = vunpack.c.l.b16 %v2282
    %v2315 = vunpack.c.l.b16 %v2283
    %v2316 = vunpack.c.l.b16 %v2284
    %v2317 = vunpack.c.l.b16 %v2285
    %v2318 = vunpack.c.l.b16 %v2286
    %v2319 = vunpack.c.l.b16 %v2287
    %v2320 = vunpack.c.l.b16 %v2288
    %v2321 = vunpack.c.l.b16 %v2289
    %v2322 = vunpack.c.l.b16 %v2290
    %v2323 = vpack.c.b16 %v2308, %v2307
    %v2324 = vpack.c.b16 %v2310, %v2309
    %v2325 = vpack.c.b16 %v2312, %v2311
    %v2326 = vpack.c.b16 %v2314, %v2313
    %v2327 = vpack.c.b16 %v2316, %v2315
    %v2328 = vpack.c.b16 %v2318, %v2317
    %v2329 = vpack.c.b16 %v2320, %v2319
    %v2330 = vpack.c.b16 %v2322, %v2321
    %2339 = vmatprep.subr.bf16.mxu0 0
    %2340 = vmatpush1.bf16.msra.mxu0 %v2330
    %2341 = vmatprep.subr.bf16.mxu0 0
    %2342 = vmatpush1.bf16.msra.mxu0 %v2329
    %2343 = vmatprep.subr.bf16.mxu0 0
    %2344 = vmatpush1.bf16.msra.mxu0 %v2328
    %2345 = vmatprep.subr.bf16.mxu0 0
    %2346 = vmatpush1.bf16.msra.mxu0 %v2327
    %2347 = vmatprep.subr.bf16.mxu0 0
    %2348 = vmatpush1.bf16.msra.mxu0 %v2326
    %2349 = vmatprep.subr.bf16.mxu0 0
    %2350 = vmatpush1.bf16.msra.mxu0 %v2325
    %2351 = vmatprep.subr.bf16.mxu0 0
    %2352 = vmatpush1.bf16.msra.mxu0 %v2324
    %2353 = vmatprep.subr.bf16.mxu0 0
    %2354 = vmatpush1.bf16.msra.mxu0 %v2323
    %2355 = vmatprep.subr.bf16.mxu0 0
    %2356 = vmatpush2.bf16.msra.mxu0 0
    %2357 = vmatprep.subr.bf16.mxu0 0
    %2358 = vmatpush2.bf16.msra.mxu0 0
    %2359 = vmatprep.subr.bf16.mxu0 0
    %2360 = vmatpush2.bf16.msra.mxu0 0
    %2361 = vmatprep.subr.bf16.mxu0 0
    %2362 = vmatpush2.bf16.msra.mxu0 0
    %2363 = vmatprep.subr.bf16.mxu0 0
    %2364 = vmatpush2.bf16.msra.mxu0 0
    %2365 = vmatprep.subr.bf16.mxu0 0
    %2366 = vmatpush2.bf16.msra.mxu0 0
    %2367 = vmatprep.subr.bf16.mxu0 0
    %2368 = vmatpush2.bf16.msra.mxu0 0
    %2369 = vmatprep.subr.bf16.mxu0 0
    %2370 = vmatpush2.bf16.msra.mxu0 0
    %2371 = vmatprep.mubr.bf16.mxu0 0
    %2372 = vmatmul.mubr.bf16.gmra.mxu0 %v1825
    %v2373 = vpop.f32.mrf.mxu0
    %v2374 = vadd.f32 0.0, %v2373
    %v2375 = vpop.f32.mrf.mxu0
    %v2376 = vpop.f32.mrf.mxu0
    %v2377 = vpop.f32.mrf.mxu0
    %2378 = vdwg.mxu0
    %v2395 = vunpack.c.l.b16 %v1775
    %v2396 = vunpack.c.l.b16 %v1776
    %v2397 = vunpack.c.l.b16 %v1777
    %v2398 = vunpack.c.l.b16 %v1778
    %v2399 = vunpack.c.l.b16 %v1779
    %v2400 = vunpack.c.l.b16 %v1780
    %v2401 = vunpack.c.l.b16 %v1781
    %v2402 = vunpack.c.l.b16 %v1782
    %v2403 = vunpack.c.l.b16 %v1783
    %v2404 = vunpack.c.l.b16 %v1784
    %v2405 = vunpack.c.l.b16 %v1785
    %v2406 = vunpack.c.l.b16 %v1786
    %v2407 = vunpack.c.l.b16 %v1787
    %v2408 = vunpack.c.l.b16 %v1788
    %v2409 = vunpack.c.l.b16 %v1789
    %v2410 = vunpack.c.l.b16 %v1790
    %v2411 = vpack.c.b16 %v2396, %v2395
    %v2412 = vpack.c.b16 %v2398, %v2397
    %v2413 = vpack.c.b16 %v2400, %v2399
    %v2414 = vpack.c.b16 %v2402, %v2401
    %v2415 = vpack.c.b16 %v2404, %v2403
    %v2416 = vpack.c.b16 %v2406, %v2405
    %v2417 = vpack.c.b16 %v2408, %v2407
    %v2418 = vpack.c.b16 %v2410, %v2409
    %2427 = vmatprep.subr.bf16.mxu0 0
    %2428 = vmatpush1.bf16.msra.mxu0 %v2418
    %2429 = vmatprep.subr.bf16.mxu0 0
    %2430 = vmatpush1.bf16.msra.mxu0 %v2417
    %2431 = vmatprep.subr.bf16.mxu0 0
    %2432 = vmatpush1.bf16.msra.mxu0 %v2416
    %2433 = vmatprep.subr.bf16.mxu0 0
    %2434 = vmatpush1.bf16.msra.mxu0 %v2415
    %2435 = vmatprep.subr.bf16.mxu0 0
    %2436 = vmatpush1.bf16.msra.mxu0 %v2414
    %2437 = vmatprep.subr.bf16.mxu0 0
    %2438 = vmatpush1.bf16.msra.mxu0 %v2413
    %2439 = vmatprep.subr.bf16.mxu0 0
    %2440 = vmatpush1.bf16.msra.mxu0 %v2412
    %2441 = vmatprep.subr.bf16.mxu0 0
    %2442 = vmatpush1.bf16.msra.mxu0 %v2411
    %2443 = vmatprep.subr.bf16.mxu0 0
    %2444 = vmatpush2.bf16.msra.mxu0 0
    %2445 = vmatprep.subr.bf16.mxu0 0
    %2446 = vmatpush2.bf16.msra.mxu0 0
    %2447 = vmatprep.subr.bf16.mxu0 0
    %2448 = vmatpush2.bf16.msra.mxu0 0
    %2449 = vmatprep.subr.bf16.mxu0 0
    %2450 = vmatpush2.bf16.msra.mxu0 0
    %2451 = vmatprep.subr.bf16.mxu0 0
    %2452 = vmatpush2.bf16.msra.mxu0 0
    %2453 = vmatprep.subr.bf16.mxu0 0
    %2454 = vmatpush2.bf16.msra.mxu0 0
    %2455 = vmatprep.subr.bf16.mxu0 0
    %2456 = vmatpush2.bf16.msra.mxu0 0
    %2457 = vmatprep.subr.bf16.mxu0 0
    %2458 = vmatpush2.bf16.msra.mxu0 0
    %2459 = vmatprep.mubr.bf16.mxu0 0
    %2460 = vmatmul.mubr.bf16.gmra.mxu0 %v2274
    %v2461 = vpop.f32.mrf.mxu0
    %v2462 = vadd.f32 %v2374, %v2461
    %v2463 = vpop.f32.mrf.mxu0
    %v2464 = vpop.f32.mrf.mxu0
    %v2465 = vpop.f32.mrf.mxu0
    %2466 = vdwg.mxu0
    %v2467 = vmax.f32 %v2462, 0.0
    %v2468 = vpack.c.bf16 %v2467, %v2467
    %v2485 = vunpack.c.l.b16 %v1741
    %v2486 = vunpack.c.l.b16 %v1742
    %v2487 = vunpack.c.l.b16 %v1743
    %v2488 = vunpack.c.l.b16 %v1744
    %v2489 = vunpack.c.l.b16 %v1745
    %v2490 = vunpack.c.l.b16 %v1746
    %v2491 = vunpack.c.l.b16 %v1747
    %v2492 = vunpack.c.l.b16 %v1748
    %v2493 = vunpack.c.l.b16 %v1749
    %v2494 = vunpack.c.l.b16 %v1750
    %v2495 = vunpack.c.l.b16 %v1751
    %v2496 = vunpack.c.l.b16 %v1752
    %v2497 = vunpack.c.l.b16 %v1753
    %v2498 = vunpack.c.l.b16 %v1754
    %v2499 = vunpack.c.l.b16 %v1755
    %v2500 = vunpack.c.l.b16 %v1756
    %v2501 = vpack.c.b16 %v2486, %v2485
    %v2502 = vpack.c.b16 %v2488, %v2487
    %v2503 = vpack.c.b16 %v2490, %v2489
    %v2504 = vpack.c.b16 %v2492, %v2491
    %v2505 = vpack.c.b16 %v2494, %v2493
    %v2506 = vpack.c.b16 %v2496, %v2495
    %v2507 = vpack.c.b16 %v2498, %v2497
    %v2508 = vpack.c.b16 %v2500, %v2499
    %2517 = vmatprep.subr.bf16.mxu0 0
    %2518 = vmatpush1.bf16.msra.mxu0 %v2508
    %2519 = vmatprep.subr.bf16.mxu0 0
    %2520 = vmatpush1.bf16.msra.mxu0 %v2507
    %2521 = vmatprep.subr.bf16.mxu0 0
    %2522 = vmatpush1.bf16.msra.mxu0 %v2506
    %2523 = vmatprep.subr.bf16.mxu0 0
    %2524 = vmatpush1.bf16.msra.mxu0 %v2505
    %2525 = vmatprep.subr.bf16.mxu0 0
    %2526 = vmatpush1.bf16.msra.mxu0 %v2504
    %2527 = vmatprep.subr.bf16.mxu0 0
    %2528 = vmatpush1.bf16.msra.mxu0 %v2503
    %2529 = vmatprep.subr.bf16.mxu0 0
    %2530 = vmatpush1.bf16.msra.mxu0 %v2502
    %2531 = vmatprep.subr.bf16.mxu0 0
    %2532 = vmatpush1.bf16.msra.mxu0 %v2501
    %2533 = vmatprep.subr.bf16.mxu0 0
    %2534 = vmatpush2.bf16.msra.mxu0 0
    %2535 = vmatprep.subr.bf16.mxu0 0
    %2536 = vmatpush2.bf16.msra.mxu0 0
    %2537 = vmatprep.subr.bf16.mxu0 0
    %2538 = vmatpush2.bf16.msra.mxu0 0
    %2539 = vmatprep.subr.bf16.mxu0 0
    %2540 = vmatpush2.bf16.msra.mxu0 0
    %2541 = vmatprep.subr.bf16.mxu0 0
    %2542 = vmatpush2.bf16.msra.mxu0 0
    %2543 = vmatprep.subr.bf16.mxu0 0
    %2544 = vmatpush2.bf16.msra.mxu0 0
    %2545 = vmatprep.subr.bf16.mxu0 0
    %2546 = vmatpush2.bf16.msra.mxu0 0
    %2547 = vmatprep.subr.bf16.mxu0 0
    %2548 = vmatpush2.bf16.msra.mxu0 0
    %2549 = vmatprep.mubr.bf16.mxu0 0
    %2550 = vmatmul.mubr.bf16.gmra.mxu0 %v2468
    %v2551 = vpop.f32.mrf.mxu0
    %v2552 = vadd.f32 0.0, %v2551
    %v2553 = vpop.f32.mrf.mxu0
    %v2554 = vpop.f32.mrf.mxu0
    %v2555 = vpop.f32.mrf.mxu0
    %2556 = vdwg.mxu0
    %v2557 = vmax.f32 %v2552, 0.0
    %v2558 = vpack.c.bf16 %v2557, %v2557
    %v2575 = vunpack.c.l.b16 %v1758
    %v2576 = vunpack.c.l.b16 %v1759
    %v2577 = vunpack.c.l.b16 %v1760
    %v2578 = vunpack.c.l.b16 %v1761
    %v2579 = vunpack.c.l.b16 %v1762
    %v2580 = vunpack.c.l.b16 %v1763
    %v2581 = vunpack.c.l.b16 %v1764
    %v2582 = vunpack.c.l.b16 %v1765
    %v2583 = vunpack.c.l.b16 %v1766
    %v2584 = vunpack.c.l.b16 %v1767
    %v2585 = vunpack.c.l.b16 %v1768
    %v2586 = vunpack.c.l.b16 %v1769
    %v2587 = vunpack.c.l.b16 %v1770
    %v2588 = vunpack.c.l.b16 %v1771
    %v2589 = vunpack.c.l.b16 %v1772
    %v2590 = vunpack.c.l.b16 %v1773
    %v2591 = vpack.c.b16 %v2576, %v2575
    %v2592 = vpack.c.b16 %v2578, %v2577
    %v2593 = vpack.c.b16 %v2580, %v2579
    %v2594 = vpack.c.b16 %v2582, %v2581
    %v2595 = vpack.c.b16 %v2584, %v2583
    %v2596 = vpack.c.b16 %v2586, %v2585
    %v2597 = vpack.c.b16 %v2588, %v2587
    %v2598 = vpack.c.b16 %v2590, %v2589
    %2607 = vmatprep.subr.bf16.mxu0 0
    %2608 = vmatpush1.bf16.msra.mxu0 %v2598
    %2609 = vmatprep.subr.bf16.mxu0 0
    %2610 = vmatpush1.bf16.msra.mxu0 %v2597
    %2611 = vmatprep.subr.bf16.mxu0 0
    %2612 = vmatpush1.bf16.msra.mxu0 %v2596
    %2613 = vmatprep.subr.bf16.mxu0 0
    %2614 = vmatpush1.bf16.msra.mxu0 %v2595
    %2615 = vmatprep.subr.bf16.mxu0 0
    %2616 = vmatpush1.bf16.msra.mxu0 %v2594
    %2617 = vmatprep.subr.bf16.mxu0 0
    %2618 = vmatpush1.bf16.msra.mxu0 %v2593
    %2619 = vmatprep.subr.bf16.mxu0 0
    %2620 = vmatpush1.bf16.msra.mxu0 %v2592
    %2621 = vmatprep.subr.bf16.mxu0 0
    %2622 = vmatpush1.bf16.msra.mxu0 %v2591
    %2623 = vmatprep.subr.bf16.mxu0 0
    %2624 = vmatpush2.bf16.msra.mxu0 0
    %2625 = vmatprep.subr.bf16.mxu0 0
    %2626 = vmatpush2.bf16.msra.mxu0 0
    %2627 = vmatprep.subr.bf16.mxu0 0
    %2628 = vmatpush2.bf16.msra.mxu0 0
    %2629 = vmatprep.subr.bf16.mxu0 0
    %2630 = vmatpush2.bf16.msra.mxu0 0
    %2631 = vmatprep.subr.bf16.mxu0 0
    %2632 = vmatpush2.bf16.msra.mxu0 0
    %2633 = vmatprep.subr.bf16.mxu0 0
    %2634 = vmatpush2.bf16.msra.mxu0 0
    %2635 = vmatprep.subr.bf16.mxu0 0
    %2636 = vmatpush2.bf16.msra.mxu0 0
    %2637 = vmatprep.subr.bf16.mxu0 0
    %2638 = vmatpush2.bf16.msra.mxu0 0
    %2639 = vmatprep.mubr.bf16.mxu0 0
    %2640 = vmatmul.mubr.bf16.gmra.mxu0 %v2558
    %v2641 = vpop.f32.mrf.mxu0
    %v2642 = vadd.f32 0.0, %v2641
    %v2643 = vpop.f32.mrf.mxu0
    %v2644 = vpop.f32.mrf.mxu0
    %v2645 = vpop.f32.mrf.mxu0
    %2646 = vdwg.mxu0
    %2647 = vst [vmem:[#allocation20] sm:$0xff] %v2642
    // Predicated region
    $region142: #{tpu_custom_call.1} parent=1 // pred_check
      _
    $region143: #{tpu_custom_call.1} parent=1 // pred_check_branch
      %2649 = sbr.rel (0) target = $region145
    $region144: #{tpu_custom_call.1} parent=1 // pred_region
      %s2651 = ssub.s32 128, 128
      %2652 = vsyncadd [#allocation9], %s2651
      %s2654 = sshll.u32 [#allocation19], 4
      %s2655 = int_to_ptr.vmem [resolvable:$true] %s2654
      %2657 = dma.vmem_to_hbm [thread:$0]  %s2655, 128, %s13, [#allocation9]
    $region145: #{tpu_custom_call.1} parent=1 // pred_fallthru
      _
    // Predicated region
    $region146: #{tpu_custom_call.1} parent=1 // pred_check
      _
    $region147: #{tpu_custom_call.1} parent=1 // pred_check_branch
      %2659 = sbr.rel (0) target = $region149
    $region148: #{tpu_custom_call.1} parent=1 // pred_region
      %s2661 = ssub.s32 128, 128
      %2662 = vsyncadd [#allocation21], %s2661
      %s2664 = sshll.u32 [#allocation20], 4
      %s2665 = int_to_ptr.vmem [resolvable:$true] %s2664
      %2667 = dma.vmem_to_hbm [thread:$0]  %s2665, 128, %s14, [#allocation21]
    $region149: #{tpu_custom_call.1} parent=1 // pred_fallthru
      _
    // Predicated region
    $region150: #{tpu_custom_call.1} parent=1 // pred_check
      _
    $region151: #{tpu_custom_call.1} parent=1 // pred_check_branch
      %2669 = sbr.rel (0) target = $region153
    $region152: #{tpu_custom_call.1} parent=1 // pred_region
      %2670 = dma.done [#allocation9], 128
    $region153: #{tpu_custom_call.1} parent=1 // pred_fallthru
      _
    // Predicated region
    $region154: #{tpu_custom_call.1} parent=1 // pred_check
      _
    $region155: #{tpu_custom_call.1} parent=1 // pred_check_branch
      %2672 = sbr.rel (0) target = $region157
    $region156: #{tpu_custom_call.1} parent=1 // pred_region
      %2673 = dma.done [#allocation21], 128
    $region157: #{tpu_custom_call.1} parent=1 // pred_fallthru
      _
    %2674 = vsyncpa [#allocation8], 1
    %2675 = vsyncpa [#allocation11], 1
    %2676 = vsyncpa [#allocation14], 1
    %2677 = vsyncpa [#allocation17], 1
    %2678 = vsyncpa [#allocation9], 1
    %2679 = vsyncpa [#allocation21], 1
  %2680 = vsyncmov [#allocation6]
  %s2681 = vpop.sfrf %2680
  %p2682 = scmp.eq.s32.totalorder %s2681, 0
  %p2683 = pneg %p2682
  %2685 = shalt.err (%p2683)
  %s2686 = scalar_lea.sflag [#allocation6], 1
  %2687 = vsyncmov %s2686
  %s2688 = vpop.sfrf %2687
  %p2689 = scmp.eq.s32.totalorder %s2688, 0
  %p2690 = pneg %p2689
  %2692 = shalt.err (%p2690)
  %s2693 = scalar_lea.sflag [#allocation6], 2
  %2694 = vsyncmov %s2693
  %s2695 = vpop.sfrf %2694
  %p2696 = scmp.eq.s32.totalorder %s2695, 0
  %p2697 = pneg %p2696
  %2699 = shalt.err (%p2697)
  %s2700 = scalar_lea.sflag [#allocation6], 3
  %2701 = vsyncmov %s2700
  %s2702 = vpop.sfrf %2701
  %p2703 = scmp.eq.s32.totalorder %s2702, 0
  %p2704 = pneg %p2703
  %2706 = shalt.err (%p2704)

</llo_original>
